<compile_context>
chip_gen: v5e
topology: v5e:2x2
jax: 0.10.0
libtpu: 0.0.40
codegen_flags: <defaults>
</compile_context>

<pallas_src>
import functools

import jax
import jax.numpy as jnp
import numpy as np
from jax.experimental import pallas as pl
from jax.experimental.pallas import tpu as pltpu

EPS = 1e-5          # torch default eps for InstanceNorm2d / LayerNorm
NEG_SLOPE = 0.01    # torch default LeakyReLU negative slope


# ----------------------------- in-kernel helpers -----------------------------
def _leaky_relu(x):
    return jnp.where(x >= 0, x, NEG_SLOPE * x)


def _layer_norm(a, gamma, beta):
    # centered (two-pass) variance: matches torch and avoids cancellation
    mu = jnp.mean(a, axis=-1, keepdims=True)
    c = a - mu
    var = jnp.mean(c * c, axis=-1, keepdims=True)
    return c * jax.lax.rsqrt(var + EPS) * gamma + beta


def _inorm_conv3x3_im(x_im, w9_bf, bias):
    """InstanceNorm2d + Conv2d(3x3, pad=1) + LeakyReLU, i-major layout.

    x_im:  (L, Cin, L_j) float32   -- lane dim is L_j (lane-dense)
    w9_bf: (Cout, 9*Cin) bfloat16  -- k index = kh*3*Cin + kw*Cin + ci
    bias:  (Cout, 1) float32
    returns (L, Cout, L_j) float32

    Lowered as a 9-tap im2col: three j-shifted variants are built once
    (lane-axis shifts), the three i shifts are cheap leading-axis slices, and
    the whole conv is one batched-over-i MXU matmul (K = 9*Cin).
    """
    L, cin, _ = x_im.shape
    cout = w9_bf.shape[0]
    assert w9_bf.shape[1] == 9 * cin

    # per-channel instance-norm statistics over the (i, j) plane (centered var)
    mu = jnp.mean(x_im, axis=(0, 2), keepdims=True)
    dev = x_im - mu
    var = jnp.mean(dev * dev, axis=(0, 2), keepdims=True)
    xn = (dev * jax.lax.rsqrt(var + EPS)).astype(jnp.bfloat16)

    # three j-shifted variants (kw = 0, 1, 2 reads source column j + kw - 1)
    zj = jnp.zeros((L, cin, 1), jnp.bfloat16)
    xj = jnp.concatenate(
        [jnp.concatenate([zj, xn[:, :, :L - 1]], axis=2),   # kw = 0
         xn,                                                 # kw = 1
         jnp.concatenate([xn[:, :, 1:], zj], axis=2)],       # kw = 2
        axis=1)                                              # (L, 3*Cin, L_j)

    # three i shifts (kh = 0, 1, 2 reads source row i + kh - 1): leading axis
    zi = jnp.zeros((1, 3 * cin, L), jnp.bfloat16)
    stack = jnp.concatenate(
        [jnp.concatenate([zi, xj[:L - 1]], axis=0),          # kh = 0
         xj,                                                 # kh = 1
         jnp.concatenate([xj[1:], zi], axis=0)],             # kh = 2
        axis=1)                                              # (L, 9*Cin, L_j)

    # one batched MXU matmul over the i rows: (Cout, 9Cin) @ (9Cin, L_j)
    w_b = jnp.broadcast_to(w9_bf, (L, cout, 9 * cin))
    out = jnp.einsum('ick,ikj->icj', w_b, stack,
                     preferred_element_type=jnp.float32)
    out = out + bias[None]                                   # (1, Cout, 1)
    return _leaky_relu(out)


# --------------------------------- kernel ------------------------------------
def _geom_attn_kernel(n_head,
                      x_ref, z_ref, mrow_ref, mcol_ref,
                      wqkv_ref, wp2a_ref,
                      c1w_ref, c1b_ref, c2w_ref, c2b_ref,
                      lnc_g_ref, lnc_b_ref, w1_ref, b1_ref,
                      ln2_g_ref, ln2_b_ref, w2_ref, b2_ref,
                      lno_g_ref, lno_b_ref,
                      xout_ref, zout_ref):
    L = x_ref.shape[1]
    D = x_ref.shape[2]
    P = z_ref.shape[2]
    H = n_head
    d = D // H

    x = x_ref[0]          # (L, D)
    z_im = z_ref[0]       # (L_i, P, L_j)  i-major, lane-dense
    mrow = mrow_ref[0]    # (L, 1) float 0/1
    mcol = mcol_ref[0]    # (1, L)

    z_bf = z_im.astype(jnp.bfloat16)

    # ---- fused Q/K/V projection: one (L, D) @ (D, 3D) matmul (f32, tiny) ----
    # 1/sqrt(head_dim) is pre-folded into the query weight by the wrapper.
    qkv = jnp.dot(x, wqkv_ref[...], preferred_element_type=jnp.float32)
    q = qkv[:, :D].astype(jnp.bfloat16)
    k = qkv[:, D:2 * D].astype(jnp.bfloat16)
    v = qkv[:, 2 * D:].astype(jnp.bfloat16)

    # ---- _node2alpha: per-head MXU matmuls, assembled i-major (L, H, L) ----
    afn_parts = []
    for h in range(H):
        hs = slice(h * d, (h + 1) * d)
        s_h = jnp.einsum('id,jd->ij', q[:, hs], k[:, hs],
                         preferred_element_type=jnp.float32)
        afn_parts.append(s_h[:, None, :])
    afn_im = jnp.concatenate(afn_parts, axis=1)               # (L, H, L)

    # ---- _pair2alpha: batched MXU matmul over i (K = P) ----
    wp2a_b = jnp.broadcast_to(wp2a_ref[...], (L, H, P))       # bf16
    afp_im = jnp.einsum('ihp,ipj->ihj', wp2a_b, z_bf,
                        preferred_element_type=jnp.float32)   # (L, H, L)

    # ---- conv2dalpha: InstanceNorm + 3x3 conv + LeakyReLU (im2col MXU) ----
    cat1 = jnp.concatenate([afp_im, afn_im], axis=1)          # (L, 2H, L)
    alpha_sum = _inorm_conv3x3_im(cat1, c1w_ref[...], c1b_ref[...])  # (L, H, L)

    # ---- masking + softmax over j (lane axis), hoisted mask bias ----
    mask_pair = mrow * mcol                                   # (L, L)
    bias3 = (-1e6 * (1.0 - mask_pair))[:, None, :]            # (L, 1, L)
    mrow3 = mrow[:, :, None]                                  # (L, 1, 1)
    am = alpha_sum + bias3
    am = am - jnp.max(am, axis=2, keepdims=True)
    e = jnp.exp(am)
    s = jnp.sum(e, axis=2, keepdims=True)
    alpha_im = e * pl.reciprocal(s, approx=True) * mrow3      # (L, H, L)
    alpha_bf = alpha_im.astype(jnp.bfloat16)

    # ---- _node_aggregation: per-head MXU matmuls (K = L) ----
    nfn_parts = []
    for h in range(H):
        nfn_parts.append(jnp.dot(alpha_bf[:, h, :], v[:, h * d:(h + 1) * d],
                                 preferred_element_type=jnp.float32))
    node_from_node = jnp.concatenate(nfn_parts, axis=-1)      # (L, D)

    # ---- _pair_aggregation: batched MXU contraction over j (K = L) ----
    nfp = jnp.einsum('ihj,ipj->ihp', alpha_bf, z_bf,
                     preferred_element_type=jnp.float32)      # (L, H, P)
    node_from_pair = jnp.concatenate([nfp[:, h, :] for h in range(H)], axis=-1)

    # ---- out_transform: LN -> Linear -> LN -> LeakyReLU -> Linear (f32) ----
    feat = jnp.concatenate([node_from_pair, node_from_node], axis=-1)
    h1 = _layer_norm(feat, lnc_g_ref[...], lnc_b_ref[...])
    h1 = jnp.dot(h1, w1_ref[...], preferred_element_type=jnp.float32) + b1_ref[...]
    h1 = _leaky_relu(_layer_norm(h1, ln2_g_ref[...], ln2_b_ref[...]))
    x_out = jnp.dot(h1, w2_ref[...], preferred_element_type=jnp.float32) + b2_ref[...]

    # ---- residual + final LayerNorm ----
    xout_ref[0] = _layer_norm(x + x_out, lno_g_ref[...], lno_b_ref[...])

    # ---- alpha2pair: same im2col MXU conv, output stays i-major/lane-dense ----
    cat2 = jnp.concatenate([z_im, alpha_im], axis=1)          # (L, P+H, L)
    zout_ref[0] = _inorm_conv3x3_im(cat2, c2w_ref[...], c2b_ref[...])


# --------------------------------- wrapper ------------------------------------
def pretrain_geometric_attention(x, z, mask, params, n_head):
    N, L, D = x.shape
    P = z.shape[-1]
    H = n_head
    d = D // H
    Cin2 = P + H

    mrow = mask.astype(jnp.float32)[:, :, None]   # (N, L, 1)
    mcol = mask.astype(jnp.float32)[:, None, :]   # (N, 1, L)

    # lane-dense i-major pair tensor: (N, L, L, P) -> (N, L_i, P, L_j)
    z_im = jnp.transpose(z, (0, 1, 3, 2))

    # one-time parameter prep (outside the kernel, XLA level)
    wqkv = jnp.concatenate(
        [params['wq'] * float(1.0 / np.sqrt(d)), params['wk'], params['wv']],
        axis=1)                                                       # (D, 3D)
    wp2a_t = jnp.transpose(params['wp2a']).astype(jnp.bfloat16)       # (H, P)
    # conv weights in 9-tap im2col order: k = kh*3*Cin + kw*Cin + ci
    c1w9 = jnp.transpose(params['c1w'], (0, 2, 3, 1)).reshape(
        H, 9 * 2 * H).astype(jnp.bfloat16)
    c1b = params['c1b'].reshape(H, 1)
    c2w9 = jnp.transpose(params['c2w'], (0, 2, 3, 1)).reshape(
        P, 9 * Cin2).astype(jnp.bfloat16)
    c2b = params['c2b'].reshape(P, 1)

    weights = [wqkv, wp2a_t, c1w9, c1b, c2w9, c2b,
               params['lnc_g'], params['lnc_b'], params['w1'], params['b1'],
               params['ln2_g'], params['ln2_b'], params['w2'], params['b2'],
               params['lno_g'], params['lno_b']]

    def const_spec(arr):
        nd = arr.ndim
        return pl.BlockSpec(arr.shape, lambda b, _nd=nd: (0,) * _nd)

    in_specs = [
        pl.BlockSpec((1, L, D), lambda b: (b, 0, 0)),         # x
        pl.BlockSpec((1, L, P, L), lambda b: (b, 0, 0, 0)),   # z (i-major)
        pl.BlockSpec((1, L, 1), lambda b: (b, 0, 0)),         # row mask
        pl.BlockSpec((1, 1, L), lambda b: (b, 0, 0)),         # col mask
    ] + [const_spec(w) for w in weights]

    out_specs = [
        pl.BlockSpec((1, L, D), lambda b: (b, 0, 0)),
        pl.BlockSpec((1, L, P, L), lambda b: (b, 0, 0, 0)),
    ]
    out_shape = (jax.ShapeDtypeStruct((N, L, D), jnp.float32),
                 jax.ShapeDtypeStruct((N, L, P, L), jnp.float32))

    # VMEM budget: v5e/v6e have 128 MiB physical -> allow large resident blocks;
    # keep a conservative cap elsewhere (v7x has only 64 MiB per TC).
    kind = jax.devices()[0].device_kind.lower()
    if ('v5 lite' in kind) or ('v5e' in kind) or ('v6' in kind):
        vmem_limit = 100 * 1024 * 1024
    else:
        vmem_limit = 64 * 1024 * 1024

    kernel = functools.partial(_geom_attn_kernel, n_head)

    xout, zout_im = pl.pallas_call(
        kernel,
        out_shape=out_shape,
        grid_spec=pltpu.PrefetchScalarGridSpec(
            num_scalar_prefetch=0,
            grid=(N,),
            in_specs=in_specs,
            out_specs=out_specs,
        ),
        compiler_params=pltpu.CompilerParams(
            dimension_semantics=("parallel",),
            vmem_limit_bytes=vmem_limit),
    )(x, z_im, mrow, mcol, *weights)

    zout = jnp.transpose(zout_im, (0, 1, 3, 2))   # back to external (N, L, L, P)
    return xout, zout


# ----------------------------- parameter init ---------------------------------
def init_params(key, node_dim, n_head, pair_dim):
    D, H, P = node_dim, n_head, pair_dim
    F = H * P + D
    ks = jax.random.split(key, 18)

    def nrm(k, shape, s=0.1):
        return jax.random.normal(k, shape, jnp.float32) * s

    p = {}
    p['wq'] = nrm(ks[0], (D, D))            # Linear weights stored (in, out): y = x @ W
    p['wk'] = nrm(ks[1], (D, D))
    p['wv'] = nrm(ks[2], (D, D))
    p['wp2a'] = nrm(ks[3], (P, H))
    p['c1w'] = nrm(ks[4], (H, 2 * H, 3, 3))   # torch Conv2d layout (co, ci, kh, kw)
    p['c1b'] = nrm(ks[5], (H,))
    p['lnc_g'] = 1.0 + nrm(ks[6], (1, F))
    p['lnc_b'] = nrm(ks[7], (1, F))
    p['w1'] = nrm(ks[8], (F, 2 * D))
    p['b1'] = nrm(ks[9], (1, 2 * D))
    p['ln2_g'] = 1.0 + nrm(ks[10], (1, 2 * D))
    p['ln2_b'] = nrm(ks[11], (1, 2 * D))
    p['w2'] = nrm(ks[12], (2 * D, D))
    p['b2'] = nrm(ks[13], (1, D))
    p['lno_g'] = 1.0 + nrm(ks[14], (1, D))
    p['lno_b'] = nrm(ks[15], (1, D))
    p['c2w'] = nrm(ks[16], (P, H + P, 3, 3))  # torch Conv2d layout
    p['c2b'] = nrm(ks[17], (P,))
    return p


# ---------------------------- pure-JAX reference -------------------------------
def _conv_ref(a, w, bias):
    """InstanceNorm2d + 3x3 conv (pad=1) + LeakyReLU; a: (N,L,L,Cin), w: (Cout,Cin,3,3)."""
    mean = a.mean(axis=(1, 2), keepdims=True)
    var = ((a - mean) ** 2).mean(axis=(1, 2), keepdims=True)
    an = (a - mean) / jnp.sqrt(var + EPS)
    w_hwio = jnp.transpose(w, (2, 3, 1, 0))
    out = jax.lax.conv_general_dilated(
        an, w_hwio, (1, 1), 'SAME', dimension_numbers=('NHWC', 'HWIO', 'NHWC'))
    out = out + bias
    return jnp.where(out >= 0, out, NEG_SLOPE * out)


def reference(x, z, mask, params, n_head):
    N, L, D = x.shape
    P = z.shape[-1]
    H = n_head
    d = D // H

    q = (x @ params['wq']).reshape(N, L, H, d)
    k = (x @ params['wk']).reshape(N, L, H, d)
    v = (x @ params['wv']).reshape(N, L, H, d)
    afn = jnp.einsum('nihd,njhd->nijh', q, k) / np.sqrt(d)
    afp = z @ params['wp2a']
    alpha_sum = _conv_ref(jnp.concatenate([afp, afn], axis=-1),
                          params['c1w'], params['c1b'])
    mrow = mask[:, :, None, None]
    mpair = mrow & mask[:, None, :, None]
    alpha_sum = jnp.where(mpair, alpha_sum, alpha_sum - 1e6)
    alpha = jax.nn.softmax(alpha_sum, axis=2)
    alpha = jnp.where(mrow, alpha, 0.0)
    nfn = jnp.einsum('nijh,njhd->nihd', alpha, v).reshape(N, L, D)
    nfp = jnp.einsum('nijh,nijp->nihp', alpha, z).reshape(N, L, H * P)

    def ln(a, g, b):
        mu = a.mean(-1, keepdims=True)
        var = ((a - mu) ** 2).mean(-1, keepdims=True)
        return (a - mu) / jnp.sqrt(var + EPS) * g + b

    feat = jnp.concatenate([nfp, nfn], axis=-1)
    h1 = ln(feat, params['lnc_g'][0], params['lnc_b'][0])
    h1 = h1 @ params['w1'] + params['b1'][0]
    h1 = ln(h1, params['ln2_g'][0], params['ln2_b'][0])
    h1 = jnp.where(h1 >= 0, h1, NEG_SLOPE * h1)
    x_out = h1 @ params['w2'] + params['b2'][0]
    x_new = ln(x + x_out, params['lno_g'][0], params['lno_b'][0])

    z_new = _conv_ref(jnp.concatenate([z, alpha], axis=-1),
                      params['c2w'], params['c2b'])
    return x_new, z_new


# ----------------------------------- main --------------------------------------
if __name__ == "__main__":
    N, L = 2, 8
    node_dim, n_head, pair_dim = 32, 4, 8

    key = jax.random.PRNGKey(0)
    kx, kz, km, kp = jax.random.split(key, 4)
    x = jax.random.normal(kx, (N, L, node_dim), jnp.float32)
    z = jax.random.normal(kz, (N, L, L, pair_dim), jnp.float32)
    mask = jax.random.uniform(km, (N, L)) > 0.2   # bool mask
    params = init_params(kp, node_dim, n_head, pair_dim)

    x_new, z_new = pretrain_geometric_attention(x, z, mask, params, n_head)
    jax.block_until_ready((x_new, z_new))

    xr, zr = reference(x, z, mask, params, n_head)
    # tolerance accounts for bf16 MXU operands on the L^2-scaled matmuls
    # (scores, pair2alpha, both im2col convs, both aggregations) and the
    # approximate EUP reciprocal in the softmax denominator.
    np.testing.assert_allclose(np.asarray(x_new), np.asarray(xr), rtol=3e-2, atol=3e-2)
    np.testing.assert_allclose(np.asarray(z_new), np.asarray(zr), rtol=3e-2, atol=3e-2)

    print("KERNEL_OK")
</pallas_src>

<mosaic_0001>
module attributes {stable_mosaic.version = 11 : i64} {
  func.func @_geom_attn_kernel(%arg0: i32, %arg1: memref<1x8x32xf32, #tpu.memory_space<vmem>>, %arg2: memref<1x8x8x8xf32, #tpu.memory_space<vmem>>, %arg3: memref<1x8x1xf32, #tpu.memory_space<vmem>>, %arg4: memref<1x1x8xf32, #tpu.memory_space<vmem>>, %arg5: memref<32x96xf32, #tpu.memory_space<vmem>>, %arg6: memref<4x8xbf16, #tpu.memory_space<vmem>>, %arg7: memref<4x72xbf16, #tpu.memory_space<vmem>>, %arg8: memref<4x1xf32, #tpu.memory_space<vmem>>, %arg9: memref<8x108xbf16, #tpu.memory_space<vmem>>, %arg10: memref<8x1xf32, #tpu.memory_space<vmem>>, %arg11: memref<1x64xf32, #tpu.memory_space<vmem>>, %arg12: memref<1x64xf32, #tpu.memory_space<vmem>>, %arg13: memref<64x64xf32, #tpu.memory_space<vmem>>, %arg14: memref<1x64xf32, #tpu.memory_space<vmem>>, %arg15: memref<1x64xf32, #tpu.memory_space<vmem>>, %arg16: memref<1x64xf32, #tpu.memory_space<vmem>>, %arg17: memref<64x32xf32, #tpu.memory_space<vmem>>, %arg18: memref<1x32xf32, #tpu.memory_space<vmem>>, %arg19: memref<1x32xf32, #tpu.memory_space<vmem>>, %arg20: memref<1x32xf32, #tpu.memory_space<vmem>>, %arg21: memref<1x8x32xf32, #tpu.memory_space<vmem>>, %arg22: memref<1x8x8x8xf32, #tpu.memory_space<vmem>>) attributes {dimension_semantics = [#tpu.dimension_semantics<parallel>], iteration_bounds = array<i64: 2>, scalar_prefetch = 0 : i64, scratch_operands = 0 : i64, tpu.core_type = #tpu.core_type<tc>, window_params = [{transform_indices = @transform_0, window_bounds = array<i64: 1, 8, 32>}, {transform_indices = @transform_1, window_bounds = array<i64: 1, 8, 8, 8>}, {transform_indices = @transform_2, window_bounds = array<i64: 1, 8, 1>}, {transform_indices = @transform_3, window_bounds = array<i64: 1, 1, 8>}, {pipeline_mode = #tpu.pipeline_mode<synchronous>, transform_indices = @transform_4, window_bounds = array<i64: 32, 96>}, {pipeline_mode = #tpu.pipeline_mode<synchronous>, transform_indices = @transform_5, window_bounds = array<i64: 4, 8>}, {pipeline_mode = #tpu.pipeline_mode<synchronous>, transform_indices = @transform_6, window_bounds = array<i64: 4, 72>}, {pipeline_mode = #tpu.pipeline_mode<synchronous>, transform_indices = @transform_7, window_bounds = array<i64: 4, 1>}, {pipeline_mode = #tpu.pipeline_mode<synchronous>, transform_indices = @transform_8, window_bounds = array<i64: 8, 108>}, {pipeline_mode = #tpu.pipeline_mode<synchronous>, transform_indices = @transform_9, window_bounds = array<i64: 8, 1>}, {pipeline_mode = #tpu.pipeline_mode<synchronous>, transform_indices = @transform_10, window_bounds = array<i64: 1, 64>}, {pipeline_mode = #tpu.pipeline_mode<synchronous>, transform_indices = @transform_11, window_bounds = array<i64: 1, 64>}, {pipeline_mode = #tpu.pipeline_mode<synchronous>, transform_indices = @transform_12, window_bounds = array<i64: 64, 64>}, {pipeline_mode = #tpu.pipeline_mode<synchronous>, transform_indices = @transform_13, window_bounds = array<i64: 1, 64>}, {pipeline_mode = #tpu.pipeline_mode<synchronous>, transform_indices = @transform_14, window_bounds = array<i64: 1, 64>}, {pipeline_mode = #tpu.pipeline_mode<synchronous>, transform_indices = @transform_15, window_bounds = array<i64: 1, 64>}, {pipeline_mode = #tpu.pipeline_mode<synchronous>, transform_indices = @transform_16, window_bounds = array<i64: 64, 32>}, {pipeline_mode = #tpu.pipeline_mode<synchronous>, transform_indices = @transform_17, window_bounds = array<i64: 1, 32>}, {pipeline_mode = #tpu.pipeline_mode<synchronous>, transform_indices = @transform_18, window_bounds = array<i64: 1, 32>}, {pipeline_mode = #tpu.pipeline_mode<synchronous>, transform_indices = @transform_19, window_bounds = array<i64: 1, 32>}, {transform_indices = @transform_20, window_bounds = array<i64: 1, 8, 32>}, {transform_indices = @transform_21, window_bounds = array<i64: 1, 8, 8, 8>}]} {
    %c0 = arith.constant 0 : index
    %c0_0 = arith.constant 0 : index
    %c0_1 = arith.constant 0 : index
    %0 = vector.load %arg1[%c0, %c0_0, %c0_1] : memref<1x8x32xf32, #tpu.memory_space<vmem>>, vector<1x8x32xf32>
    %1 = vector.shape_cast %0 : vector<1x8x32xf32> to vector<8x32xf32>
    %c0_2 = arith.constant 0 : index
    %c0_3 = arith.constant 0 : index
    %c0_4 = arith.constant 0 : index
    %c0_5 = arith.constant 0 : index
    %2 = vector.load %arg2[%c0_2, %c0_3, %c0_4, %c0_5] : memref<1x8x8x8xf32, #tpu.memory_space<vmem>>, vector<1x8x8x8xf32>
    %3 = vector.shape_cast %2 : vector<1x8x8x8xf32> to vector<8x8x8xf32>
    %c0_6 = arith.constant 0 : index
    %c0_7 = arith.constant 0 : index
    %c0_8 = arith.constant 0 : index
    %4 = vector.load %arg3[%c0_6, %c0_7, %c0_8] : memref<1x8x1xf32, #tpu.memory_space<vmem>>, vector<1x8x1xf32>
    %5 = vector.shape_cast %4 : vector<1x8x1xf32> to vector<8x1xf32>
    %c0_9 = arith.constant 0 : index
    %c0_10 = arith.constant 0 : index
    %c0_11 = arith.constant 0 : index
    %6 = vector.load %arg4[%c0_9, %c0_10, %c0_11] : memref<1x1x8xf32, #tpu.memory_space<vmem>>, vector<1x1x8xf32>
    %7 = vector.shape_cast %6 : vector<1x1x8xf32> to vector<1x8xf32>
    %8 = arith.truncf %3 : vector<8x8x8xf32> to vector<8x8x8xbf16>
    %c0_12 = arith.constant 0 : index
    %c0_13 = arith.constant 0 : index
    %9 = vector.load %arg5[%c0_12, %c0_13] : memref<32x96xf32, #tpu.memory_space<vmem>>, vector<32x96xf32>
    %cst = arith.constant dense<0.000000e+00> : vector<8x96xf32>
    %10 = tpu.matmul %1, %9, %cst {dimension_numbers = #tpu.dot_dimension_numbers<[1], [0], [0], [1], [0, 0, 1, 1], [], []>} : vector<8x32xf32>, vector<32x96xf32>, vector<8x96xf32> -> vector<8x96xf32>
    %11 = vector.extract_strided_slice %10 {offsets = [0, 0], sizes = [8, 32], strides = [1, 1]} : vector<8x96xf32> to vector<8x32xf32>
    %12 = arith.truncf %11 : vector<8x32xf32> to vector<8x32xbf16>
    %13 = vector.extract_strided_slice %10 {offsets = [0, 32], sizes = [8, 32], strides = [1, 1]} : vector<8x96xf32> to vector<8x32xf32>
    %14 = arith.truncf %13 : vector<8x32xf32> to vector<8x32xbf16>
    %15 = vector.extract_strided_slice %10 {offsets = [0, 64], sizes = [8, 32], strides = [1, 1]} : vector<8x96xf32> to vector<8x32xf32>
    %16 = arith.truncf %15 : vector<8x32xf32> to vector<8x32xbf16>
    %17 = vector.extract_strided_slice %12 {offsets = [0, 0], sizes = [8, 8], strides = [1, 1]} : vector<8x32xbf16> to vector<8x8xbf16>
    %18 = vector.extract_strided_slice %14 {offsets = [0, 0], sizes = [8, 8], strides = [1, 1]} : vector<8x32xbf16> to vector<8x8xbf16>
    "tpu.trace_start"() <{level = 10 : i32, message = "id,jd->ij"}> : () -> ()
    %cst_14 = arith.constant dense<0.000000e+00> : vector<8x8xf32>
    %19 = tpu.matmul %17, %18, %cst_14 {dimension_numbers = #tpu.dot_dimension_numbers<[1], [1], [0], [0], [0, 0, 1, 0], [], []>} : vector<8x8xbf16>, vector<8x8xbf16>, vector<8x8xf32> -> vector<8x8xf32>
    "tpu.trace_stop"() : () -> ()
    %20 = vector.shape_cast %19 : vector<8x8xf32> to vector<8x1x8xf32>
    %21 = vector.extract_strided_slice %12 {offsets = [0, 8], sizes = [8, 8], strides = [1, 1]} : vector<8x32xbf16> to vector<8x8xbf16>
    %22 = vector.extract_strided_slice %14 {offsets = [0, 8], sizes = [8, 8], strides = [1, 1]} : vector<8x32xbf16> to vector<8x8xbf16>
    "tpu.trace_start"() <{level = 10 : i32, message = "id,jd->ij"}> : () -> ()
    %cst_15 = arith.constant dense<0.000000e+00> : vector<8x8xf32>
    %23 = tpu.matmul %21, %22, %cst_15 {dimension_numbers = #tpu.dot_dimension_numbers<[1], [1], [0], [0], [0, 0, 1, 0], [], []>} : vector<8x8xbf16>, vector<8x8xbf16>, vector<8x8xf32> -> vector<8x8xf32>
    "tpu.trace_stop"() : () -> ()
    %24 = vector.shape_cast %23 : vector<8x8xf32> to vector<8x1x8xf32>
    %25 = vector.extract_strided_slice %12 {offsets = [0, 16], sizes = [8, 8], strides = [1, 1]} : vector<8x32xbf16> to vector<8x8xbf16>
    %26 = vector.extract_strided_slice %14 {offsets = [0, 16], sizes = [8, 8], strides = [1, 1]} : vector<8x32xbf16> to vector<8x8xbf16>
    "tpu.trace_start"() <{level = 10 : i32, message = "id,jd->ij"}> : () -> ()
    %cst_16 = arith.constant dense<0.000000e+00> : vector<8x8xf32>
    %27 = tpu.matmul %25, %26, %cst_16 {dimension_numbers = #tpu.dot_dimension_numbers<[1], [1], [0], [0], [0, 0, 1, 0], [], []>} : vector<8x8xbf16>, vector<8x8xbf16>, vector<8x8xf32> -> vector<8x8xf32>
    "tpu.trace_stop"() : () -> ()
    %28 = vector.shape_cast %27 : vector<8x8xf32> to vector<8x1x8xf32>
    %29 = vector.extract_strided_slice %12 {offsets = [0, 24], sizes = [8, 8], strides = [1, 1]} : vector<8x32xbf16> to vector<8x8xbf16>
    %30 = vector.extract_strided_slice %14 {offsets = [0, 24], sizes = [8, 8], strides = [1, 1]} : vector<8x32xbf16> to vector<8x8xbf16>
    "tpu.trace_start"() <{level = 10 : i32, message = "id,jd->ij"}> : () -> ()
    %cst_17 = arith.constant dense<0.000000e+00> : vector<8x8xf32>
    %31 = tpu.matmul %29, %30, %cst_17 {dimension_numbers = #tpu.dot_dimension_numbers<[1], [1], [0], [0], [0, 0, 1, 0], [], []>} : vector<8x8xbf16>, vector<8x8xbf16>, vector<8x8xf32> -> vector<8x8xf32>
    "tpu.trace_stop"() : () -> ()
    %32 = vector.shape_cast %31 : vector<8x8xf32> to vector<8x1x8xf32>
    %33 = tpu.concatenate %20, %24, %28, %32 in 1 : vector<8x1x8xf32>, vector<8x1x8xf32>, vector<8x1x8xf32>, vector<8x1x8xf32> -> vector<8x4x8xf32>
    %c0_18 = arith.constant 0 : index
    %c0_19 = arith.constant 0 : index
    %34 = vector.load %arg6[%c0_18, %c0_19] : memref<4x8xbf16, #tpu.memory_space<vmem>>, vector<4x8xbf16>
    %35 = vector.shape_cast %34 : vector<4x8xbf16> to vector<1x4x8xbf16>
    %36 = vector.broadcast %35 : vector<1x4x8xbf16> to vector<8x4x8xbf16>
    "tpu.trace_start"() <{level = 10 : i32, message = "ihp,ipj->ihj"}> : () -> ()
    %cst_20 = arith.constant dense<0.000000e+00> : vector<8x4x8xf32>
    %37 = tpu.matmul %36, %8, %cst_20 {dimension_numbers = #tpu.dot_dimension_numbers<[2], [1], [1], [2], [0, 0, 0, 1, 1, 2], [0], [0]>} : vector<8x4x8xbf16>, vector<8x8x8xbf16>, vector<8x4x8xf32> -> vector<8x4x8xf32>
    "tpu.trace_stop"() : () -> ()
    %38 = tpu.concatenate %37, %33 in 1 : vector<8x4x8xf32>, vector<8x4x8xf32> -> vector<8x8x8xf32>
    %c0_21 = arith.constant 0 : index
    %c0_22 = arith.constant 0 : index
    %39 = vector.load %arg7[%c0_21, %c0_22] : memref<4x72xbf16, #tpu.memory_space<vmem>>, vector<4x72xbf16>
    %c0_23 = arith.constant 0 : index
    %c0_24 = arith.constant 0 : index
    %40 = vector.load %arg8[%c0_23, %c0_24] : memref<4x1xf32, #tpu.memory_space<vmem>>, vector<4x1xf32>
    %cst_25 = arith.constant dense<0.000000e+00> : vector<8xf32>
    %41 = vector.multi_reduction <add>, %38, %cst_25 [0, 2] : vector<8x8x8xf32> to vector<8xf32>
    %42 = vector.shape_cast %41 : vector<8xf32> to vector<1x8x1xf32>
    %cst_26 = arith.constant 6.400000e+01 : f32
    %43 = vector.broadcast %cst_26 : f32 to vector<1x8x1xf32>
    %44 = arith.divf %42, %43 : vector<1x8x1xf32>
    %45 = vector.broadcast %44 : vector<1x8x1xf32> to vector<8x8x8xf32>
    %46 = arith.subf %38, %45 : vector<8x8x8xf32>
    %47 = arith.mulf %46, %46 : vector<8x8x8xf32>
    %cst_27 = arith.constant dense<0.000000e+00> : vector<8xf32>
    %48 = vector.multi_reduction <add>, %47, %cst_27 [0, 2] : vector<8x8x8xf32> to vector<8xf32>
    %49 = vector.shape_cast %48 : vector<8xf32> to vector<1x8x1xf32>
    %cst_28 = arith.constant 6.400000e+01 : f32
    %50 = vector.broadcast %cst_28 : f32 to vector<1x8x1xf32>
    %51 = arith.divf %49, %50 : vector<1x8x1xf32>
    %cst_29 = arith.constant 9.99999974E-6 : f32
    %52 = vector.broadcast %cst_29 : f32 to vector<1x8x1xf32>
    %53 = arith.addf %51, %52 : vector<1x8x1xf32>
    %54 = math.rsqrt %53 : vector<1x8x1xf32>
    %55 = vector.broadcast %54 : vector<1x8x1xf32> to vector<8x8x8xf32>
    %56 = arith.mulf %46, %55 : vector<8x8x8xf32>
    %57 = arith.truncf %56 : vector<8x8x8xf32> to vector<8x8x8xbf16>
    %cst_30 = arith.constant 0.000000e+00 : bf16
    %58 = vector.broadcast %cst_30 : bf16 to vector<8x8x1xbf16>
    %59 = vector.extract_strided_slice %57 {offsets = [0, 0, 0], sizes = [8, 8, 7], strides = [1, 1, 1]} : vector<8x8x8xbf16> to vector<8x8x7xbf16>
    %60 = tpu.concatenate %58, %59 in 2 : vector<8x8x1xbf16>, vector<8x8x7xbf16> -> vector<8x8x8xbf16>
    %61 = vector.extract_strided_slice %57 {offsets = [0, 0, 1], sizes = [8, 8, 7], strides = [1, 1, 1]} : vector<8x8x8xbf16> to vector<8x8x7xbf16>
    %62 = tpu.concatenate %61, %58 in 2 : vector<8x8x7xbf16>, vector<8x8x1xbf16> -> vector<8x8x8xbf16>
    %63 = tpu.concatenate %60, %57, %62 in 1 : vector<8x8x8xbf16>, vector<8x8x8xbf16>, vector<8x8x8xbf16> -> vector<8x24x8xbf16>
    %cst_31 = arith.constant 0.000000e+00 : bf16
    %64 = vector.broadcast %cst_31 : bf16 to vector<1x24x8xbf16>
    %65 = vector.extract_strided_slice %63 {offsets = [0, 0, 0], sizes = [7, 24, 8], strides = [1, 1, 1]} : vector<8x24x8xbf16> to vector<7x24x8xbf16>
    %66 = tpu.concatenate %64, %65 in 0 : vector<1x24x8xbf16>, vector<7x24x8xbf16> -> vector<8x24x8xbf16>
    %67 = vector.extract_strided_slice %63 {offsets = [1, 0, 0], sizes = [7, 24, 8], strides = [1, 1, 1]} : vector<8x24x8xbf16> to vector<7x24x8xbf16>
    %68 = tpu.concatenate %67, %64 in 0 : vector<7x24x8xbf16>, vector<1x24x8xbf16> -> vector<8x24x8xbf16>
    %69 = tpu.concatenate %66, %63, %68 in 1 : vector<8x24x8xbf16>, vector<8x24x8xbf16>, vector<8x24x8xbf16> -> vector<8x72x8xbf16>
    %70 = vector.shape_cast %39 : vector<4x72xbf16> to vector<1x4x72xbf16>
    %71 = vector.broadcast %70 : vector<1x4x72xbf16> to vector<8x4x72xbf16>
    "tpu.trace_start"() <{level = 10 : i32, message = "ick,ikj->icj"}> : () -> ()
    %cst_32 = arith.constant dense<0.000000e+00> : vector<8x4x8xf32>
    %72 = tpu.matmul %71, %69, %cst_32 {dimension_numbers = #tpu.dot_dimension_numbers<[2], [1], [1], [2], [0, 0, 0, 1, 1, 2], [0], [0]>} : vector<8x4x72xbf16>, vector<8x72x8xbf16>, vector<8x4x8xf32> -> vector<8x4x8xf32>
    "tpu.trace_stop"() : () -> ()
    %73 = vector.shape_cast %40 : vector<4x1xf32> to vector<1x4x1xf32>
    %74 = vector.broadcast %73 : vector<1x4x1xf32> to vector<8x4x8xf32>
    %75 = arith.addf %72, %74 : vector<8x4x8xf32>
    %cst_33 = arith.constant 0.000000e+00 : f32
    %76 = vector.broadcast %cst_33 : f32 to vector<8x4x8xf32>
    %77 = arith.cmpf oge, %75, %76 : vector<8x4x8xf32>
    %cst_34 = arith.constant 0.00999999977 : f32
    %78 = vector.broadcast %cst_34 : f32 to vector<8x4x8xf32>
    %79 = arith.mulf %78, %75 : vector<8x4x8xf32>
    %80 = arith.select %77, %75, %79 : vector<8x4x8xi1>, vector<8x4x8xf32>
    %81 = vector.broadcast %5 : vector<8x1xf32> to vector<8x8xf32>
    %82 = vector.broadcast %7 : vector<1x8xf32> to vector<8x8xf32>
    %83 = arith.mulf %81, %82 : vector<8x8xf32>
    %cst_35 = arith.constant 1.000000e+00 : f32
    %84 = vector.broadcast %cst_35 : f32 to vector<8x8xf32>
    %85 = arith.subf %84, %83 : vector<8x8xf32>
    %cst_36 = arith.constant -1.000000e+06 : f32
    %86 = vector.broadcast %cst_36 : f32 to vector<8x8xf32>
    %87 = arith.mulf %86, %85 : vector<8x8xf32>
    %88 = vector.shape_cast %87 : vector<8x8xf32> to vector<8x1x8xf32>
    %89 = vector.shape_cast %5 : vector<8x1xf32> to vector<8x1x1xf32>
    %90 = vector.broadcast %88 : vector<8x1x8xf32> to vector<8x4x8xf32>
    %91 = arith.addf %80, %90 : vector<8x4x8xf32>
    %cst_37 = arith.constant dense<0xFF800000> : vector<8x4xf32>
    %92 = vector.multi_reduction <maximumf>, %91, %cst_37 [2] : vector<8x4x8xf32> to vector<8x4xf32>
    %93 = vector.shape_cast %92 : vector<8x4xf32> to vector<8x4x1xf32>
    %94 = vector.broadcast %93 : vector<8x4x1xf32> to vector<8x4x8xf32>
    %95 = arith.subf %91, %94 : vector<8x4x8xf32>
    %96 = math.exp %95 : vector<8x4x8xf32>
    %cst_38 = arith.constant dense<0.000000e+00> : vector<8x4xf32>
    %97 = vector.multi_reduction <add>, %96, %cst_38 [2] : vector<8x4x8xf32> to vector<8x4xf32>
    %98 = vector.shape_cast %97 : vector<8x4xf32> to vector<8x4x1xf32>
    %99 = tpu.reciprocal %98 {approx = true} : vector<8x4x1xf32> -> vector<8x4x1xf32>
    %100 = vector.broadcast %99 : vector<8x4x1xf32> to vector<8x4x8xf32>
    %101 = arith.mulf %96, %100 : vector<8x4x8xf32>
    %102 = vector.broadcast %89 : vector<8x1x1xf32> to vector<8x4x8xf32>
    %103 = arith.mulf %101, %102 : vector<8x4x8xf32>
    %104 = arith.truncf %103 : vector<8x4x8xf32> to vector<8x4x8xbf16>
    %105 = vector.extract_strided_slice %104 {offsets = [0, 0, 0], sizes = [8, 1, 8], strides = [1, 1, 1]} : vector<8x4x8xbf16> to vector<8x1x8xbf16>
    %106 = vector.shape_cast %105 : vector<8x1x8xbf16> to vector<8x8xbf16>
    %107 = vector.extract_strided_slice %16 {offsets = [0, 0], sizes = [8, 8], strides = [1, 1]} : vector<8x32xbf16> to vector<8x8xbf16>
    %cst_39 = arith.constant dense<0.000000e+00> : vector<8x8xf32>
    %108 = tpu.matmul %106, %107, %cst_39 {dimension_numbers = #tpu.dot_dimension_numbers<[1], [0], [0], [1], [0, 0, 1, 1], [], []>} : vector<8x8xbf16>, vector<8x8xbf16>, vector<8x8xf32> -> vector<8x8xf32>
    %109 = vector.extract_strided_slice %104 {offsets = [0, 1, 0], sizes = [8, 1, 8], strides = [1, 1, 1]} : vector<8x4x8xbf16> to vector<8x1x8xbf16>
    %110 = vector.shape_cast %109 : vector<8x1x8xbf16> to vector<8x8xbf16>
    %111 = vector.extract_strided_slice %16 {offsets = [0, 8], sizes = [8, 8], strides = [1, 1]} : vector<8x32xbf16> to vector<8x8xbf16>
    %cst_40 = arith.constant dense<0.000000e+00> : vector<8x8xf32>
    %112 = tpu.matmul %110, %111, %cst_40 {dimension_numbers = #tpu.dot_dimension_numbers<[1], [0], [0], [1], [0, 0, 1, 1], [], []>} : vector<8x8xbf16>, vector<8x8xbf16>, vector<8x8xf32> -> vector<8x8xf32>
    %113 = vector.extract_strided_slice %104 {offsets = [0, 2, 0], sizes = [8, 1, 8], strides = [1, 1, 1]} : vector<8x4x8xbf16> to vector<8x1x8xbf16>
    %114 = vector.shape_cast %113 : vector<8x1x8xbf16> to vector<8x8xbf16>
    %115 = vector.extract_strided_slice %16 {offsets = [0, 16], sizes = [8, 8], strides = [1, 1]} : vector<8x32xbf16> to vector<8x8xbf16>
    %cst_41 = arith.constant dense<0.000000e+00> : vector<8x8xf32>
    %116 = tpu.matmul %114, %115, %cst_41 {dimension_numbers = #tpu.dot_dimension_numbers<[1], [0], [0], [1], [0, 0, 1, 1], [], []>} : vector<8x8xbf16>, vector<8x8xbf16>, vector<8x8xf32> -> vector<8x8xf32>
    %117 = vector.extract_strided_slice %104 {offsets = [0, 3, 0], sizes = [8, 1, 8], strides = [1, 1, 1]} : vector<8x4x8xbf16> to vector<8x1x8xbf16>
    %118 = vector.shape_cast %117 : vector<8x1x8xbf16> to vector<8x8xbf16>
    %119 = vector.extract_strided_slice %16 {offsets = [0, 24], sizes = [8, 8], strides = [1, 1]} : vector<8x32xbf16> to vector<8x8xbf16>
    %cst_42 = arith.constant dense<0.000000e+00> : vector<8x8xf32>
    %120 = tpu.matmul %118, %119, %cst_42 {dimension_numbers = #tpu.dot_dimension_numbers<[1], [0], [0], [1], [0, 0, 1, 1], [], []>} : vector<8x8xbf16>, vector<8x8xbf16>, vector<8x8xf32> -> vector<8x8xf32>
    %121 = tpu.concatenate %108, %112, %116, %120 in 1 : vector<8x8xf32>, vector<8x8xf32>, vector<8x8xf32>, vector<8x8xf32> -> vector<8x32xf32>
    "tpu.trace_start"() <{level = 10 : i32, message = "ihj,ipj->ihp"}> : () -> ()
    %cst_43 = arith.constant dense<0.000000e+00> : vector<8x4x8xf32>
    %122 = tpu.matmul %104, %8, %cst_43 {dimension_numbers = #tpu.dot_dimension_numbers<[2], [2], [1], [1], [0, 0, 0, 1, 1, 1], [0], [0]>} : vector<8x4x8xbf16>, vector<8x8x8xbf16>, vector<8x4x8xf32> -> vector<8x4x8xf32>
    "tpu.trace_stop"() : () -> ()
    %123 = vector.extract_strided_slice %122 {offsets = [0, 0, 0], sizes = [8, 1, 8], strides = [1, 1, 1]} : vector<8x4x8xf32> to vector<8x1x8xf32>
    %124 = vector.shape_cast %123 : vector<8x1x8xf32> to vector<8x8xf32>
    %125 = vector.extract_strided_slice %122 {offsets = [0, 1, 0], sizes = [8, 1, 8], strides = [1, 1, 1]} : vector<8x4x8xf32> to vector<8x1x8xf32>
    %126 = vector.shape_cast %125 : vector<8x1x8xf32> to vector<8x8xf32>
    %127 = vector.extract_strided_slice %122 {offsets = [0, 2, 0], sizes = [8, 1, 8], strides = [1, 1, 1]} : vector<8x4x8xf32> to vector<8x1x8xf32>
    %128 = vector.shape_cast %127 : vector<8x1x8xf32> to vector<8x8xf32>
    %129 = vector.extract_strided_slice %122 {offsets = [0, 3, 0], sizes = [8, 1, 8], strides = [1, 1, 1]} : vector<8x4x8xf32> to vector<8x1x8xf32>
    %130 = vector.shape_cast %129 : vector<8x1x8xf32> to vector<8x8xf32>
    %131 = tpu.concatenate %124, %126, %128, %130 in 1 : vector<8x8xf32>, vector<8x8xf32>, vector<8x8xf32>, vector<8x8xf32> -> vector<8x32xf32>
    %132 = tpu.concatenate %131, %121 in 1 : vector<8x32xf32>, vector<8x32xf32> -> vector<8x64xf32>
    %c0_44 = arith.constant 0 : index
    %c0_45 = arith.constant 0 : index
    %133 = vector.load %arg11[%c0_44, %c0_45] : memref<1x64xf32, #tpu.memory_space<vmem>>, vector<1x64xf32>
    %c0_46 = arith.constant 0 : index
    %c0_47 = arith.constant 0 : index
    %134 = vector.load %arg12[%c0_46, %c0_47] : memref<1x64xf32, #tpu.memory_space<vmem>>, vector<1x64xf32>
    %cst_48 = arith.constant dense<0.000000e+00> : vector<8xf32>
    %135 = vector.multi_reduction <add>, %132, %cst_48 [1] : vector<8x64xf32> to vector<8xf32>
    %136 = vector.shape_cast %135 : vector<8xf32> to vector<8x1xf32>
    %cst_49 = arith.constant 6.400000e+01 : f32
    %137 = vector.broadcast %cst_49 : f32 to vector<8x1xf32>
    %138 = arith.divf %136, %137 : vector<8x1xf32>
    %139 = vector.broadcast %138 : vector<8x1xf32> to vector<8x64xf32>
    %140 = arith.subf %132, %139 : vector<8x64xf32>
    %141 = arith.mulf %140, %140 : vector<8x64xf32>
    %cst_50 = arith.constant dense<0.000000e+00> : vector<8xf32>
    %142 = vector.multi_reduction <add>, %141, %cst_50 [1] : vector<8x64xf32> to vector<8xf32>
    %143 = vector.shape_cast %142 : vector<8xf32> to vector<8x1xf32>
    %cst_51 = arith.constant 6.400000e+01 : f32
    %144 = vector.broadcast %cst_51 : f32 to vector<8x1xf32>
    %145 = arith.divf %143, %144 : vector<8x1xf32>
    %cst_52 = arith.constant 9.99999974E-6 : f32
    %146 = vector.broadcast %cst_52 : f32 to vector<8x1xf32>
    %147 = arith.addf %145, %146 : vector<8x1xf32>
    %148 = math.rsqrt %147 : vector<8x1xf32>
    %149 = vector.broadcast %148 : vector<8x1xf32> to vector<8x64xf32>
    %150 = arith.mulf %140, %149 : vector<8x64xf32>
    %151 = vector.broadcast %133 : vector<1x64xf32> to vector<8x64xf32>
    %152 = arith.mulf %150, %151 : vector<8x64xf32>
    %153 = vector.broadcast %134 : vector<1x64xf32> to vector<8x64xf32>
    %154 = arith.addf %152, %153 : vector<8x64xf32>
    %c0_53 = arith.constant 0 : index
    %c0_54 = arith.constant 0 : index
    %155 = vector.load %arg13[%c0_53, %c0_54] : memref<64x64xf32, #tpu.memory_space<vmem>>, vector<64x64xf32>
    %cst_55 = arith.constant dense<0.000000e+00> : vector<8x64xf32>
    %156 = tpu.matmul %154, %155, %cst_55 {dimension_numbers = #tpu.dot_dimension_numbers<[1], [0], [0], [1], [0, 0, 1, 1], [], []>} : vector<8x64xf32>, vector<64x64xf32>, vector<8x64xf32> -> vector<8x64xf32>
    %c0_56 = arith.constant 0 : index
    %c0_57 = arith.constant 0 : index
    %157 = vector.load %arg14[%c0_56, %c0_57] : memref<1x64xf32, #tpu.memory_space<vmem>>, vector<1x64xf32>
    %158 = vector.broadcast %157 : vector<1x64xf32> to vector<8x64xf32>
    %159 = arith.addf %156, %158 : vector<8x64xf32>
    %c0_58 = arith.constant 0 : index
    %c0_59 = arith.constant 0 : index
    %160 = vector.load %arg15[%c0_58, %c0_59] : memref<1x64xf32, #tpu.memory_space<vmem>>, vector<1x64xf32>
    %c0_60 = arith.constant 0 : index
    %c0_61 = arith.constant 0 : index
    %161 = vector.load %arg16[%c0_60, %c0_61] : memref<1x64xf32, #tpu.memory_space<vmem>>, vector<1x64xf32>
    %cst_62 = arith.constant dense<0.000000e+00> : vector<8xf32>
    %162 = vector.multi_reduction <add>, %159, %cst_62 [1] : vector<8x64xf32> to vector<8xf32>
    %163 = vector.shape_cast %162 : vector<8xf32> to vector<8x1xf32>
    %cst_63 = arith.constant 6.400000e+01 : f32
    %164 = vector.broadcast %cst_63 : f32 to vector<8x1xf32>
    %165 = arith.divf %163, %164 : vector<8x1xf32>
    %166 = vector.broadcast %165 : vector<8x1xf32> to vector<8x64xf32>
    %167 = arith.subf %159, %166 : vector<8x64xf32>
    %168 = arith.mulf %167, %167 : vector<8x64xf32>
    %cst_64 = arith.constant dense<0.000000e+00> : vector<8xf32>
    %169 = vector.multi_reduction <add>, %168, %cst_64 [1] : vector<8x64xf32> to vector<8xf32>
    %170 = vector.shape_cast %169 : vector<8xf32> to vector<8x1xf32>
    %cst_65 = arith.constant 6.400000e+01 : f32
    %171 = vector.broadcast %cst_65 : f32 to vector<8x1xf32>
    %172 = arith.divf %170, %171 : vector<8x1xf32>
    %cst_66 = arith.constant 9.99999974E-6 : f32
    %173 = vector.broadcast %cst_66 : f32 to vector<8x1xf32>
    %174 = arith.addf %172, %173 : vector<8x1xf32>
    %175 = math.rsqrt %174 : vector<8x1xf32>
    %176 = vector.broadcast %175 : vector<8x1xf32> to vector<8x64xf32>
    %177 = arith.mulf %167, %176 : vector<8x64xf32>
    %178 = vector.broadcast %160 : vector<1x64xf32> to vector<8x64xf32>
    %179 = arith.mulf %177, %178 : vector<8x64xf32>
    %180 = vector.broadcast %161 : vector<1x64xf32> to vector<8x64xf32>
    %181 = arith.addf %179, %180 : vector<8x64xf32>
    %cst_67 = arith.constant 0.000000e+00 : f32
    %182 = vector.broadcast %cst_67 : f32 to vector<8x64xf32>
    %183 = arith.cmpf oge, %181, %182 : vector<8x64xf32>
    %cst_68 = arith.constant 0.00999999977 : f32
    %184 = vector.broadcast %cst_68 : f32 to vector<8x64xf32>
    %185 = arith.mulf %184, %181 : vector<8x64xf32>
    %186 = arith.select %183, %181, %185 : vector<8x64xi1>, vector<8x64xf32>
    %c0_69 = arith.constant 0 : index
    %c0_70 = arith.constant 0 : index
    %187 = vector.load %arg17[%c0_69, %c0_70] : memref<64x32xf32, #tpu.memory_space<vmem>>, vector<64x32xf32>
    %cst_71 = arith.constant dense<0.000000e+00> : vector<8x32xf32>
    %188 = tpu.matmul %186, %187, %cst_71 {dimension_numbers = #tpu.dot_dimension_numbers<[1], [0], [0], [1], [0, 0, 1, 1], [], []>} : vector<8x64xf32>, vector<64x32xf32>, vector<8x32xf32> -> vector<8x32xf32>
    %c0_72 = arith.constant 0 : index
    %c0_73 = arith.constant 0 : index
    %189 = vector.load %arg18[%c0_72, %c0_73] : memref<1x32xf32, #tpu.memory_space<vmem>>, vector<1x32xf32>
    %190 = vector.broadcast %189 : vector<1x32xf32> to vector<8x32xf32>
    %191 = arith.addf %188, %190 : vector<8x32xf32>
    %192 = arith.addf %1, %191 : vector<8x32xf32>
    %c0_74 = arith.constant 0 : index
    %c0_75 = arith.constant 0 : index
    %193 = vector.load %arg19[%c0_74, %c0_75] : memref<1x32xf32, #tpu.memory_space<vmem>>, vector<1x32xf32>
    %c0_76 = arith.constant 0 : index
    %c0_77 = arith.constant 0 : index
    %194 = vector.load %arg20[%c0_76, %c0_77] : memref<1x32xf32, #tpu.memory_space<vmem>>, vector<1x32xf32>
    %cst_78 = arith.constant dense<0.000000e+00> : vector<8xf32>
    %195 = vector.multi_reduction <add>, %192, %cst_78 [1] : vector<8x32xf32> to vector<8xf32>
    %196 = vector.shape_cast %195 : vector<8xf32> to vector<8x1xf32>
    %cst_79 = arith.constant 3.200000e+01 : f32
    %197 = vector.broadcast %cst_79 : f32 to vector<8x1xf32>
    %198 = arith.divf %196, %197 : vector<8x1xf32>
    %199 = vector.broadcast %198 : vector<8x1xf32> to vector<8x32xf32>
    %200 = arith.subf %192, %199 : vector<8x32xf32>
    %201 = arith.mulf %200, %200 : vector<8x32xf32>
    %cst_80 = arith.constant dense<0.000000e+00> : vector<8xf32>
    %202 = vector.multi_reduction <add>, %201, %cst_80 [1] : vector<8x32xf32> to vector<8xf32>
    %203 = vector.shape_cast %202 : vector<8xf32> to vector<8x1xf32>
    %cst_81 = arith.constant 3.200000e+01 : f32
    %204 = vector.broadcast %cst_81 : f32 to vector<8x1xf32>
    %205 = arith.divf %203, %204 : vector<8x1xf32>
    %cst_82 = arith.constant 9.99999974E-6 : f32
    %206 = vector.broadcast %cst_82 : f32 to vector<8x1xf32>
    %207 = arith.addf %205, %206 : vector<8x1xf32>
    %208 = math.rsqrt %207 : vector<8x1xf32>
    %209 = vector.broadcast %208 : vector<8x1xf32> to vector<8x32xf32>
    %210 = arith.mulf %200, %209 : vector<8x32xf32>
    %211 = vector.broadcast %193 : vector<1x32xf32> to vector<8x32xf32>
    %212 = arith.mulf %210, %211 : vector<8x32xf32>
    %213 = vector.broadcast %194 : vector<1x32xf32> to vector<8x32xf32>
    %214 = arith.addf %212, %213 : vector<8x32xf32>
    %c0_83 = arith.constant 0 : index
    %c0_84 = arith.constant 0 : index
    %c0_85 = arith.constant 0 : index
    %215 = vector.load %arg21[%c0_83, %c0_84, %c0_85] : memref<1x8x32xf32, #tpu.memory_space<vmem>>, vector<1x8x32xf32>
    %216 = vector.shape_cast %215 : vector<1x8x32xf32> to vector<8x32xf32>
    %217 = vector.shape_cast %214 : vector<8x32xf32> to vector<1x8x32xf32>
    tpu.vector_store %arg21[%c0_83, %c0_84, %c0_85], %217 {strides = array<i32>} : memref<1x8x32xf32, #tpu.memory_space<vmem>>, vector<1x8x32xf32>,
    %218 = tpu.concatenate %3, %103 in 1 : vector<8x8x8xf32>, vector<8x4x8xf32> -> vector<8x12x8xf32>
    %c0_86 = arith.constant 0 : index
    %c0_87 = arith.constant 0 : index
    %219 = vector.load %arg9[%c0_86, %c0_87] : memref<8x108xbf16, #tpu.memory_space<vmem>>, vector<8x108xbf16>
    %c0_88 = arith.constant 0 : index
    %c0_89 = arith.constant 0 : index
    %220 = vector.load %arg10[%c0_88, %c0_89] : memref<8x1xf32, #tpu.memory_space<vmem>>, vector<8x1xf32>
    %cst_90 = arith.constant dense<0.000000e+00> : vector<12xf32>
    %221 = vector.multi_reduction <add>, %218, %cst_90 [0, 2] : vector<8x12x8xf32> to vector<12xf32>
    %222 = vector.shape_cast %221 : vector<12xf32> to vector<1x12x1xf32>
    %cst_91 = arith.constant 6.400000e+01 : f32
    %223 = vector.broadcast %cst_91 : f32 to vector<1x12x1xf32>
    %224 = arith.divf %222, %223 : vector<1x12x1xf32>
    %225 = vector.broadcast %224 : vector<1x12x1xf32> to vector<8x12x8xf32>
    %226 = arith.subf %218, %225 : vector<8x12x8xf32>
    %227 = arith.mulf %226, %226 : vector<8x12x8xf32>
    %cst_92 = arith.constant dense<0.000000e+00> : vector<12xf32>
    %228 = vector.multi_reduction <add>, %227, %cst_92 [0, 2] : vector<8x12x8xf32> to vector<12xf32>
    %229 = vector.shape_cast %228 : vector<12xf32> to vector<1x12x1xf32>
    %cst_93 = arith.constant 6.400000e+01 : f32
    %230 = vector.broadcast %cst_93 : f32 to vector<1x12x1xf32>
    %231 = arith.divf %229, %230 : vector<1x12x1xf32>
    %cst_94 = arith.constant 9.99999974E-6 : f32
    %232 = vector.broadcast %cst_94 : f32 to vector<1x12x1xf32>
    %233 = arith.addf %231, %232 : vector<1x12x1xf32>
    %234 = math.rsqrt %233 : vector<1x12x1xf32>
    %235 = vector.broadcast %234 : vector<1x12x1xf32> to vector<8x12x8xf32>
    %236 = arith.mulf %226, %235 : vector<8x12x8xf32>
    %237 = arith.truncf %236 : vector<8x12x8xf32> to vector<8x12x8xbf16>
    %cst_95 = arith.constant 0.000000e+00 : bf16
    %238 = vector.broadcast %cst_95 : bf16 to vector<8x12x1xbf16>
    %239 = vector.extract_strided_slice %237 {offsets = [0, 0, 0], sizes = [8, 12, 7], strides = [1, 1, 1]} : vector<8x12x8xbf16> to vector<8x12x7xbf16>
    %240 = tpu.concatenate %238, %239 in 2 : vector<8x12x1xbf16>, vector<8x12x7xbf16> -> vector<8x12x8xbf16>
    %241 = vector.extract_strided_slice %237 {offsets = [0, 0, 1], sizes = [8, 12, 7], strides = [1, 1, 1]} : vector<8x12x8xbf16> to vector<8x12x7xbf16>
    %242 = tpu.concatenate %241, %238 in 2 : vector<8x12x7xbf16>, vector<8x12x1xbf16> -> vector<8x12x8xbf16>
    %243 = tpu.concatenate %240, %237, %242 in 1 : vector<8x12x8xbf16>, vector<8x12x8xbf16>, vector<8x12x8xbf16> -> vector<8x36x8xbf16>
    %cst_96 = arith.constant 0.000000e+00 : bf16
    %244 = vector.broadcast %cst_96 : bf16 to vector<1x36x8xbf16>
    %245 = vector.extract_strided_slice %243 {offsets = [0, 0, 0], sizes = [7, 36, 8], strides = [1, 1, 1]} : vector<8x36x8xbf16> to vector<7x36x8xbf16>
    %246 = tpu.concatenate %244, %245 in 0 : vector<1x36x8xbf16>, vector<7x36x8xbf16> -> vector<8x36x8xbf16>
    %247 = vector.extract_strided_slice %243 {offsets = [1, 0, 0], sizes = [7, 36, 8], strides = [1, 1, 1]} : vector<8x36x8xbf16> to vector<7x36x8xbf16>
    %248 = tpu.concatenate %247, %244 in 0 : vector<7x36x8xbf16>, vector<1x36x8xbf16> -> vector<8x36x8xbf16>
    %249 = tpu.concatenate %246, %243, %248 in 1 : vector<8x36x8xbf16>, vector<8x36x8xbf16>, vector<8x36x8xbf16> -> vector<8x108x8xbf16>
    %250 = vector.shape_cast %219 : vector<8x108xbf16> to vector<1x8x108xbf16>
    %251 = vector.broadcast %250 : vector<1x8x108xbf16> to vector<8x8x108xbf16>
    "tpu.trace_start"() <{level = 10 : i32, message = "ick,ikj->icj"}> : () -> ()
    %cst_97 = arith.constant dense<0.000000e+00> : vector<8x8x8xf32>
    %252 = tpu.matmul %251, %249, %cst_97 {dimension_numbers = #tpu.dot_dimension_numbers<[2], [1], [1], [2], [0, 0, 0, 1, 1, 2], [0], [0]>} : vector<8x8x108xbf16>, vector<8x108x8xbf16>, vector<8x8x8xf32> -> vector<8x8x8xf32>
    "tpu.trace_stop"() : () -> ()
    %253 = vector.shape_cast %220 : vector<8x1xf32> to vector<1x8x1xf32>
    %254 = vector.broadcast %253 : vector<1x8x1xf32> to vector<8x8x8xf32>
    %255 = arith.addf %252, %254 : vector<8x8x8xf32>
    %cst_98 = arith.constant 0.000000e+00 : f32
    %256 = vector.broadcast %cst_98 : f32 to vector<8x8x8xf32>
    %257 = arith.cmpf oge, %255, %256 : vector<8x8x8xf32>
    %cst_99 = arith.constant 0.00999999977 : f32
    %258 = vector.broadcast %cst_99 : f32 to vector<8x8x8xf32>
    %259 = arith.mulf %258, %255 : vector<8x8x8xf32>
    %260 = arith.select %257, %255, %259 : vector<8x8x8xi1>, vector<8x8x8xf32>
    %c0_100 = arith.constant 0 : index
    %c0_101 = arith.constant 0 : index
    %c0_102 = arith.constant 0 : index
    %c0_103 = arith.constant 0 : index
    %261 = vector.load %arg22[%c0_100, %c0_101, %c0_102, %c0_103] : memref<1x8x8x8xf32, #tpu.memory_space<vmem>>, vector<1x8x8x8xf32>
    %262 = vector.shape_cast %261 : vector<1x8x8x8xf32> to vector<8x8x8xf32>
    %263 = vector.shape_cast %260 : vector<8x8x8xf32> to vector<1x8x8x8xf32>
    tpu.vector_store %arg22[%c0_100, %c0_101, %c0_102, %c0_103], %263 {strides = array<i32>} : memref<1x8x8x8xf32, #tpu.memory_space<vmem>>, vector<1x8x8x8xf32>,
    return
  }
  func.func @transform_0(%arg0: i32) -> (i32, i32, i32) {
    %c0_i32 = arith.constant 0 : i32
    %c0_i32_0 = arith.constant 0 : i32
    %c0_i32_1 = arith.constant 0 : i32
    return %arg0, %c0_i32, %c0_i32_0 : i32, i32, i32
  }
  func.func @transform_1(%arg0: i32) -> (i32, i32, i32, i32) {
    %c0_i32 = arith.constant 0 : i32
    %c0_i32_0 = arith.constant 0 : i32
    %c0_i32_1 = arith.constant 0 : i32
    %c0_i32_2 = arith.constant 0 : i32
    return %arg0, %c0_i32, %c0_i32_0, %c0_i32_1 : i32, i32, i32, i32
  }
  func.func @transform_2(%arg0: i32) -> (i32, i32, i32) {
    %c0_i32 = arith.constant 0 : i32
    %c0_i32_0 = arith.constant 0 : i32
    %c0_i32_1 = arith.constant 0 : i32
    return %arg0, %c0_i32, %c0_i32_0 : i32, i32, i32
  }
  func.func @transform_3(%arg0: i32) -> (i32, i32, i32) {
    %c0_i32 = arith.constant 0 : i32
    %c0_i32_0 = arith.constant 0 : i32
    %c0_i32_1 = arith.constant 0 : i32
    return %arg0, %c0_i32, %c0_i32_0 : i32, i32, i32
  }
  func.func @transform_4(%arg0: i32) -> (i32, i32) {
    %c0_i32 = arith.constant 0 : i32
    %c0_i32_0 = arith.constant 0 : i32
    %c0_i32_1 = arith.constant 0 : i32
    return %c0_i32, %c0_i32_0 : i32, i32
  }
  func.func @transform_5(%arg0: i32) -> (i32, i32) {
    %c0_i32 = arith.constant 0 : i32
    %c0_i32_0 = arith.constant 0 : i32
    %c0_i32_1 = arith.constant 0 : i32
    return %c0_i32, %c0_i32_0 : i32, i32
  }
  func.func @transform_6(%arg0: i32) -> (i32, i32) {
    %c0_i32 = arith.constant 0 : i32
    %c0_i32_0 = arith.constant 0 : i32
    %c0_i32_1 = arith.constant 0 : i32
    return %c0_i32, %c0_i32_0 : i32, i32
  }
  func.func @transform_7(%arg0: i32) -> (i32, i32) {
    %c0_i32 = arith.constant 0 : i32
    %c0_i32_0 = arith.constant 0 : i32
    %c0_i32_1 = arith.constant 0 : i32
    return %c0_i32, %c0_i32_0 : i32, i32
  }
  func.func @transform_8(%arg0: i32) -> (i32, i32) {
    %c0_i32 = arith.constant 0 : i32
    %c0_i32_0 = arith.constant 0 : i32
    %c0_i32_1 = arith.constant 0 : i32
    return %c0_i32, %c0_i32_0 : i32, i32
  }
  func.func @transform_9(%arg0: i32) -> (i32, i32) {
    %c0_i32 = arith.constant 0 : i32
    %c0_i32_0 = arith.constant 0 : i32
    %c0_i32_1 = arith.constant 0 : i32
    return %c0_i32, %c0_i32_0 : i32, i32
  }
  func.func @transform_10(%arg0: i32) -> (i32, i32) {
    %c0_i32 = arith.constant 0 : i32
    %c0_i32_0 = arith.constant 0 : i32
    %c0_i32_1 = arith.constant 0 : i32
    return %c0_i32, %c0_i32_0 : i32, i32
  }
  func.func @transform_11(%arg0: i32) -> (i32, i32) {
    %c0_i32 = arith.constant 0 : i32
    %c0_i32_0 = arith.constant 0 : i32
    %c0_i32_1 = arith.constant 0 : i32
    return %c0_i32, %c0_i32_0 : i32, i32
  }
  func.func @transform_12(%arg0: i32) -> (i32, i32) {
    %c0_i32 = arith.constant 0 : i32
    %c0_i32_0 = arith.constant 0 : i32
    %c0_i32_1 = arith.constant 0 : i32
    return %c0_i32, %c0_i32_0 : i32, i32
  }
  func.func @transform_13(%arg0: i32) -> (i32, i32) {
    %c0_i32 = arith.constant 0 : i32
    %c0_i32_0 = arith.constant 0 : i32
    %c0_i32_1 = arith.constant 0 : i32
    return %c0_i32, %c0_i32_0 : i32, i32
  }
  func.func @transform_14(%arg0: i32) -> (i32, i32) {
    %c0_i32 = arith.constant 0 : i32
    %c0_i32_0 = arith.constant 0 : i32
    %c0_i32_1 = arith.constant 0 : i32
    return %c0_i32, %c0_i32_0 : i32, i32
  }
  func.func @transform_15(%arg0: i32) -> (i32, i32) {
    %c0_i32 = arith.constant 0 : i32
    %c0_i32_0 = arith.constant 0 : i32
    %c0_i32_1 = arith.constant 0 : i32
    return %c0_i32, %c0_i32_0 : i32, i32
  }
  func.func @transform_16(%arg0: i32) -> (i32, i32) {
    %c0_i32 = arith.constant 0 : i32
    %c0_i32_0 = arith.constant 0 : i32
    %c0_i32_1 = arith.constant 0 : i32
    return %c0_i32, %c0_i32_0 : i32, i32
  }
  func.func @transform_17(%arg0: i32) -> (i32, i32) {
    %c0_i32 = arith.constant 0 : i32
    %c0_i32_0 = arith.constant 0 : i32
    %c0_i32_1 = arith.constant 0 : i32
    return %c0_i32, %c0_i32_0 : i32, i32
  }
  func.func @transform_18(%arg0: i32) -> (i32, i32) {
    %c0_i32 = arith.constant 0 : i32
    %c0_i32_0 = arith.constant 0 : i32
    %c0_i32_1 = arith.constant 0 : i32
    return %c0_i32, %c0_i32_0 : i32, i32
  }
  func.func @transform_19(%arg0: i32) -> (i32, i32) {
    %c0_i32 = arith.constant 0 : i32
    %c0_i32_0 = arith.constant 0 : i32
    %c0_i32_1 = arith.constant 0 : i32
    return %c0_i32, %c0_i32_0 : i32, i32
  }
  func.func @transform_20(%arg0: i32) -> (i32, i32, i32) {
    %c0_i32 = arith.constant 0 : i32
    %c0_i32_0 = arith.constant 0 : i32
    %c0_i32_1 = arith.constant 0 : i32
    return %arg0, %c0_i32, %c0_i32_0 : i32, i32, i32
  }
  func.func @transform_21(%arg0: i32) -> (i32, i32, i32, i32) {
    %c0_i32 = arith.constant 0 : i32
    %c0_i32_0 = arith.constant 0 : i32
    %c0_i32_1 = arith.constant 0 : i32
    %c0_i32_2 = arith.constant 0 : i32
    return %arg0, %c0_i32, %c0_i32_0, %c0_i32_1 : i32, i32, i32, i32
  }
}

</mosaic_0001>

<llo_original>
// kernel: tpu_custom_call.1
$region0: #{tpu_custom_call.1}
  #allocation0 [shape = 'u32[]', space=smem, size = 0x4, offset = 0x4, fixed_abs, tag = 'smem constant byte address 0x4 - core index']
  #allocation1 [shape = 'u32[72,128]{1,0:T(1,128)}', space=vmem, size = 0x9000, scoped, tag = 'internal scratch']
  %s0 = inlined_call_operand.hbm [shape: f32[2,8,32], index: 0, kind: input, shape index: {}]
  %s1 = inlined_call_operand.hbm [shape: f32[2,8,8,8], index: 1, kind: input, shape index: {}]
  %s2 = inlined_call_operand.vmem [shape: f32[2,8,1], index: 2, kind: input, shape index: {}]
  %s3 = inlined_call_operand.vmem [shape: f32[2,1,8], index: 3, kind: input, shape index: {}]
  %s4 = inlined_call_operand.vmem [shape: f32[32,96], index: 4, kind: input, shape index: {}]
  %s5 = inlined_call_operand.vmem [shape: bf16[4,8], index: 5, kind: input, shape index: {}]
  %s6 = inlined_call_operand.vmem [shape: bf16[4,72], index: 6, kind: input, shape index: {}]
  %s7 = inlined_call_operand.vmem [shape: f32[4,1], index: 7, kind: input, shape index: {}]
  %s8 = inlined_call_operand.vmem [shape: bf16[8,108], index: 8, kind: input, shape index: {}]
  %s9 = inlined_call_operand.vmem [shape: f32[8,1], index: 9, kind: input, shape index: {}]
  %s10 = inlined_call_operand.vmem [shape: f32[1,64], index: 10, kind: input, shape index: {}]
  %s11 = inlined_call_operand.vmem [shape: f32[1,64], index: 11, kind: input, shape index: {}]
  %s12 = inlined_call_operand.vmem [shape: f32[64,64], index: 12, kind: input, shape index: {}]
  %s13 = inlined_call_operand.vmem [shape: f32[1,64], index: 13, kind: input, shape index: {}]
  %s14 = inlined_call_operand.vmem [shape: f32[1,64], index: 14, kind: input, shape index: {}]
  %s15 = inlined_call_operand.vmem [shape: f32[1,64], index: 15, kind: input, shape index: {}]
  %s16 = inlined_call_operand.vmem [shape: f32[64,32], index: 16, kind: input, shape index: {}]
  %s17 = inlined_call_operand.hbm [shape: f32[1,32], index: 17, kind: input, shape index: {}]
  %s18 = inlined_call_operand.vmem [shape: f32[1,32], index: 18, kind: input, shape index: {}]
  %s19 = inlined_call_operand.vmem [shape: f32[1,32], index: 19, kind: input, shape index: {}]
  %s20 = inlined_call_operand.hbm [shape: f32[2,8,32], index: 20, kind: output, shape index: {0}]
  %s21 = inlined_call_operand.hbm [shape: f32[2,8,8,8], index: 21, kind: output, shape index: {1}]
  %22 = xla_tuple %s20, %s21
  %s23 = sld [smem:[#allocation0]]
  $region133: #{tpu_custom_call.1} parent=0
    _
  %s25 = ssub.s32 1, %s23
  %s26 = scalar_select 0, %s25, %s23
  $region1: #{tpu_custom_call.1} parent=0
    #allocation2 [shape = 'u8[8192]{0}', space=vmem, size = 0x2000, scoped, tag = 'input window, operand 0']
    #allocation3 [shape = 's32[2]{0}', space=sflag, size = 0x8, scoped, tag = 'scoped memory for tpu_custom_call.1']
    #allocation4 [shape = 's32[2]{0}', space=sflag, size = 0x8, scoped, tag = 'scoped memory for tpu_custom_call.1']
    #allocation5 [shape = 'u8[65536]{0}', space=vmem, size = 0x10000, scoped, tag = 'input window, operand 1']
    #allocation6 [shape = 's32[2]{0}', space=sflag, size = 0x8, scoped, tag = 'scoped memory for tpu_custom_call.1']
    #allocation7 [shape = 'u8[512]{0}', space=vmem, size = 0x400, scoped, tag = 'input window, operand 17, single buffered']
    #allocation8 [shape = 'u8[8192]{0}', space=vmem, size = 0x2000, scoped, tag = 'output window, operand 0']
    #allocation9 [shape = 'u8[65536]{0}', space=vmem, size = 0x10000, scoped, tag = 'output window, operand 1']
    #allocation10 [shape = 's32[2]{0}', space=sflag, size = 0x8, scoped, tag = 'scoped memory for tpu_custom_call.1']
    %27 = vsyncpa [#allocation3], 0
    %s28 = scalar_lea.sflag [#allocation3], 1
    %29 = vsyncpa %s28, 0
    %30 = vsyncpa [#allocation6], 0
    %s31 = scalar_lea.sflag [#allocation6], 1
    %32 = vsyncpa %s31, 0
    %33 = vsyncpa [#allocation4], 0
    %s34 = scalar_lea.sflag [#allocation4], 1
    %35 = vsyncpa %s34, 0
    %36 = vsyncpa [#allocation10], 0
    %s37 = scalar_lea.sflag [#allocation10], 1
    %38 = vsyncpa %s37, 0
    loop: start=0, step=1, limit=4
    $region2: #{tpu_custom_call.1} parent=1 // loop_pre_header
      _
    $region3: #{tpu_custom_call.1} parent=1 // loop_header
      %s40 = sphi 0, %s44
      %p41 = scmp.ge.s32.totalorder %s40, 4
      %s50 = sphi 0, %s52
      %s53 = sphi 0, %s50
      %s54 = sphi 0, %s53
      %s70 = sphi 0, %s54
      %s76 = sphi 0, %s78
      %s79 = sphi 0, %s76
      %s80 = sphi 0, %s79
      %s96 = sphi 0, %s80
      %s102 = sphi 0, %s104
      %s105 = sphi 0, %s102
      %s106 = sphi 0, %s105
      %s122 = sphi 0, %s106
      %s128 = sphi 0, %s130
      %s131 = sphi 0, %s128
      %s132 = sphi 0, %s131
      %s148 = sphi 0, %s132
      %s152 = sphi 0, %s152
      %s154 = sphi 0, %s152
      %s155 = sphi 0, %s154
      %s169 = sphi 0, %s155
      %s173 = sphi 0, %s173
      %s175 = sphi 0, %s173
      %s176 = sphi 0, %s175
      %s190 = sphi 0, %s176
      %s194 = sphi 0, %s194
      %s196 = sphi 0, %s194
      %s197 = sphi 0, %s196
      %s211 = sphi 0, %s197
      %s215 = sphi 0, %s215
      %s217 = sphi 0, %s215
      %s218 = sphi 0, %s217
      %s232 = sphi 0, %s218
      %s236 = sphi 0, %s236
      %s238 = sphi 0, %s236
      %s239 = sphi 0, %s238
      %s253 = sphi 0, %s239
      %s257 = sphi 0, %s257
      %s259 = sphi 0, %s257
      %s260 = sphi 0, %s259
      %s274 = sphi 0, %s260
      %s278 = sphi 0, %s278
      %s280 = sphi 0, %s278
      %s281 = sphi 0, %s280
      %s295 = sphi 0, %s281
      %s299 = sphi 0, %s299
      %s301 = sphi 0, %s299
      %s302 = sphi 0, %s301
      %s316 = sphi 0, %s302
      %s320 = sphi 0, %s320
      %s322 = sphi 0, %s320
      %s323 = sphi 0, %s322
      %s337 = sphi 0, %s323
      %s341 = sphi 0, %s341
      %s343 = sphi 0, %s341
      %s344 = sphi 0, %s343
      %s358 = sphi 0, %s344
      %s362 = sphi 0, %s362
      %s364 = sphi 0, %s362
      %s365 = sphi 0, %s364
      %s379 = sphi 0, %s365
      %s383 = sphi 0, %s383
      %s385 = sphi 0, %s383
      %s386 = sphi 0, %s385
      %s400 = sphi 0, %s386
      %s404 = sphi 0, %s404
      %s406 = sphi 0, %s404
      %s407 = sphi 0, %s406
      %s421 = sphi 0, %s407
      %s425 = sphi 0, %s425
      %s427 = sphi 0, %s425
      %s428 = sphi 0, %s427
      %s442 = sphi 0, %s428
      %s446 = sphi 0, %s446
      %s448 = sphi 0, %s446
      %s449 = sphi 0, %s448
      %s463 = sphi 0, %s449
      %s467 = sphi 0, %s467
      %s469 = sphi 0, %s467
      %s470 = sphi 0, %s469
      %s484 = sphi 0, %s470
      %s490 = sphi 0, %s492
      %s493 = sphi 0, %s490
      %s494 = sphi 0, %s493
      %s510 = sphi 0, %s494
      %s516 = sphi 0, %s518
      %s519 = sphi 0, %s516
      %s520 = sphi 0, %s519
      %s536 = sphi 0, %s520
    $region4: #{tpu_custom_call.1} parent=1 // loop_header_branch
      %43 = sbr.rel (%p41) target = $region8
    $region5: #{tpu_custom_call.1} parent=1 // loop_body
      %s45 = ssub.s32 %s40, 1
      %s46 = ssub.s32 %s40, 2
      %s47 = sadd.s32 %s40, 1
      %s48 = ssub.s32 %s40, %s47
      %p49 = scmp.eq.s32.totalorder %s48, 0
      %s51 = sadd.s32 %s50, 1
      %s52 = scalar_select %p49, %s50, %s51
      %p55 = pneg %p49
      %p56 = scmp.eq.s32.totalorder %s40, 1
      %p57 = por %p55, %p56
      %p58 = scmp.ne.s32.totalorder %s50, %s53
      %p59 = scmp.eq.s32.totalorder %s40, 0
      %p60 = por %p58, %p59
      %p61 = scmp.ne.s32.totalorder %s50, %s53
      %p62 = scmp.eq.s32.totalorder %s45, 1
      %p63 = por %p61, %p62
      %p64 = scmp.ne.s32.totalorder %s53, %s54
      %p65 = scmp.eq.s32.totalorder %s45, 0
      %p66 = por %p64, %p65
      %p67 = scmp.ne.s32.totalorder %s53, %s54
      %p68 = scmp.eq.s32.totalorder %s46, 1
      %p69 = por %p67, %p68
      %p71 = scmp.ne.s32.totalorder %s54, %s70
      %p72 = scmp.eq.s32.totalorder %s46, 0
      %p73 = por %p71, %p72
      %s74 = ssub.s32 %s40, %s47
      %p75 = scmp.eq.s32.totalorder %s74, 0
      %s77 = sadd.s32 %s76, 1
      %s78 = scalar_select %p75, %s76, %s77
      %p81 = pneg %p75
      %p82 = scmp.eq.s32.totalorder %s40, 1
      %p83 = por %p81, %p82
      %p84 = scmp.ne.s32.totalorder %s76, %s79
      %p85 = scmp.eq.s32.totalorder %s40, 0
      %p86 = por %p84, %p85
      %p87 = scmp.ne.s32.totalorder %s76, %s79
      %p88 = scmp.eq.s32.totalorder %s45, 1
      %p89 = por %p87, %p88
      %p90 = scmp.ne.s32.totalorder %s79, %s80
      %p91 = scmp.eq.s32.totalorder %s45, 0
      %p92 = por %p90, %p91
      %p93 = scmp.ne.s32.totalorder %s79, %s80
      %p94 = scmp.eq.s32.totalorder %s46, 1
      %p95 = por %p93, %p94
      %p97 = scmp.ne.s32.totalorder %s80, %s96
      %p98 = scmp.eq.s32.totalorder %s46, 0
      %p99 = por %p97, %p98
      %s100 = ssub.s32 %s40, %s47
      %p101 = scmp.eq.s32.totalorder %s100, 0
      %s103 = sadd.s32 %s102, 1
      %s104 = scalar_select %p101, %s102, %s103
      %p107 = pneg %p101
      %p108 = scmp.eq.s32.totalorder %s40, 1
      %p109 = por %p107, %p108
      %p110 = scmp.ne.s32.totalorder %s102, %s105
      %p111 = scmp.eq.s32.totalorder %s40, 0
      %p112 = por %p110, %p111
      %p113 = scmp.ne.s32.totalorder %s102, %s105
      %p114 = scmp.eq.s32.totalorder %s45, 1
      %p115 = por %p113, %p114
      %p116 = scmp.ne.s32.totalorder %s105, %s106
      %p117 = scmp.eq.s32.totalorder %s45, 0
      %p118 = por %p116, %p117
      %p119 = scmp.ne.s32.totalorder %s105, %s106
      %p120 = scmp.eq.s32.totalorder %s46, 1
      %p121 = por %p119, %p120
      %p123 = scmp.ne.s32.totalorder %s106, %s122
      %p124 = scmp.eq.s32.totalorder %s46, 0
      %p125 = por %p123, %p124
      %s126 = ssub.s32 %s40, %s47
      %p127 = scmp.eq.s32.totalorder %s126, 0
      %s129 = sadd.s32 %s128, 1
      %s130 = scalar_select %p127, %s128, %s129
      %p133 = pneg %p127
      %p134 = scmp.eq.s32.totalorder %s40, 1
      %p135 = por %p133, %p134
      %p136 = scmp.ne.s32.totalorder %s128, %s131
      %p137 = scmp.eq.s32.totalorder %s40, 0
      %p138 = por %p136, %p137
      %p139 = scmp.ne.s32.totalorder %s128, %s131
      %p140 = scmp.eq.s32.totalorder %s45, 1
      %p141 = por %p139, %p140
      %p142 = scmp.ne.s32.totalorder %s131, %s132
      %p143 = scmp.eq.s32.totalorder %s45, 0
      %p144 = por %p142, %p143
      %p145 = scmp.ne.s32.totalorder %s131, %s132
      %p146 = scmp.eq.s32.totalorder %s46, 1
      %p147 = por %p145, %p146
      %p149 = scmp.ne.s32.totalorder %s132, %s148
      %p150 = scmp.eq.s32.totalorder %s46, 0
      %p151 = por %p149, %p150
      %s153 = sadd.s32 %s152, 1
      %p156 = scmp.eq.s32.totalorder %s40, 1
      %p157 = scmp.ne.s32.totalorder %s152, %s154
      %p158 = scmp.eq.s32.totalorder %s40, 0
      %p159 = por %p157, %p158
      %p160 = scmp.ne.s32.totalorder %s152, %s154
      %p161 = scmp.eq.s32.totalorder %s45, 1
      %p162 = por %p160, %p161
      %p163 = scmp.ne.s32.totalorder %s154, %s155
      %p164 = scmp.eq.s32.totalorder %s45, 0
      %p165 = por %p163, %p164
      %p166 = scmp.ne.s32.totalorder %s154, %s155
      %p167 = scmp.eq.s32.totalorder %s46, 1
      %p168 = por %p166, %p167
      %p170 = scmp.ne.s32.totalorder %s155, %s169
      %p171 = scmp.eq.s32.totalorder %s46, 0
      %p172 = por %p170, %p171
      %s174 = sadd.s32 %s173, 1
      %p177 = scmp.eq.s32.totalorder %s40, 1
      %p178 = scmp.ne.s32.totalorder %s173, %s175
      %p179 = scmp.eq.s32.totalorder %s40, 0
      %p180 = por %p178, %p179
      %p181 = scmp.ne.s32.totalorder %s173, %s175
      %p182 = scmp.eq.s32.totalorder %s45, 1
      %p183 = por %p181, %p182
      %p184 = scmp.ne.s32.totalorder %s175, %s176
      %p185 = scmp.eq.s32.totalorder %s45, 0
      %p186 = por %p184, %p185
      %p187 = scmp.ne.s32.totalorder %s175, %s176
      %p188 = scmp.eq.s32.totalorder %s46, 1
      %p189 = por %p187, %p188
      %p191 = scmp.ne.s32.totalorder %s176, %s190
      %p192 = scmp.eq.s32.totalorder %s46, 0
      %p193 = por %p191, %p192
      %s195 = sadd.s32 %s194, 1
      %p198 = scmp.eq.s32.totalorder %s40, 1
      %p199 = scmp.ne.s32.totalorder %s194, %s196
      %p200 = scmp.eq.s32.totalorder %s40, 0
      %p201 = por %p199, %p200
      %p202 = scmp.ne.s32.totalorder %s194, %s196
      %p203 = scmp.eq.s32.totalorder %s45, 1
      %p204 = por %p202, %p203
      %p205 = scmp.ne.s32.totalorder %s196, %s197
      %p206 = scmp.eq.s32.totalorder %s45, 0
      %p207 = por %p205, %p206
      %p208 = scmp.ne.s32.totalorder %s196, %s197
      %p209 = scmp.eq.s32.totalorder %s46, 1
      %p210 = por %p208, %p209
      %p212 = scmp.ne.s32.totalorder %s197, %s211
      %p213 = scmp.eq.s32.totalorder %s46, 0
      %p214 = por %p212, %p213
      %s216 = sadd.s32 %s215, 1
      %p219 = scmp.eq.s32.totalorder %s40, 1
      %p220 = scmp.ne.s32.totalorder %s215, %s217
      %p221 = scmp.eq.s32.totalorder %s40, 0
      %p222 = por %p220, %p221
      %p223 = scmp.ne.s32.totalorder %s215, %s217
      %p224 = scmp.eq.s32.totalorder %s45, 1
      %p225 = por %p223, %p224
      %p226 = scmp.ne.s32.totalorder %s217, %s218
      %p227 = scmp.eq.s32.totalorder %s45, 0
      %p228 = por %p226, %p227
      %p229 = scmp.ne.s32.totalorder %s217, %s218
      %p230 = scmp.eq.s32.totalorder %s46, 1
      %p231 = por %p229, %p230
      %p233 = scmp.ne.s32.totalorder %s218, %s232
      %p234 = scmp.eq.s32.totalorder %s46, 0
      %p235 = por %p233, %p234
      %s237 = sadd.s32 %s236, 1
      %p240 = scmp.eq.s32.totalorder %s40, 1
      %p241 = scmp.ne.s32.totalorder %s236, %s238
      %p242 = scmp.eq.s32.totalorder %s40, 0
      %p243 = por %p241, %p242
      %p244 = scmp.ne.s32.totalorder %s236, %s238
      %p245 = scmp.eq.s32.totalorder %s45, 1
      %p246 = por %p244, %p245
      %p247 = scmp.ne.s32.totalorder %s238, %s239
      %p248 = scmp.eq.s32.totalorder %s45, 0
      %p249 = por %p247, %p248
      %p250 = scmp.ne.s32.totalorder %s238, %s239
      %p251 = scmp.eq.s32.totalorder %s46, 1
      %p252 = por %p250, %p251
      %p254 = scmp.ne.s32.totalorder %s239, %s253
      %p255 = scmp.eq.s32.totalorder %s46, 0
      %p256 = por %p254, %p255
      %s258 = sadd.s32 %s257, 1
      %p261 = scmp.eq.s32.totalorder %s40, 1
      %p262 = scmp.ne.s32.totalorder %s257, %s259
      %p263 = scmp.eq.s32.totalorder %s40, 0
      %p264 = por %p262, %p263
      %p265 = scmp.ne.s32.totalorder %s257, %s259
      %p266 = scmp.eq.s32.totalorder %s45, 1
      %p267 = por %p265, %p266
      %p268 = scmp.ne.s32.totalorder %s259, %s260
      %p269 = scmp.eq.s32.totalorder %s45, 0
      %p270 = por %p268, %p269
      %p271 = scmp.ne.s32.totalorder %s259, %s260
      %p272 = scmp.eq.s32.totalorder %s46, 1
      %p273 = por %p271, %p272
      %p275 = scmp.ne.s32.totalorder %s260, %s274
      %p276 = scmp.eq.s32.totalorder %s46, 0
      %p277 = por %p275, %p276
      %s279 = sadd.s32 %s278, 1
      %p282 = scmp.eq.s32.totalorder %s40, 1
      %p283 = scmp.ne.s32.totalorder %s278, %s280
      %p284 = scmp.eq.s32.totalorder %s40, 0
      %p285 = por %p283, %p284
      %p286 = scmp.ne.s32.totalorder %s278, %s280
      %p287 = scmp.eq.s32.totalorder %s45, 1
      %p288 = por %p286, %p287
      %p289 = scmp.ne.s32.totalorder %s280, %s281
      %p290 = scmp.eq.s32.totalorder %s45, 0
      %p291 = por %p289, %p290
      %p292 = scmp.ne.s32.totalorder %s280, %s281
      %p293 = scmp.eq.s32.totalorder %s46, 1
      %p294 = por %p292, %p293
      %p296 = scmp.ne.s32.totalorder %s281, %s295
      %p297 = scmp.eq.s32.totalorder %s46, 0
      %p298 = por %p296, %p297
      %s300 = sadd.s32 %s299, 1
      %p303 = scmp.eq.s32.totalorder %s40, 1
      %p304 = scmp.ne.s32.totalorder %s299, %s301
      %p305 = scmp.eq.s32.totalorder %s40, 0
      %p306 = por %p304, %p305
      %p307 = scmp.ne.s32.totalorder %s299, %s301
      %p308 = scmp.eq.s32.totalorder %s45, 1
      %p309 = por %p307, %p308
      %p310 = scmp.ne.s32.totalorder %s301, %s302
      %p311 = scmp.eq.s32.totalorder %s45, 0
      %p312 = por %p310, %p311
      %p313 = scmp.ne.s32.totalorder %s301, %s302
      %p314 = scmp.eq.s32.totalorder %s46, 1
      %p315 = por %p313, %p314
      %p317 = scmp.ne.s32.totalorder %s302, %s316
      %p318 = scmp.eq.s32.totalorder %s46, 0
      %p319 = por %p317, %p318
      %s321 = sadd.s32 %s320, 1
      %p324 = scmp.eq.s32.totalorder %s40, 1
      %p325 = scmp.ne.s32.totalorder %s320, %s322
      %p326 = scmp.eq.s32.totalorder %s40, 0
      %p327 = por %p325, %p326
      %p328 = scmp.ne.s32.totalorder %s320, %s322
      %p329 = scmp.eq.s32.totalorder %s45, 1
      %p330 = por %p328, %p329
      %p331 = scmp.ne.s32.totalorder %s322, %s323
      %p332 = scmp.eq.s32.totalorder %s45, 0
      %p333 = por %p331, %p332
      %p334 = scmp.ne.s32.totalorder %s322, %s323
      %p335 = scmp.eq.s32.totalorder %s46, 1
      %p336 = por %p334, %p335
      %p338 = scmp.ne.s32.totalorder %s323, %s337
      %p339 = scmp.eq.s32.totalorder %s46, 0
      %p340 = por %p338, %p339
      %s342 = sadd.s32 %s341, 1
      %p345 = scmp.eq.s32.totalorder %s40, 1
      %p346 = scmp.ne.s32.totalorder %s341, %s343
      %p347 = scmp.eq.s32.totalorder %s40, 0
      %p348 = por %p346, %p347
      %p349 = scmp.ne.s32.totalorder %s341, %s343
      %p350 = scmp.eq.s32.totalorder %s45, 1
      %p351 = por %p349, %p350
      %p352 = scmp.ne.s32.totalorder %s343, %s344
      %p353 = scmp.eq.s32.totalorder %s45, 0
      %p354 = por %p352, %p353
      %p355 = scmp.ne.s32.totalorder %s343, %s344
      %p356 = scmp.eq.s32.totalorder %s46, 1
      %p357 = por %p355, %p356
      %p359 = scmp.ne.s32.totalorder %s344, %s358
      %p360 = scmp.eq.s32.totalorder %s46, 0
      %p361 = por %p359, %p360
      %s363 = sadd.s32 %s362, 1
      %p366 = scmp.eq.s32.totalorder %s40, 1
      %p367 = scmp.ne.s32.totalorder %s362, %s364
      %p368 = scmp.eq.s32.totalorder %s40, 0
      %p369 = por %p367, %p368
      %p370 = scmp.ne.s32.totalorder %s362, %s364
      %p371 = scmp.eq.s32.totalorder %s45, 1
      %p372 = por %p370, %p371
      %p373 = scmp.ne.s32.totalorder %s364, %s365
      %p374 = scmp.eq.s32.totalorder %s45, 0
      %p375 = por %p373, %p374
      %p376 = scmp.ne.s32.totalorder %s364, %s365
      %p377 = scmp.eq.s32.totalorder %s46, 1
      %p378 = por %p376, %p377
      %p380 = scmp.ne.s32.totalorder %s365, %s379
      %p381 = scmp.eq.s32.totalorder %s46, 0
      %p382 = por %p380, %p381
      %s384 = sadd.s32 %s383, 1
      %p387 = scmp.eq.s32.totalorder %s40, 1
      %p388 = scmp.ne.s32.totalorder %s383, %s385
      %p389 = scmp.eq.s32.totalorder %s40, 0
      %p390 = por %p388, %p389
      %p391 = scmp.ne.s32.totalorder %s383, %s385
      %p392 = scmp.eq.s32.totalorder %s45, 1
      %p393 = por %p391, %p392
      %p394 = scmp.ne.s32.totalorder %s385, %s386
      %p395 = scmp.eq.s32.totalorder %s45, 0
      %p396 = por %p394, %p395
      %p397 = scmp.ne.s32.totalorder %s385, %s386
      %p398 = scmp.eq.s32.totalorder %s46, 1
      %p399 = por %p397, %p398
      %p401 = scmp.ne.s32.totalorder %s386, %s400
      %p402 = scmp.eq.s32.totalorder %s46, 0
      %p403 = por %p401, %p402
      %s405 = sadd.s32 %s404, 1
      %p408 = scmp.eq.s32.totalorder %s40, 1
      %p409 = scmp.ne.s32.totalorder %s404, %s406
      %p410 = scmp.eq.s32.totalorder %s40, 0
      %p411 = por %p409, %p410
      %p412 = scmp.ne.s32.totalorder %s404, %s406
      %p413 = scmp.eq.s32.totalorder %s45, 1
      %p414 = por %p412, %p413
      %p415 = scmp.ne.s32.totalorder %s406, %s407
      %p416 = scmp.eq.s32.totalorder %s45, 0
      %p417 = por %p415, %p416
      %p418 = scmp.ne.s32.totalorder %s406, %s407
      %p419 = scmp.eq.s32.totalorder %s46, 1
      %p420 = por %p418, %p419
      %p422 = scmp.ne.s32.totalorder %s407, %s421
      %p423 = scmp.eq.s32.totalorder %s46, 0
      %p424 = por %p422, %p423
      %s426 = sadd.s32 %s425, 1
      %p429 = scmp.eq.s32.totalorder %s40, 1
      %p430 = scmp.ne.s32.totalorder %s425, %s427
      %p431 = scmp.eq.s32.totalorder %s40, 0
      %p432 = por %p430, %p431
      %p433 = scmp.ne.s32.totalorder %s425, %s427
      %p434 = scmp.eq.s32.totalorder %s45, 1
      %p435 = por %p433, %p434
      %p436 = scmp.ne.s32.totalorder %s427, %s428
      %p437 = scmp.eq.s32.totalorder %s45, 0
      %p438 = por %p436, %p437
      %p439 = scmp.ne.s32.totalorder %s427, %s428
      %p440 = scmp.eq.s32.totalorder %s46, 1
      %p441 = por %p439, %p440
      %p443 = scmp.ne.s32.totalorder %s428, %s442
      %p444 = scmp.eq.s32.totalorder %s46, 0
      %p445 = por %p443, %p444
      %s447 = sadd.s32 %s446, 1
      %p450 = scmp.eq.s32.totalorder %s40, 1
      %p451 = scmp.ne.s32.totalorder %s446, %s448
      %p452 = scmp.eq.s32.totalorder %s40, 0
      %p453 = por %p451, %p452
      %p454 = scmp.ne.s32.totalorder %s446, %s448
      %p455 = scmp.eq.s32.totalorder %s45, 1
      %p456 = por %p454, %p455
      %p457 = scmp.ne.s32.totalorder %s448, %s449
      %p458 = scmp.eq.s32.totalorder %s45, 0
      %p459 = por %p457, %p458
      %p460 = scmp.ne.s32.totalorder %s448, %s449
      %p461 = scmp.eq.s32.totalorder %s46, 1
      %p462 = por %p460, %p461
      %p464 = scmp.ne.s32.totalorder %s449, %s463
      %p465 = scmp.eq.s32.totalorder %s46, 0
      %p466 = por %p464, %p465
      %s468 = sadd.s32 %s467, 1
      %p471 = scmp.eq.s32.totalorder %s40, 1
      %p472 = scmp.ne.s32.totalorder %s467, %s469
      %p473 = scmp.eq.s32.totalorder %s40, 0
      %p474 = por %p472, %p473
      %p475 = scmp.ne.s32.totalorder %s467, %s469
      %p476 = scmp.eq.s32.totalorder %s45, 1
      %p477 = por %p475, %p476
      %p478 = scmp.ne.s32.totalorder %s469, %s470
      %p479 = scmp.eq.s32.totalorder %s45, 0
      %p480 = por %p478, %p479
      %p481 = scmp.ne.s32.totalorder %s469, %s470
      %p482 = scmp.eq.s32.totalorder %s46, 1
      %p483 = por %p481, %p482
      %p485 = scmp.ne.s32.totalorder %s470, %s484
      %p486 = scmp.eq.s32.totalorder %s46, 0
      %p487 = por %p485, %p486
      %s488 = ssub.s32 %s40, %s47
      %p489 = scmp.eq.s32.totalorder %s488, 0
      %s491 = sadd.s32 %s490, 1
      %s492 = scalar_select %p489, %s490, %s491
      %p495 = pneg %p489
      %p496 = scmp.eq.s32.totalorder %s40, 1
      %p497 = por %p495, %p496
      %p498 = scmp.ne.s32.totalorder %s490, %s493
      %p499 = scmp.eq.s32.totalorder %s40, 0
      %p500 = por %p498, %p499
      %p501 = scmp.ne.s32.totalorder %s490, %s493
      %p502 = scmp.eq.s32.totalorder %s45, 1
      %p503 = por %p501, %p502
      %p504 = scmp.ne.s32.totalorder %s493, %s494
      %p505 = scmp.eq.s32.totalorder %s45, 0
      %p506 = por %p504, %p505
      %p507 = scmp.ne.s32.totalorder %s493, %s494
      %p508 = scmp.eq.s32.totalorder %s46, 1
      %p509 = por %p507, %p508
      %p511 = scmp.ne.s32.totalorder %s494, %s510
      %p512 = scmp.eq.s32.totalorder %s46, 0
      %p513 = por %p511, %p512
      %s514 = ssub.s32 %s40, %s47
      %p515 = scmp.eq.s32.totalorder %s514, 0
      %s517 = sadd.s32 %s516, 1
      %s518 = scalar_select %p515, %s516, %s517
      %p521 = pneg %p515
      %p522 = scmp.eq.s32.totalorder %s40, 1
      %p523 = por %p521, %p522
      %p524 = scmp.ne.s32.totalorder %s516, %s519
      %p525 = scmp.eq.s32.totalorder %s40, 0
      %p526 = por %p524, %p525
      %p527 = scmp.ne.s32.totalorder %s516, %s519
      %p528 = scmp.eq.s32.totalorder %s45, 1
      %p529 = por %p527, %p528
      %p530 = scmp.ne.s32.totalorder %s519, %s520
      %p531 = scmp.eq.s32.totalorder %s45, 0
      %p532 = por %p530, %p531
      %p533 = scmp.ne.s32.totalorder %s519, %s520
      %p534 = scmp.eq.s32.totalorder %s46, 1
      %p535 = por %p533, %p534
      %p537 = scmp.ne.s32.totalorder %s520, %s536
      %p538 = scmp.eq.s32.totalorder %s46, 0
      %p539 = por %p537, %p538
      %p540 = scmp.le.s32.totalorder 1, %s40
      %p541 = scmp.lt.s32.totalorder %s40, 3
      %p542 = pnand %p540, %p541
      %p543 = pneg %p542
      // Predicated region
      $region9: #{tpu_custom_call.1} parent=5 // pred_check
        _
      $region10: #{tpu_custom_call.1} parent=5 // pred_check_branch
        %545 = sbr.rel (%p542) target = $region12
      $region11: #{tpu_custom_call.1} parent=5 // pred_region
        %s546 = ssub.s32 %s40, 1
        // Predicated region
        $region13: #{tpu_custom_call.1} parent=11 // pred_check
          %p547 = pneg %p165
        $region14: #{tpu_custom_call.1} parent=11 // pred_check_branch
          %549 = sbr.rel (%p547) target = $region16
        $region15: #{tpu_custom_call.1} parent=11 // pred_region
          _
        $region16: #{tpu_custom_call.1} parent=11 // pred_fallthru
          _
        // Predicated region
        $region17: #{tpu_custom_call.1} parent=11 // pred_check
          %p550 = pneg %p186
        $region18: #{tpu_custom_call.1} parent=11 // pred_check_branch
          %552 = sbr.rel (%p550) target = $region20
        $region19: #{tpu_custom_call.1} parent=11 // pred_region
          _
        $region20: #{tpu_custom_call.1} parent=11 // pred_fallthru
          _
        // Predicated region
        $region21: #{tpu_custom_call.1} parent=11 // pred_check
          %p553 = pneg %p207
        $region22: #{tpu_custom_call.1} parent=11 // pred_check_branch
          %555 = sbr.rel (%p553) target = $region24
        $region23: #{tpu_custom_call.1} parent=11 // pred_region
          _
        $region24: #{tpu_custom_call.1} parent=11 // pred_fallthru
          _
        // Predicated region
        $region25: #{tpu_custom_call.1} parent=11 // pred_check
          %p556 = pneg %p228
        $region26: #{tpu_custom_call.1} parent=11 // pred_check_branch
          %558 = sbr.rel (%p556) target = $region28
        $region27: #{tpu_custom_call.1} parent=11 // pred_region
          _
        $region28: #{tpu_custom_call.1} parent=11 // pred_fallthru
          _
        // Predicated region
        $region29: #{tpu_custom_call.1} parent=11 // pred_check
          %p559 = pneg %p249
        $region30: #{tpu_custom_call.1} parent=11 // pred_check_branch
          %561 = sbr.rel (%p559) target = $region32
        $region31: #{tpu_custom_call.1} parent=11 // pred_region
          _
        $region32: #{tpu_custom_call.1} parent=11 // pred_fallthru
          _
        // Predicated region
        $region33: #{tpu_custom_call.1} parent=11 // pred_check
          %p562 = pneg %p270
        $region34: #{tpu_custom_call.1} parent=11 // pred_check_branch
          %564 = sbr.rel (%p562) target = $region36
        $region35: #{tpu_custom_call.1} parent=11 // pred_region
          _
        $region36: #{tpu_custom_call.1} parent=11 // pred_fallthru
          _
        // Predicated region
        $region37: #{tpu_custom_call.1} parent=11 // pred_check
          %p565 = pneg %p291
        $region38: #{tpu_custom_call.1} parent=11 // pred_check_branch
          %567 = sbr.rel (%p565) target = $region40
        $region39: #{tpu_custom_call.1} parent=11 // pred_region
          _
        $region40: #{tpu_custom_call.1} parent=11 // pred_fallthru
          _
        // Predicated region
        $region41: #{tpu_custom_call.1} parent=11 // pred_check
          %p568 = pneg %p312
        $region42: #{tpu_custom_call.1} parent=11 // pred_check_branch
          %570 = sbr.rel (%p568) target = $region44
        $region43: #{tpu_custom_call.1} parent=11 // pred_region
          _
        $region44: #{tpu_custom_call.1} parent=11 // pred_fallthru
          _
        // Predicated region
        $region45: #{tpu_custom_call.1} parent=11 // pred_check
          %p571 = pneg %p333
        $region46: #{tpu_custom_call.1} parent=11 // pred_check_branch
          %573 = sbr.rel (%p571) target = $region48
        $region47: #{tpu_custom_call.1} parent=11 // pred_region
          _
        $region48: #{tpu_custom_call.1} parent=11 // pred_fallthru
          _
        // Predicated region
        $region49: #{tpu_custom_call.1} parent=11 // pred_check
          %p574 = pneg %p354
        $region50: #{tpu_custom_call.1} parent=11 // pred_check_branch
          %576 = sbr.rel (%p574) target = $region52
        $region51: #{tpu_custom_call.1} parent=11 // pred_region
          _
        $region52: #{tpu_custom_call.1} parent=11 // pred_fallthru
          _
        // Predicated region
        $region53: #{tpu_custom_call.1} parent=11 // pred_check
          %p577 = pneg %p375
        $region54: #{tpu_custom_call.1} parent=11 // pred_check_branch
          %579 = sbr.rel (%p577) target = $region56
        $region55: #{tpu_custom_call.1} parent=11 // pred_region
          _
        $region56: #{tpu_custom_call.1} parent=11 // pred_fallthru
          _
        // Predicated region
        $region57: #{tpu_custom_call.1} parent=11 // pred_check
          %p580 = pneg %p396
        $region58: #{tpu_custom_call.1} parent=11 // pred_check_branch
          %582 = sbr.rel (%p580) target = $region60
        $region59: #{tpu_custom_call.1} parent=11 // pred_region
          _
        $region60: #{tpu_custom_call.1} parent=11 // pred_fallthru
          _
        // Predicated region
        $region61: #{tpu_custom_call.1} parent=11 // pred_check
          %p583 = pneg %p417
        $region62: #{tpu_custom_call.1} parent=11 // pred_check_branch
          %585 = sbr.rel (%p583) target = $region64
        $region63: #{tpu_custom_call.1} parent=11 // pred_region
          _
        $region64: #{tpu_custom_call.1} parent=11 // pred_fallthru
          _
        // Predicated region
        $region65: #{tpu_custom_call.1} parent=11 // pred_check
          %p586 = pneg %p438
        $region66: #{tpu_custom_call.1} parent=11 // pred_check_branch
          %588 = sbr.rel (%p586) target = $region68
        $region67: #{tpu_custom_call.1} parent=11 // pred_region
          %590 = vsyncadd [#allocation6], 0
          %s592 = sshll.u32 %s17, 4
          %s593 = int_to_ptr.hbm [resolvable:$true] %s592
          %s594 = sshll.u32 [#allocation7], 4
          %s595 = int_to_ptr.vmem [resolvable:$true] %s594
          %597 = dma.hbm_to_vmem [thread:$0]  %s593, 16, %s595, [#allocation6]
        $region68: #{tpu_custom_call.1} parent=11 // pred_fallthru
          _
        // Predicated region
        $region69: #{tpu_custom_call.1} parent=11 // pred_check
          %p598 = pneg %p459
        $region70: #{tpu_custom_call.1} parent=11 // pred_check_branch
          %600 = sbr.rel (%p598) target = $region72
        $region71: #{tpu_custom_call.1} parent=11 // pred_region
          _
        $region72: #{tpu_custom_call.1} parent=11 // pred_fallthru
          _
        // Predicated region
        $region73: #{tpu_custom_call.1} parent=11 // pred_check
          %p601 = pneg %p480
        $region74: #{tpu_custom_call.1} parent=11 // pred_check_branch
          %603 = sbr.rel (%p601) target = $region76
        $region75: #{tpu_custom_call.1} parent=11 // pred_region
          _
        $region76: #{tpu_custom_call.1} parent=11 // pred_fallthru
          _
      $region12: #{tpu_custom_call.1} parent=5 // pred_fallthru
        _
      %p604 = scmp.lt.s32.totalorder %s40, 2
      // Predicated region
      $region77: #{tpu_custom_call.1} parent=5 // pred_check
        %p605 = pneg %p604
      $region78: #{tpu_custom_call.1} parent=5 // pred_check_branch
        %607 = sbr.rel (%p605) target = $region80
      $region79: #{tpu_custom_call.1} parent=5 // pred_region
        // Predicated region
        $region81: #{tpu_custom_call.1} parent=79 // pred_check
          %p608 = pneg %p60
        $region82: #{tpu_custom_call.1} parent=79 // pred_check_branch
          %610 = sbr.rel (%p608) target = $region84
        $region83: #{tpu_custom_call.1} parent=79 // pred_region
          %s611 = sand.u32 %s50, 1
          %s612 = scalar_lea.sflag [#allocation3], %s611
          %s613 = sand.u32 %s50, 1
          %s614 = smul.addr %s613, 8
          %s615 = scalar_lea.vmem [#allocation2], %s614
          %617 = vsyncadd %s612, 0
          %s618 = smul.addr %s40, 8
          %s619 = scalar_lea.hbm %s0, %s618
          %s621 = sshll.u32 %s619, 4
          %s622 = int_to_ptr.hbm [resolvable:$true] %s621
          %s623 = sshll.u32 %s615, 4
          %s624 = int_to_ptr.vmem [resolvable:$true] %s623
          %626 = dma.hbm_to_vmem [thread:$0]  %s622, 128, %s624, %s612
        $region84: #{tpu_custom_call.1} parent=79 // pred_fallthru
          _
        // Predicated region
        $region85: #{tpu_custom_call.1} parent=79 // pred_check
          %p627 = pneg %p86
        $region86: #{tpu_custom_call.1} parent=79 // pred_check_branch
          %629 = sbr.rel (%p627) target = $region88
        $region87: #{tpu_custom_call.1} parent=79 // pred_region
          %s630 = sand.u32 %s40, 1
          %s631 = scalar_lea.sflag [#allocation6], %s630
          %s632 = sand.u32 %s76, 1
          %s633 = smul.addr %s632, 64
          %s634 = scalar_lea.vmem [#allocation5], %s633
          %636 = vsyncadd %s631, 0
          %s637 = smul.addr %s40, 8
          %s638 = smul.addr %s637, 8
          %s639 = scalar_lea.hbm %s1, %s638
          %s640 = sshll.u32 %s639, 4
          %s641 = int_to_ptr.hbm [resolvable:$true] %s640
          %s642 = sshll.u32 %s634, 4
          %s643 = int_to_ptr.vmem [resolvable:$true] %s642
          %648 = dma.hbm_to_vmem [thread:$0]  %s641, 1024, %s643, %s631, 128, 128, 8
        $region88: #{tpu_custom_call.1} parent=79 // pred_fallthru
          _
        // Predicated region
        $region89: #{tpu_custom_call.1} parent=79 // pred_check
          %p649 = pneg %p112
        $region90: #{tpu_custom_call.1} parent=79 // pred_check_branch
          %651 = sbr.rel (%p649) target = $region92
        $region91: #{tpu_custom_call.1} parent=79 // pred_region
          %p652 = scmp.lt.s32.totalorder %s40, 1
          %s653 = scalar_select %p652, %s40, 1
          %s654 = smul.addr %s653, 8
          %s655 = scalar_lea.vmem %s2, %s654
        $region92: #{tpu_custom_call.1} parent=79 // pred_fallthru
          _
        // Predicated region
        $region93: #{tpu_custom_call.1} parent=79 // pred_check
          %p656 = pneg %p138
        $region94: #{tpu_custom_call.1} parent=79 // pred_check_branch
          %658 = sbr.rel (%p656) target = $region96
        $region95: #{tpu_custom_call.1} parent=79 // pred_region
          %p659 = scmp.lt.s32.totalorder %s40, 1
          %s660 = scalar_select %p659, %s40, 1
          %s661 = scalar_lea.vmem %s3, %s660
        $region96: #{tpu_custom_call.1} parent=79 // pred_fallthru
          _
      $region80: #{tpu_custom_call.1} parent=5 // pred_fallthru
        _
      %p662 = scmp.le.s32.totalorder 1, %s40
      %p663 = scmp.lt.s32.totalorder %s40, 3
      %p664 = pnand %p662, %p663
      %p665 = pneg %p664
      // Predicated region
      $region97: #{tpu_custom_call.1} parent=5 // pred_check
        _
      $region98: #{tpu_custom_call.1} parent=5 // pred_check_branch
        %667 = sbr.rel (%p664) target = $region100
      $region99: #{tpu_custom_call.1} parent=5 // pred_region
        %s668 = ssub.s32 %s40, 1
        %s669 = sand.u32 %s53, 1
        %s670 = scalar_lea.sflag [#allocation3], %s669
        %s671 = sand.u32 %s53, 1
        %s672 = smul.addr %s671, 8
        %s673 = scalar_lea.vmem [#allocation2], %s672
        // Predicated region
        $region101: #{tpu_custom_call.1} parent=99 // pred_check
          %p674 = pneg %p66
        $region102: #{tpu_custom_call.1} parent=99 // pred_check_branch
          %676 = sbr.rel (%p674) target = $region104
        $region103: #{tpu_custom_call.1} parent=99 // pred_region
          %678 = dma.done %s670, 128
        $region104: #{tpu_custom_call.1} parent=99 // pred_fallthru
          _
        %s679 = sand.u32 %s45, 1
        %s680 = scalar_lea.sflag [#allocation6], %s679
        %s681 = sand.u32 %s79, 1
        %s682 = smul.addr %s681, 64
        %s683 = scalar_lea.vmem [#allocation5], %s682
        // Predicated region
        $region105: #{tpu_custom_call.1} parent=99 // pred_check
          %p684 = pneg %p92
        $region106: #{tpu_custom_call.1} parent=99 // pred_check_branch
          %686 = sbr.rel (%p684) target = $region108
        $region107: #{tpu_custom_call.1} parent=99 // pred_region
          %688 = dma.done %s680, 1024
        $region108: #{tpu_custom_call.1} parent=99 // pred_fallthru
          _
        // Predicated region
        $region109: #{tpu_custom_call.1} parent=99 // pred_check
          %p689 = pneg %p438
        $region110: #{tpu_custom_call.1} parent=99 // pred_check_branch
          %691 = sbr.rel (%p689) target = $region112
        $region111: #{tpu_custom_call.1} parent=99 // pred_region
          %693 = dma.done [#allocation6], 16
        $region112: #{tpu_custom_call.1} parent=99 // pred_fallthru
          _
        %s694 = sand.u32 %s53, 1
        %s695 = scalar_lea.sflag [#allocation3], %s694
        %s696 = sand.u32 %s53, 1
        %s697 = smul.addr %s696, 8
        %s698 = scalar_lea.vmem [#allocation2], %s697
        %p699 = pneg %p66
        %p700 = pneg %p63
        %s701 = sand.u32 %s45, 1
        %s702 = scalar_lea.sflag [#allocation6], %s701
        %s703 = sand.u32 %s79, 1
        %s704 = smul.addr %s703, 64
        %s705 = scalar_lea.vmem [#allocation5], %s704
        %p706 = pneg %p92
        %p707 = pneg %p89
        %p708 = scmp.lt.s32.totalorder %s45, 1
        %s709 = scalar_select %p708, %s45, 1
        %s710 = smul.addr %s709, 8
        %s711 = scalar_lea.vmem %s2, %s710
        %p712 = pneg %p118
        %p713 = pneg %p115
        %p714 = scmp.lt.s32.totalorder %s45, 1
        %s715 = scalar_select %p714, %s45, 1
        %s716 = scalar_lea.vmem %s3, %s715
        %p717 = pneg %p144
        %p718 = pneg %p141
        %p719 = pneg %p165
        %p720 = pneg %p162
        %p721 = pneg %p186
        %p722 = pneg %p183
        %p723 = pneg %p207
        %p724 = pneg %p204
        %p725 = pneg %p228
        %p726 = pneg %p225
        %p727 = pneg %p249
        %p728 = pneg %p246
        %p729 = pneg %p270
        %p730 = pneg %p267
        %p731 = pneg %p291
        %p732 = pneg %p288
        %p733 = pneg %p312
        %p734 = pneg %p309
        %p735 = pneg %p333
        %p736 = pneg %p330
        %p737 = pneg %p354
        %p738 = pneg %p351
        %p739 = pneg %p375
        %p740 = pneg %p372
        %p741 = pneg %p396
        %p742 = pneg %p393
        %p743 = pneg %p417
        %p744 = pneg %p414
        %p745 = pneg %p438
        %p746 = pneg %p435
        %p747 = pneg %p459
        %p748 = pneg %p456
        %p749 = pneg %p480
        %p750 = pneg %p477
        %p751 = pneg %p506
        %p752 = pneg %p503
        %s753 = sand.u32 %s493, 1
        %s754 = scalar_lea.sflag [#allocation4], %s753
        %s755 = sand.u32 %s493, 1
        %s756 = smul.addr %s755, 8
        %s757 = scalar_lea.vmem [#allocation8], %s756
        %p758 = pneg %p532
        %p759 = pneg %p529
        %s760 = sand.u32 %s519, 1
        %s761 = scalar_lea.sflag [#allocation10], %s760
        %s762 = sand.u32 %s519, 1
        %s763 = smul.addr %s762, 64
        %s764 = scalar_lea.vmem [#allocation9], %s763
        %p765 = scmp.lt.s32.totalorder %s45, 1
        %s766 = scalar_select %p765, %s45, 1
        %s767 = smul.addr %s766, 8
        %s768 = scalar_lea.vmem %s2, %s767
        %p769 = scmp.lt.s32.totalorder %s45, 1
        %s770 = scalar_select %p769, %s45, 1
        %s771 = scalar_lea.vmem %s3, %s770
        %v773 = vld [vmem:[%s673] sm:$0xff]
        %v774 = vld [vmem:[%s683] sm:$0xff]
        %v775 = vld [vmem:[%s683 + $0x8] sm:$0xff]
        %v776 = vld [vmem:[%s683 + $0x10] sm:$0xff]
        %v777 = vld [vmem:[%s683 + $0x18] sm:$0xff]
        %v778 = vld [vmem:[%s683 + $0x20] sm:$0xff]
        %v779 = vld [vmem:[%s683 + $0x28] sm:$0xff]
        %v780 = vld [vmem:[%s683 + $0x30] sm:$0xff]
        %v781 = vld [vmem:[%s683 + $0x38] sm:$0xff]
        %v782 = vld [vmem:[%s768] sm:$0xff]
        %v783 = vld [vmem:[%s771] sm:$0x1]
        %v784 = vpack.c.bf16 %v774, %v774
        %v785 = vpack.c.bf16 %v775, %v775
        %v786 = vpack.c.bf16 %v776, %v776
        %v787 = vpack.c.bf16 %v777, %v777
        %v788 = vpack.c.bf16 %v778, %v778
        %v789 = vpack.c.bf16 %v779, %v779
        %v790 = vpack.c.bf16 %v780, %v780
        %v791 = vpack.c.bf16 %v781, %v781
        %v792 = vld [vmem:[%s4] sm:$0xff]
        %v793 = vld [vmem:[%s4 + $0x8] sm:$0xff]
        %v794 = vld [vmem:[%s4 + $0x10] sm:$0xff]
        %v795 = vld [vmem:[%s4 + $0x18] sm:$0xff]
        %vm796 = vcmask 261120
        %v798 = vsel %vm796, %v773, 0
        %800 = vmatpush.msra.mxu0 0.0
        %801 = vmatpush.msra.mxu0 0.0
        %802 = vmatpush.msra.mxu0 0.0
        %803 = vmatpush.msra.mxu0 0.0
        %804 = vmatpush.msra.mxu0 0.0
        %805 = vmatpush.msra.mxu0 0.0
        %806 = vmatpush.msra.mxu0 0.0
        %807 = vmatpush.msra.mxu0 0.0
        %808 = vmatpush.msra.mxu0 0.0
        %809 = vmatpush.msra.mxu0 0.0
        %810 = vmatpush.msra.mxu0 0.0
        %811 = vmatpush.msra.mxu0 0.0
        %812 = vmatpush.msra.mxu0 %v795
        %813 = vmatpush.msra.mxu0 %v794
        %814 = vmatpush.msra.mxu0 %v793
        %815 = vmatpush.msra.mxu0 %v792
        %816 = vmatmul.f32.gmra.mxu0 %v798
        %v817 = vpop.f32.mrf.mxu0
        %v818 = vadd.f32 0.0, %v817
        %819 = vdwg.mxu0
        %v820 = vpack.c.bf16 %v818, %v818
        %v822 = vunpack.c.l.b16 %v820
        %v823 = vpack.c.b16 %v822, %v822
        %824 = vrot.lane.b32.xlu0 %v823, 96
        %v825 = vpop.permute.xlu0 %824
        %vm826 = vcmask 64512
        %v828 = vsel %vm826, %v820, 0
        %v831 = vsel %vm826, %v825, 0
        %833 = vmatpush.bf16.xpose.msra.mxu0 0
        %834 = vmatpush.bf16.xpose.msra.mxu0 0
        %835 = vmatpush.bf16.xpose.msra.mxu0 0
        %836 = vmatpush.bf16.xpose.msra.mxu0 0
        %837 = vmatpush.bf16.xpose.msra.mxu0 0
        %838 = vmatpush.bf16.xpose.msra.mxu0 0
        %839 = vmatpush.bf16.xpose.msra.mxu0 0
        %840 = vmatpush.bf16.xpose.msra.mxu0 %v831
        %841 = vmatmul.bf16.gmra.mxu0 %v828
        %v842 = vpop.f32.mrf.mxu0
        %v843 = vadd.f32 0.0, %v842
        %v844 = vpop.f32.mrf.mxu0
        %845 = vdwg.mxu0
        %v847 = vrot.slane %v843, 1
        %v848 = vrot.slane %v843, 2
        %v849 = vrot.slane %v843, 3
        %v850 = vrot.slane %v843, 4
        %v851 = vrot.slane %v843, 5
        %v852 = vrot.slane %v843, 6
        %v853 = vrot.slane %v843, 7
        %861 = vrot.lane.b32.xlu0 %v823, 120
        %v862 = vpop.permute.xlu0 %861
        %863 = vrot.lane.b32.xlu0 %v823, 88
        %v864 = vpop.permute.xlu0 %863
        %v866 = vsel %vm826, %v862, 0
        %v869 = vsel %vm826, %v864, 0
        %871 = vmatpush.bf16.xpose.msra.mxu0 0
        %872 = vmatpush.bf16.xpose.msra.mxu0 0
        %873 = vmatpush.bf16.xpose.msra.mxu0 0
        %874 = vmatpush.bf16.xpose.msra.mxu0 0
        %875 = vmatpush.bf16.xpose.msra.mxu0 0
        %876 = vmatpush.bf16.xpose.msra.mxu0 0
        %877 = vmatpush.bf16.xpose.msra.mxu0 0
        %878 = vmatpush.bf16.xpose.msra.mxu0 %v869
        %879 = vmatmul.bf16.gmra.mxu0 %v866
        %v880 = vpop.f32.mrf.mxu0
        %v881 = vadd.f32 0.0, %v880
        %v882 = vpop.f32.mrf.mxu0
        %883 = vdwg.mxu0
        %v885 = vrot.slane %v881, 1
        %v886 = vrot.slane %v881, 2
        %v887 = vrot.slane %v881, 3
        %v888 = vrot.slane %v881, 4
        %v889 = vrot.slane %v881, 5
        %v890 = vrot.slane %v881, 6
        %v891 = vrot.slane %v881, 7
        %892 = vrot.lane.b32.xlu0 %v823, 112
        %v893 = vpop.permute.xlu0 %892
        %894 = vrot.lane.b32.xlu0 %v823, 80
        %v895 = vpop.permute.xlu0 %894
        %v897 = vsel %vm826, %v893, 0
        %v900 = vsel %vm826, %v895, 0
        %902 = vmatpush.bf16.xpose.msra.mxu0 0
        %903 = vmatpush.bf16.xpose.msra.mxu0 0
        %904 = vmatpush.bf16.xpose.msra.mxu0 0
        %905 = vmatpush.bf16.xpose.msra.mxu0 0
        %906 = vmatpush.bf16.xpose.msra.mxu0 0
        %907 = vmatpush.bf16.xpose.msra.mxu0 0
        %908 = vmatpush.bf16.xpose.msra.mxu0 0
        %909 = vmatpush.bf16.xpose.msra.mxu0 %v900
        %910 = vmatmul.bf16.gmra.mxu0 %v897
        %v911 = vpop.f32.mrf.mxu0
        %v912 = vadd.f32 0.0, %v911
        %v913 = vpop.f32.mrf.mxu0
        %914 = vdwg.mxu0
        %v916 = vrot.slane %v912, 1
        %v917 = vrot.slane %v912, 2
        %v918 = vrot.slane %v912, 3
        %v919 = vrot.slane %v912, 4
        %v920 = vrot.slane %v912, 5
        %v921 = vrot.slane %v912, 6
        %v922 = vrot.slane %v912, 7
        %923 = vrot.lane.b32.xlu0 %v823, 104
        %v924 = vpop.permute.xlu0 %923
        %925 = vrot.lane.b32.xlu0 %v823, 72
        %v926 = vpop.permute.xlu0 %925
        %v928 = vsel %vm826, %v924, 0
        %v931 = vsel %vm826, %v926, 0
        %933 = vmatpush.bf16.xpose.msra.mxu0 0
        %934 = vmatpush.bf16.xpose.msra.mxu0 0
        %935 = vmatpush.bf16.xpose.msra.mxu0 0
        %936 = vmatpush.bf16.xpose.msra.mxu0 0
        %937 = vmatpush.bf16.xpose.msra.mxu0 0
        %938 = vmatpush.bf16.xpose.msra.mxu0 0
        %939 = vmatpush.bf16.xpose.msra.mxu0 0
        %940 = vmatpush.bf16.xpose.msra.mxu0 %v931
        %941 = vmatmul.bf16.gmra.mxu0 %v928
        %v942 = vpop.f32.mrf.mxu0
        %v943 = vadd.f32 0.0, %v942
        %v944 = vpop.f32.mrf.mxu0
        %945 = vdwg.mxu0
        %v947 = vrot.slane %v943, 1
        %v948 = vrot.slane %v943, 2
        %v949 = vrot.slane %v943, 3
        %v950 = vrot.slane %v943, 4
        %v951 = vrot.slane %v943, 5
        %v952 = vrot.slane %v943, 6
        %v953 = vrot.slane %v943, 7
        %v954 = vperm.slane %v881, 0
        %v955 = vperm.slane %v885, 0
        %v956 = vperm.slane %v886, 0
        %v957 = vperm.slane %v887, 0
        %v958 = vperm.slane %v888, 0
        %v959 = vperm.slane %v889, 0
        %v960 = vperm.slane %v890, 0
        %v961 = vperm.slane %v891, 0
        %v970 = vperm.slane %v912, 0
        %v971 = vperm.slane %v916, 0
        %v972 = vperm.slane %v917, 0
        %v973 = vperm.slane %v918, 0
        %v974 = vperm.slane %v919, 0
        %v975 = vperm.slane %v920, 0
        %v976 = vperm.slane %v921, 0
        %v977 = vperm.slane %v922, 0
        %v986 = vperm.slane %v943, 0
        %v987 = vperm.slane %v947, 0
        %v988 = vperm.slane %v948, 0
        %v989 = vperm.slane %v949, 0
        %v990 = vperm.slane %v950, 0
        %v991 = vperm.slane %v951, 0
        %v992 = vperm.slane %v952, 0
        %v993 = vperm.slane %v953, 0
        %vm1002 = vcmask 1040384
        %v1003 = vsel %vm1002, %v843, %v954
        %v1004 = vsel %vm1002, %v847, %v955
        %v1005 = vsel %vm1002, %v848, %v956
        %v1006 = vsel %vm1002, %v849, %v957
        %v1007 = vsel %vm1002, %v850, %v958
        %v1008 = vsel %vm1002, %v851, %v959
        %v1009 = vsel %vm1002, %v852, %v960
        %v1010 = vsel %vm1002, %v853, %v961
        %vm1011 = vcmask 1041408
        %v1012 = vsel %vm1011, %v1003, %v970
        %v1013 = vsel %vm1011, %v1004, %v971
        %v1014 = vsel %vm1011, %v1005, %v972
        %v1015 = vsel %vm1011, %v1006, %v973
        %v1016 = vsel %vm1011, %v1007, %v974
        %v1017 = vsel %vm1011, %v1008, %v975
        %v1018 = vsel %vm1011, %v1009, %v976
        %v1019 = vsel %vm1011, %v1010, %v977
        %vm1020 = vcmask 1042432
        %v1021 = vsel %vm1020, %v1012, %v986
        %v1022 = vsel %vm1020, %v1013, %v987
        %v1023 = vsel %vm1020, %v1014, %v988
        %v1024 = vsel %vm1020, %v1015, %v989
        %v1025 = vsel %vm1020, %v1016, %v990
        %v1026 = vsel %vm1020, %v1017, %v991
        %v1027 = vsel %vm1020, %v1018, %v992
        %v1028 = vsel %vm1020, %v1019, %v993
        %v1029 = vld [vmem:[%s5] sm:$0x3]
        %v1031 = vsel %vm826, %v1029, 0
        %vm1033 = vcmask 1043456
        %v1035 = vsel %vm1033, %v784, 0
        %1037 = vmatpush.bf16.msra.mxu0 0
        %1038 = vmatpush.bf16.msra.mxu0 0
        %1039 = vmatpush.bf16.msra.mxu0 0
        %1040 = vmatpush.bf16.msra.mxu0 0
        %1041 = vmatpush.bf16.msra.mxu0 0
        %1042 = vmatpush.bf16.msra.mxu0 0
        %1043 = vmatpush.bf16.msra.mxu0 0
        %1044 = vmatpush.bf16.msra.mxu0 %v1035
        %1045 = vmatmul.bf16.gmra.mxu0 %v1031
        %v1046 = vpop.f32.mrf.mxu0
        %v1047 = vadd.f32 0.0, %v1046
        %v1048 = vpop.f32.mrf.mxu0
        %1049 = vdwg.mxu0
        %v1051 = vsel %vm1033, %v785, 0
        %1053 = vmatpush.bf16.msra.mxu0 0
        %1054 = vmatpush.bf16.msra.mxu0 0
        %1055 = vmatpush.bf16.msra.mxu0 0
        %1056 = vmatpush.bf16.msra.mxu0 0
        %1057 = vmatpush.bf16.msra.mxu0 0
        %1058 = vmatpush.bf16.msra.mxu0 0
        %1059 = vmatpush.bf16.msra.mxu0 0
        %1060 = vmatpush.bf16.msra.mxu0 %v1051
        %1061 = vmatmul.bf16.gmra.mxu0 %v1031
        %v1062 = vpop.f32.mrf.mxu0
        %v1063 = vadd.f32 0.0, %v1062
        %v1064 = vpop.f32.mrf.mxu0
        %1065 = vdwg.mxu0
        %v1067 = vsel %vm1033, %v786, 0
        %1069 = vmatpush.bf16.msra.mxu0 0
        %1070 = vmatpush.bf16.msra.mxu0 0
        %1071 = vmatpush.bf16.msra.mxu0 0
        %1072 = vmatpush.bf16.msra.mxu0 0
        %1073 = vmatpush.bf16.msra.mxu0 0
        %1074 = vmatpush.bf16.msra.mxu0 0
        %1075 = vmatpush.bf16.msra.mxu0 0
        %1076 = vmatpush.bf16.msra.mxu0 %v1067
        %1077 = vmatmul.bf16.gmra.mxu0 %v1031
        %v1078 = vpop.f32.mrf.mxu0
        %v1079 = vadd.f32 0.0, %v1078
        %v1080 = vpop.f32.mrf.mxu0
        %1081 = vdwg.mxu0
        %v1083 = vsel %vm1033, %v787, 0
        %1085 = vmatpush.bf16.msra.mxu0 0
        %1086 = vmatpush.bf16.msra.mxu0 0
        %1087 = vmatpush.bf16.msra.mxu0 0
        %1088 = vmatpush.bf16.msra.mxu0 0
        %1089 = vmatpush.bf16.msra.mxu0 0
        %1090 = vmatpush.bf16.msra.mxu0 0
        %1091 = vmatpush.bf16.msra.mxu0 0
        %1092 = vmatpush.bf16.msra.mxu0 %v1083
        %1093 = vmatmul.bf16.gmra.mxu0 %v1031
        %v1094 = vpop.f32.mrf.mxu0
        %v1095 = vadd.f32 0.0, %v1094
        %v1096 = vpop.f32.mrf.mxu0
        %1097 = vdwg.mxu0
        %v1099 = vsel %vm1033, %v788, 0
        %1101 = vmatpush.bf16.msra.mxu0 0
        %1102 = vmatpush.bf16.msra.mxu0 0
        %1103 = vmatpush.bf16.msra.mxu0 0
        %1104 = vmatpush.bf16.msra.mxu0 0
        %1105 = vmatpush.bf16.msra.mxu0 0
        %1106 = vmatpush.bf16.msra.mxu0 0
        %1107 = vmatpush.bf16.msra.mxu0 0
        %1108 = vmatpush.bf16.msra.mxu0 %v1099
        %1109 = vmatmul.bf16.gmra.mxu0 %v1031
        %v1110 = vpop.f32.mrf.mxu0
        %v1111 = vadd.f32 0.0, %v1110
        %v1112 = vpop.f32.mrf.mxu0
        %1113 = vdwg.mxu0
        %v1115 = vsel %vm1033, %v789, 0
        %1117 = vmatpush.bf16.msra.mxu0 0
        %1118 = vmatpush.bf16.msra.mxu0 0
        %1119 = vmatpush.bf16.msra.mxu0 0
        %1120 = vmatpush.bf16.msra.mxu0 0
        %1121 = vmatpush.bf16.msra.mxu0 0
        %1122 = vmatpush.bf16.msra.mxu0 0
        %1123 = vmatpush.bf16.msra.mxu0 0
        %1124 = vmatpush.bf16.msra.mxu0 %v1115
        %1125 = vmatmul.bf16.gmra.mxu0 %v1031
        %v1126 = vpop.f32.mrf.mxu0
        %v1127 = vadd.f32 0.0, %v1126
        %v1128 = vpop.f32.mrf.mxu0
        %1129 = vdwg.mxu0
        %v1131 = vsel %vm1033, %v790, 0
        %1133 = vmatpush.bf16.msra.mxu0 0
        %1134 = vmatpush.bf16.msra.mxu0 0
        %1135 = vmatpush.bf16.msra.mxu0 0
        %1136 = vmatpush.bf16.msra.mxu0 0
        %1137 = vmatpush.bf16.msra.mxu0 0
        %1138 = vmatpush.bf16.msra.mxu0 0
        %1139 = vmatpush.bf16.msra.mxu0 0
        %1140 = vmatpush.bf16.msra.mxu0 %v1131
        %1141 = vmatmul.bf16.gmra.mxu0 %v1031
        %v1142 = vpop.f32.mrf.mxu0
        %v1143 = vadd.f32 0.0, %v1142
        %v1144 = vpop.f32.mrf.mxu0
        %1145 = vdwg.mxu0
        %v1147 = vsel %vm1033, %v791, 0
        %1149 = vmatpush.bf16.msra.mxu0 0
        %1150 = vmatpush.bf16.msra.mxu0 0
        %1151 = vmatpush.bf16.msra.mxu0 0
        %1152 = vmatpush.bf16.msra.mxu0 0
        %1153 = vmatpush.bf16.msra.mxu0 0
        %1154 = vmatpush.bf16.msra.mxu0 0
        %1155 = vmatpush.bf16.msra.mxu0 0
        %1156 = vmatpush.bf16.msra.mxu0 %v1147
        %1157 = vmatmul.bf16.gmra.mxu0 %v1031
        %v1158 = vpop.f32.mrf.mxu0
        %v1159 = vadd.f32 0.0, %v1158
        %v1160 = vpop.f32.mrf.mxu0
        %1161 = vdwg.mxu0
        %v1170 = vrot.slane %v1021, 4
        %v1171 = vrot.slane %v1022, 4
        %v1172 = vrot.slane %v1023, 4
        %v1173 = vrot.slane %v1024, 4
        %v1174 = vrot.slane %v1025, 4
        %v1175 = vrot.slane %v1026, 4
        %v1176 = vrot.slane %v1027, 4
        %v1177 = vrot.slane %v1028, 4
        %v1186 = vsel %vm1033, %v1047, %v1170
        %v1187 = vsel %vm1033, %v1063, %v1171
        %v1188 = vsel %vm1033, %v1079, %v1172
        %v1189 = vsel %vm1033, %v1095, %v1173
        %v1190 = vsel %vm1033, %v1111, %v1174
        %v1191 = vsel %vm1033, %v1127, %v1175
        %v1192 = vsel %vm1033, %v1143, %v1176
        %v1193 = vsel %vm1033, %v1159, %v1177
        %v1194 = vld [vmem:[%s6] sm:$0x3]
        %v1195 = vld [vmem:[%s7] sm:$0xf]
        %v1196 = vsel %vm826, %v1186, 0.0
        %v1197 = vsel %vm826, %v1187, 0.0
        %v1198 = vadd.f32 %v1196, %v1197
        %v1199 = vsel %vm826, %v1188, 0.0
        %v1200 = vadd.f32 %v1198, %v1199
        %v1201 = vsel %vm826, %v1189, 0.0
        %v1202 = vadd.f32 %v1200, %v1201
        %v1203 = vsel %vm826, %v1190, 0.0
        %v1204 = vadd.f32 %v1202, %v1203
        %v1205 = vsel %vm826, %v1191, 0.0
        %v1206 = vadd.f32 %v1204, %v1205
        %v1207 = vsel %vm826, %v1192, 0.0
        %v1208 = vadd.f32 %v1206, %v1207
        %v1209 = vsel %vm826, %v1193, 0.0
        %v1210 = vadd.f32 %v1208, %v1209
        %1211 = vadd.xlane.f32.xlu0 %v1210
        %v1212 = vpop.xlane.xlu0 %1211
        %v1213 = vrcp.pop 64.0
        %v1214 = vmul.f32 64.0, %v1213
        %v1215 = vsub.f32 1.0, %v1214
        %v1216 = vmul.f32 %v1213, %v1215
        %v1217 = vadd.f32 %v1213, %v1216
        %vm1218 = vweird.f32 %v1213
        %v1219 = vsel %vm1218, %v1213, %v1217
        %v1220 = vmul.f32 %v1212, %v1219
        %v1221 = vsub.f32 %v1186, %v1220
        %v1222 = vsub.f32 %v1187, %v1220
        %v1223 = vsub.f32 %v1188, %v1220
        %v1224 = vsub.f32 %v1189, %v1220
        %v1225 = vsub.f32 %v1190, %v1220
        %v1226 = vsub.f32 %v1191, %v1220
        %v1227 = vsub.f32 %v1192, %v1220
        %v1228 = vsub.f32 %v1193, %v1220
        %v1229 = vmul.f32 %v1221, %v1221
        %v1230 = vmul.f32 %v1222, %v1222
        %v1231 = vmul.f32 %v1223, %v1223
        %v1232 = vmul.f32 %v1224, %v1224
        %v1233 = vmul.f32 %v1225, %v1225
        %v1234 = vmul.f32 %v1226, %v1226
        %v1235 = vmul.f32 %v1227, %v1227
        %v1236 = vmul.f32 %v1228, %v1228
        %v1237 = vsel %vm826, %v1229, 0.0
        %v1238 = vsel %vm826, %v1230, 0.0
        %v1239 = vadd.f32 %v1237, %v1238
        %v1240 = vsel %vm826, %v1231, 0.0
        %v1241 = vadd.f32 %v1239, %v1240
        %v1242 = vsel %vm826, %v1232, 0.0
        %v1243 = vadd.f32 %v1241, %v1242
        %v1244 = vsel %vm826, %v1233, 0.0
        %v1245 = vadd.f32 %v1243, %v1244
        %v1246 = vsel %vm826, %v1234, 0.0
        %v1247 = vadd.f32 %v1245, %v1246
        %v1248 = vsel %vm826, %v1235, 0.0
        %v1249 = vadd.f32 %v1247, %v1248
        %v1250 = vsel %vm826, %v1236, 0.0
        %v1251 = vadd.f32 %v1249, %v1250
        %1252 = vadd.xlane.f32.xlu0 %v1251
        %v1253 = vpop.xlane.xlu0 %1252
        %v1254 = vmul.f32 %v1253, %v1219
        %v1255 = vadd.f32 %v1254, 1e-05
        %v1256 = vrsqrt.pop %v1255
        %v1257 = vmul.f32 %v1256, %v1255
        %v1258 = vmul.f32 %v1257, %v1256
        %v1259 = vmul.f32 0.5, %v1258
        %v1260 = vsub.f32 1.5, %v1259
        %v1261 = vmul.f32 %v1256, %v1260
        %vm1262 = vweird.f32 %v1255
        %vm1263 = vweird.f32 %v1256
        %vm1264 = vmor %vm1262, %vm1263
        %v1265 = vsel %vm1264, %v1256, %v1261
        %v1266 = vmul.f32 %v1221, %v1265
        %v1267 = vmul.f32 %v1222, %v1265
        %v1268 = vmul.f32 %v1223, %v1265
        %v1269 = vmul.f32 %v1224, %v1265
        %v1270 = vmul.f32 %v1225, %v1265
        %v1271 = vmul.f32 %v1226, %v1265
        %v1272 = vmul.f32 %v1227, %v1265
        %v1273 = vmul.f32 %v1228, %v1265
        %v1274 = vpack.c.bf16 %v1266, %v1266
        %v1275 = vpack.c.bf16 %v1267, %v1267
        %v1276 = vpack.c.bf16 %v1268, %v1268
        %v1277 = vpack.c.bf16 %v1269, %v1269
        %v1278 = vpack.c.bf16 %v1270, %v1270
        %v1279 = vpack.c.bf16 %v1271, %v1271
        %v1280 = vpack.c.bf16 %v1272, %v1272
        %v1281 = vpack.c.bf16 %v1273, %v1273
        %v1290 = vunpack.c.l.b16 %v1274
        %v1291 = vunpack.c.l.b16 %v1275
        %v1292 = vunpack.c.l.b16 %v1276
        %v1293 = vunpack.c.l.b16 %v1277
        %v1294 = vunpack.c.l.b16 %v1278
        %v1295 = vunpack.c.l.b16 %v1279
        %v1296 = vunpack.c.l.b16 %v1280
        %v1297 = vunpack.c.l.b16 %v1281
        %v1298 = vpack.c.b16 %v1290, %v1290
        %v1299 = vpack.c.b16 %v1291, %v1291
        %v1300 = vpack.c.b16 %v1292, %v1292
        %v1301 = vpack.c.b16 %v1293, %v1293
        %v1302 = vpack.c.b16 %v1294, %v1294
        %v1303 = vpack.c.b16 %v1295, %v1295
        %v1304 = vpack.c.b16 %v1296, %v1296
        %v1305 = vpack.c.b16 %v1297, %v1297
        %1306 = vrot.lane.b32.xlu0 %v1298, 1
        %v1307 = vpop.permute.xlu0 %1306
        %1308 = vrot.lane.b32.xlu0 %v1299, 1
        %v1309 = vpop.permute.xlu0 %1308
        %1310 = vrot.lane.b32.xlu0 %v1300, 1
        %v1311 = vpop.permute.xlu0 %1310
        %1312 = vrot.lane.b32.xlu0 %v1301, 1
        %v1313 = vpop.permute.xlu0 %1312
        %1314 = vrot.lane.b32.xlu0 %v1302, 1
        %v1315 = vpop.permute.xlu0 %1314
        %1316 = vrot.lane.b32.xlu0 %v1303, 1
        %v1317 = vpop.permute.xlu0 %1316
        %1318 = vrot.lane.b32.xlu0 %v1304, 1
        %v1319 = vpop.permute.xlu0 %1318
        %1320 = vrot.lane.b32.xlu0 %v1305, 1
        %v1321 = vpop.permute.xlu0 %1320
        %vm1322 = vcmask 7168
        %v1325 = vsel %vm1322, 0, %v1307
        %v1327 = vsel %vm1322, 0, %v1309
        %v1329 = vsel %vm1322, 0, %v1311
        %v1331 = vsel %vm1322, 0, %v1313
        %v1333 = vsel %vm1322, 0, %v1315
        %v1335 = vsel %vm1322, 0, %v1317
        %v1337 = vsel %vm1322, 0, %v1319
        %v1339 = vsel %vm1322, 0, %v1321
        %1340 = vrot.lane.b32.xlu0 %v1298, 127
        %v1341 = vpop.permute.xlu0 %1340
        %1342 = vrot.lane.b32.xlu0 %v1299, 127
        %v1343 = vpop.permute.xlu0 %1342
        %1344 = vrot.lane.b32.xlu0 %v1300, 127
        %v1345 = vpop.permute.xlu0 %1344
        %1346 = vrot.lane.b32.xlu0 %v1301, 127
        %v1347 = vpop.permute.xlu0 %1346
        %1348 = vrot.lane.b32.xlu0 %v1302, 127
        %v1349 = vpop.permute.xlu0 %1348
        %1350 = vrot.lane.b32.xlu0 %v1303, 127
        %v1351 = vpop.permute.xlu0 %1350
        %1352 = vrot.lane.b32.xlu0 %v1304, 127
        %v1353 = vpop.permute.xlu0 %1352
        %1354 = vrot.lane.b32.xlu0 %v1305, 127
        %v1355 = vpop.permute.xlu0 %1354
        %vm1356 = vcmask 56320
        %v1358 = vsel %vm1356, %v1341, 0
        %v1360 = vsel %vm1356, %v1343, 0
        %v1362 = vsel %vm1356, %v1345, 0
        %v1364 = vsel %vm1356, %v1347, 0
        %v1366 = vsel %vm1356, %v1349, 0
        %v1368 = vsel %vm1356, %v1351, 0
        %v1370 = vsel %vm1356, %v1353, 0
        %v1372 = vsel %vm1356, %v1355, 0
        %v1374 = vsel %vm1033, %v1325, %v1298
        %v1377 = vsel %vm1033, %v1327, %v1299
        %v1380 = vsel %vm1033, %v1329, %v1300
        %v1383 = vsel %vm1033, %v1331, %v1301
        %v1386 = vsel %vm1033, %v1333, %v1302
        %v1389 = vsel %vm1033, %v1335, %v1303
        %v1392 = vsel %vm1033, %v1337, %v1304
        %v1395 = vsel %vm1033, %v1339, %v1305
        %vm1413 = vcmask 1043456
        %v1414 = vrot.slane %v1374, 4
        %v1415 = vrot.slane %v1358, 4
        %v1416 = vsel %vm1413, %v1414, %v1415
        %v1417 = vrot.slane %v1377, 4
        %v1418 = vrot.slane %v1360, 4
        %v1419 = vsel %vm1413, %v1417, %v1418
        %v1420 = vrot.slane %v1380, 4
        %v1421 = vrot.slane %v1362, 4
        %v1422 = vsel %vm1413, %v1420, %v1421
        %v1423 = vrot.slane %v1383, 4
        %v1424 = vrot.slane %v1364, 4
        %v1425 = vsel %vm1413, %v1423, %v1424
        %v1426 = vrot.slane %v1386, 4
        %v1427 = vrot.slane %v1366, 4
        %v1428 = vsel %vm1413, %v1426, %v1427
        %v1429 = vrot.slane %v1389, 4
        %v1430 = vrot.slane %v1368, 4
        %v1431 = vsel %vm1413, %v1429, %v1430
        %v1432 = vrot.slane %v1392, 4
        %v1433 = vrot.slane %v1370, 4
        %v1434 = vsel %vm1413, %v1432, %v1433
        %v1435 = vrot.slane %v1395, 4
        %v1436 = vrot.slane %v1372, 4
        %v1437 = vsel %vm1413, %v1435, %v1436
        %v1447 = vsel %vm1033, 0, %v1414
        %v1450 = vsel %vm1033, %v1358, %v1417
        %v1453 = vsel %vm1033, %v1360, %v1420
        %v1456 = vsel %vm1033, %v1362, %v1423
        %v1459 = vsel %vm1033, %v1364, %v1426
        %v1462 = vsel %vm1033, %v1366, %v1429
        %v1465 = vsel %vm1033, %v1368, %v1432
        %v1468 = vsel %vm1033, %v1370, %v1435
        %1471 = vset.pattern.permute.xlu0 0
        %1472 = vperm.xlu0 %1471, %v1195
        %v1473 = vpop.permute.xlu0 %1472
        %vm1475 = vcmask 588800
        %v1477 = vsel %vm1475, %v1194, 0
        %v1479 = vsel %vm1033, %v1360, 0
        %1481 = vmatpush.bf16.msra.mxu0 0
        %1482 = vmatpush.bf16.msra.mxu0 0
        %1483 = vmatpush.bf16.msra.mxu0 0
        %1484 = vmatpush.bf16.msra.mxu0 %v1479
        %1485 = vmatpush.bf16.msra.mxu0 %v1377
        %1486 = vmatpush.bf16.msra.mxu0 %v1416
        %1487 = vmatpush.bf16.msra.mxu0 %v1447
        %1488 = vmatpush.bf16.msra.mxu0 0
        %1489 = vmatmul.bf16.gmra.mxu0 %v1477
        %v1490 = vpop.f32.mrf.mxu0
        %v1491 = vadd.f32 %v1473, %v1490
        %v1492 = vpop.f32.mrf.mxu0
        %1493 = vdwg.mxu0
        %v1494 = vsel %vm1033, %v1362, 0
        %1496 = vmatpush.bf16.msra.mxu0 0
        %1497 = vmatpush.bf16.msra.mxu0 0
        %1498 = vmatpush.bf16.msra.mxu0 0
        %1499 = vmatpush.bf16.msra.mxu0 %v1494
        %1500 = vmatpush.bf16.msra.mxu0 %v1380
        %1501 = vmatpush.bf16.msra.mxu0 %v1419
        %1502 = vmatpush.bf16.msra.mxu0 %v1450
        %1503 = vmatpush.bf16.msra.mxu0 %v1374
        %1504 = vmatmul.bf16.gmra.mxu0 %v1477
        %v1505 = vpop.f32.mrf.mxu0
        %v1506 = vadd.f32 %v1473, %v1505
        %v1507 = vpop.f32.mrf.mxu0
        %1508 = vdwg.mxu0
        %v1509 = vsel %vm1033, %v1364, 0
        %1511 = vmatpush.bf16.msra.mxu0 0
        %1512 = vmatpush.bf16.msra.mxu0 0
        %1513 = vmatpush.bf16.msra.mxu0 0
        %1514 = vmatpush.bf16.msra.mxu0 %v1509
        %1515 = vmatpush.bf16.msra.mxu0 %v1383
        %1516 = vmatpush.bf16.msra.mxu0 %v1422
        %1517 = vmatpush.bf16.msra.mxu0 %v1453
        %1518 = vmatpush.bf16.msra.mxu0 %v1377
        %1519 = vmatmul.bf16.gmra.mxu0 %v1477
        %v1520 = vpop.f32.mrf.mxu0
        %v1521 = vadd.f32 %v1473, %v1520
        %v1522 = vpop.f32.mrf.mxu0
        %1523 = vdwg.mxu0
        %v1524 = vsel %vm1033, %v1366, 0
        %1526 = vmatpush.bf16.msra.mxu0 0
        %1527 = vmatpush.bf16.msra.mxu0 0
        %1528 = vmatpush.bf16.msra.mxu0 0
        %1529 = vmatpush.bf16.msra.mxu0 %v1524
        %1530 = vmatpush.bf16.msra.mxu0 %v1386
        %1531 = vmatpush.bf16.msra.mxu0 %v1425
        %1532 = vmatpush.bf16.msra.mxu0 %v1456
        %1533 = vmatpush.bf16.msra.mxu0 %v1380
        %1534 = vmatmul.bf16.gmra.mxu0 %v1477
        %v1535 = vpop.f32.mrf.mxu0
        %v1536 = vadd.f32 %v1473, %v1535
        %v1537 = vpop.f32.mrf.mxu0
        %1538 = vdwg.mxu0
        %v1539 = vsel %vm1033, %v1368, 0
        %1541 = vmatpush.bf16.msra.mxu0 0
        %1542 = vmatpush.bf16.msra.mxu0 0
        %1543 = vmatpush.bf16.msra.mxu0 0
        %1544 = vmatpush.bf16.msra.mxu0 %v1539
        %1545 = vmatpush.bf16.msra.mxu0 %v1389
        %1546 = vmatpush.bf16.msra.mxu0 %v1428
        %1547 = vmatpush.bf16.msra.mxu0 %v1459
        %1548 = vmatpush.bf16.msra.mxu0 %v1383
        %1549 = vmatmul.bf16.gmra.mxu0 %v1477
        %v1550 = vpop.f32.mrf.mxu0
        %v1551 = vadd.f32 %v1473, %v1550
        %v1552 = vpop.f32.mrf.mxu0
        %1553 = vdwg.mxu0
        %v1554 = vsel %vm1033, %v1370, 0
        %1556 = vmatpush.bf16.msra.mxu0 0
        %1557 = vmatpush.bf16.msra.mxu0 0
        %1558 = vmatpush.bf16.msra.mxu0 0
        %1559 = vmatpush.bf16.msra.mxu0 %v1554
        %1560 = vmatpush.bf16.msra.mxu0 %v1392
        %1561 = vmatpush.bf16.msra.mxu0 %v1431
        %1562 = vmatpush.bf16.msra.mxu0 %v1462
        %1563 = vmatpush.bf16.msra.mxu0 %v1386
        %1564 = vmatmul.bf16.gmra.mxu0 %v1477
        %v1565 = vpop.f32.mrf.mxu0
        %v1566 = vadd.f32 %v1473, %v1565
        %v1567 = vpop.f32.mrf.mxu0
        %1568 = vdwg.mxu0
        %v1569 = vsel %vm1033, %v1372, 0
        %1571 = vmatpush.bf16.msra.mxu0 0
        %1572 = vmatpush.bf16.msra.mxu0 0
        %1573 = vmatpush.bf16.msra.mxu0 0
        %1574 = vmatpush.bf16.msra.mxu0 %v1569
        %1575 = vmatpush.bf16.msra.mxu0 %v1395
        %1576 = vmatpush.bf16.msra.mxu0 %v1434
        %1577 = vmatpush.bf16.msra.mxu0 %v1465
        %1578 = vmatpush.bf16.msra.mxu0 %v1389
        %1579 = vmatmul.bf16.gmra.mxu0 %v1477
        %v1580 = vpop.f32.mrf.mxu0
        %v1581 = vadd.f32 %v1473, %v1580
        %v1582 = vpop.f32.mrf.mxu0
        %1583 = vdwg.mxu0
        %v1584 = vsel %vm1033, 0, 0
        %1586 = vmatpush.bf16.msra.mxu0 0
        %1587 = vmatpush.bf16.msra.mxu0 0
        %1588 = vmatpush.bf16.msra.mxu0 0
        %1589 = vmatpush.bf16.msra.mxu0 %v1584
        %1590 = vmatpush.bf16.msra.mxu0 0
        %1591 = vmatpush.bf16.msra.mxu0 %v1437
        %1592 = vmatpush.bf16.msra.mxu0 %v1468
        %1593 = vmatpush.bf16.msra.mxu0 %v1392
        %1594 = vmatmul.bf16.gmra.mxu0 %v1477
        %v1595 = vpop.f32.mrf.mxu0
        %v1596 = vadd.f32 %v1473, %v1595
        %v1597 = vpop.f32.mrf.mxu0
        %1598 = vdwg.mxu0
        %vm1599 = vcmp.ge.f32.partialorder %v1491, 0.0
        %vm1600 = vcmp.ge.f32.partialorder %v1506, 0.0
        %vm1601 = vcmp.ge.f32.partialorder %v1521, 0.0
        %vm1602 = vcmp.ge.f32.partialorder %v1536, 0.0
        %vm1603 = vcmp.ge.f32.partialorder %v1551, 0.0
        %vm1604 = vcmp.ge.f32.partialorder %v1566, 0.0
        %vm1605 = vcmp.ge.f32.partialorder %v1581, 0.0
        %vm1606 = vcmp.ge.f32.partialorder %v1596, 0.0
        %v1607 = vmul.f32 %v1491, 0.01
        %v1608 = vmul.f32 %v1506, 0.01
        %v1609 = vmul.f32 %v1521, 0.01
        %v1610 = vmul.f32 %v1536, 0.01
        %v1611 = vmul.f32 %v1551, 0.01
        %v1612 = vmul.f32 %v1566, 0.01
        %v1613 = vmul.f32 %v1581, 0.01
        %v1614 = vmul.f32 %v1596, 0.01
        %v1615 = vsel %vm1599, %v1491, %v1607
        %v1616 = vsel %vm1600, %v1506, %v1608
        %v1617 = vsel %vm1601, %v1521, %v1609
        %v1618 = vsel %vm1602, %v1536, %v1610
        %v1619 = vsel %vm1603, %v1551, %v1611
        %v1620 = vsel %vm1604, %v1566, %v1612
        %v1621 = vsel %vm1605, %v1581, %v1613
        %v1622 = vsel %vm1606, %v1596, %v1614
        %1624 = vset.pattern.permute.xlu0 0
        %1625 = vperm.xlu0 %1624, %v782
        %v1626 = vpop.permute.xlu0 %1625
        %v1629 = vperm.slane %v783, 0
        %v1631 = vmul.f32 %v1626, %v1629
        %v1632 = vsub.f32 1.0, %v1631
        %v1633 = vmul.f32 %v1632, -1000000.0
        %v1635 = vrot.slane %v1633, 1
        %v1636 = vrot.slane %v1633, 2
        %v1637 = vrot.slane %v1633, 3
        %v1638 = vrot.slane %v1633, 4
        %v1639 = vrot.slane %v1633, 5
        %v1640 = vrot.slane %v1633, 6
        %v1641 = vrot.slane %v1633, 7
        %v1642 = vrot.slane %v782, 1
        %v1643 = vrot.slane %v782, 2
        %v1644 = vrot.slane %v782, 3
        %v1645 = vrot.slane %v782, 4
        %v1646 = vrot.slane %v782, 5
        %v1647 = vrot.slane %v782, 6
        %v1648 = vrot.slane %v782, 7
        %v1649 = vperm.slane %v1633, 0
        %v1650 = vperm.slane %v1635, 0
        %v1651 = vperm.slane %v1636, 0
        %v1652 = vperm.slane %v1637, 0
        %v1653 = vperm.slane %v1638, 0
        %v1654 = vperm.slane %v1639, 0
        %v1655 = vperm.slane %v1640, 0
        %v1656 = vperm.slane %v1641, 0
        %v1665 = vadd.f32 %v1615, %v1649
        %v1666 = vadd.f32 %v1616, %v1650
        %v1667 = vadd.f32 %v1617, %v1651
        %v1668 = vadd.f32 %v1618, %v1652
        %v1669 = vadd.f32 %v1619, %v1653
        %v1670 = vadd.f32 %v1620, %v1654
        %v1671 = vadd.f32 %v1621, %v1655
        %v1672 = vadd.f32 %v1622, %v1656
        %vm1673 = vcmask 60416
        %v1674 = vsel %vm1673, %v1665, -inf
        %1675 = vmax.xlane.f32.xlu0 %v1674
        %v1676 = vpop.xlane.xlu0 %1675
        %v1677 = vsel %vm1673, %v1666, -inf
        %1678 = vmax.xlane.f32.xlu0 %v1677
        %v1679 = vpop.xlane.xlu0 %1678
        %v1680 = vsel %vm1673, %v1667, -inf
        %1681 = vmax.xlane.f32.xlu0 %v1680
        %v1682 = vpop.xlane.xlu0 %1681
        %v1683 = vsel %vm1673, %v1668, -inf
        %1684 = vmax.xlane.f32.xlu0 %v1683
        %v1685 = vpop.xlane.xlu0 %1684
        %v1686 = vsel %vm1673, %v1669, -inf
        %1687 = vmax.xlane.f32.xlu0 %v1686
        %v1688 = vpop.xlane.xlu0 %1687
        %v1689 = vsel %vm1673, %v1670, -inf
        %1690 = vmax.xlane.f32.xlu0 %v1689
        %v1691 = vpop.xlane.xlu0 %1690
        %v1692 = vsel %vm1673, %v1671, -inf
        %1693 = vmax.xlane.f32.xlu0 %v1692
        %v1694 = vpop.xlane.xlu0 %1693
        %v1695 = vsel %vm1673, %v1672, -inf
        %1696 = vmax.xlane.f32.xlu0 %v1695
        %v1697 = vpop.xlane.xlu0 %1696
        %v1698 = vsub.f32 %v1665, %v1676
        %v1699 = vsub.f32 %v1666, %v1679
        %v1700 = vsub.f32 %v1667, %v1682
        %v1701 = vsub.f32 %v1668, %v1685
        %v1702 = vsub.f32 %v1669, %v1688
        %v1703 = vsub.f32 %v1670, %v1691
        %v1704 = vsub.f32 %v1671, %v1694
        %v1705 = vsub.f32 %v1672, %v1697
        %v1706 = vmul.f32 %v1698, 1.442695
        %v1707 = vpow.pop %v1706
        %v1708 = vmul.f32 %v1699, 1.442695
        %v1709 = vpow.pop %v1708
        %v1710 = vmul.f32 %v1700, 1.442695
        %v1711 = vpow.pop %v1710
        %v1712 = vmul.f32 %v1701, 1.442695
        %v1713 = vpow.pop %v1712
        %v1714 = vmul.f32 %v1702, 1.442695
        %v1715 = vpow.pop %v1714
        %v1716 = vmul.f32 %v1703, 1.442695
        %v1717 = vpow.pop %v1716
        %v1718 = vmul.f32 %v1704, 1.442695
        %v1719 = vpow.pop %v1718
        %v1720 = vmul.f32 %v1705, 1.442695
        %v1721 = vpow.pop %v1720
        %v1722 = vsel %vm1673, %v1707, 0.0
        %1723 = vadd.xlane.f32.xlu0 %v1722
        %v1724 = vpop.xlane.xlu0 %1723
        %v1725 = vsel %vm1673, %v1709, 0.0
        %1726 = vadd.xlane.f32.xlu0 %v1725
        %v1727 = vpop.xlane.xlu0 %1726
        %v1728 = vsel %vm1673, %v1711, 0.0
        %1729 = vadd.xlane.f32.xlu0 %v1728
        %v1730 = vpop.xlane.xlu0 %1729
        %v1731 = vsel %vm1673, %v1713, 0.0
        %1732 = vadd.xlane.f32.xlu0 %v1731
        %v1733 = vpop.xlane.xlu0 %1732
        %v1734 = vsel %vm1673, %v1715, 0.0
        %1735 = vadd.xlane.f32.xlu0 %v1734
        %v1736 = vpop.xlane.xlu0 %1735
        %v1737 = vsel %vm1673, %v1717, 0.0
        %1738 = vadd.xlane.f32.xlu0 %v1737
        %v1739 = vpop.xlane.xlu0 %1738
        %v1740 = vsel %vm1673, %v1719, 0.0
        %1741 = vadd.xlane.f32.xlu0 %v1740
        %v1742 = vpop.xlane.xlu0 %1741
        %v1743 = vsel %vm1673, %v1721, 0.0
        %1744 = vadd.xlane.f32.xlu0 %v1743
        %v1745 = vpop.xlane.xlu0 %1744
        %v1746 = vrcp.pop %v1724
        %v1747 = vrcp.pop %v1727
        %v1748 = vrcp.pop %v1730
        %v1749 = vrcp.pop %v1733
        %v1750 = vrcp.pop %v1736
        %v1751 = vrcp.pop %v1739
        %v1752 = vrcp.pop %v1742
        %v1753 = vrcp.pop %v1745
        %v1754 = vmul.f32 %v1707, %v1746
        %v1755 = vmul.f32 %v1709, %v1747
        %v1756 = vmul.f32 %v1711, %v1748
        %v1757 = vmul.f32 %v1713, %v1749
        %v1758 = vmul.f32 %v1715, %v1750
        %v1759 = vmul.f32 %v1717, %v1751
        %v1760 = vmul.f32 %v1719, %v1752
        %v1761 = vmul.f32 %v1721, %v1753
        %v1762 = vperm.slane %v782, 0
        %v1763 = vperm.slane %v1642, 0
        %v1764 = vperm.slane %v1643, 0
        %v1765 = vperm.slane %v1644, 0
        %v1766 = vperm.slane %v1645, 0
        %v1767 = vperm.slane %v1646, 0
        %v1768 = vperm.slane %v1647, 0
        %v1769 = vperm.slane %v1648, 0
        %1770 = vset.pattern.permute.xlu0 0
        %1771 = vperm.xlu0 %1770, %v1762
        %v1772 = vpop.permute.xlu0 %1771
        %1774 = vset.pattern.permute.xlu0 0
        %1775 = vperm.xlu0 %1774, %v1763
        %v1776 = vpop.permute.xlu0 %1775
        %1778 = vset.pattern.permute.xlu0 0
        %1779 = vperm.xlu0 %1778, %v1764
        %v1780 = vpop.permute.xlu0 %1779
        %1782 = vset.pattern.permute.xlu0 0
        %1783 = vperm.xlu0 %1782, %v1765
        %v1784 = vpop.permute.xlu0 %1783
        %1786 = vset.pattern.permute.xlu0 0
        %1787 = vperm.xlu0 %1786, %v1766
        %v1788 = vpop.permute.xlu0 %1787
        %1790 = vset.pattern.permute.xlu0 0
        %1791 = vperm.xlu0 %1790, %v1767
        %v1792 = vpop.permute.xlu0 %1791
        %1794 = vset.pattern.permute.xlu0 0
        %1795 = vperm.xlu0 %1794, %v1768
        %v1796 = vpop.permute.xlu0 %1795
        %1798 = vset.pattern.permute.xlu0 0
        %1799 = vperm.xlu0 %1798, %v1769
        %v1800 = vpop.permute.xlu0 %1799
        %v1802 = vmul.f32 %v1754, %v1772
        %v1803 = vmul.f32 %v1755, %v1776
        %v1804 = vmul.f32 %v1756, %v1780
        %v1805 = vmul.f32 %v1757, %v1784
        %v1806 = vmul.f32 %v1758, %v1788
        %v1807 = vmul.f32 %v1759, %v1792
        %v1808 = vmul.f32 %v1760, %v1796
        %v1809 = vmul.f32 %v1761, %v1800
        %v1810 = vpack.c.bf16 %v1802, %v1802
        %v1811 = vpack.c.bf16 %v1803, %v1803
        %v1812 = vpack.c.bf16 %v1804, %v1804
        %v1813 = vpack.c.bf16 %v1805, %v1805
        %v1814 = vpack.c.bf16 %v1806, %v1806
        %v1815 = vpack.c.bf16 %v1807, %v1807
        %v1816 = vpack.c.bf16 %v1808, %v1808
        %v1817 = vpack.c.bf16 %v1809, %v1809
        %v1826 = vunpack.c.l.b16 %v1810
        %v1827 = vunpack.c.l.b16 %v1811
        %v1828 = vunpack.c.l.b16 %v1812
        %v1829 = vunpack.c.l.b16 %v1813
        %v1830 = vunpack.c.l.b16 %v1814
        %v1831 = vunpack.c.l.b16 %v1815
        %v1832 = vunpack.c.l.b16 %v1816
        %v1833 = vunpack.c.l.b16 %v1817
        %v1834 = vpack.c.b16 %v1826, %v1826
        %v1835 = vpack.c.b16 %v1827, %v1827
        %v1836 = vpack.c.b16 %v1828, %v1828
        %v1837 = vpack.c.b16 %v1829, %v1829
        %v1838 = vpack.c.b16 %v1830, %v1830
        %v1839 = vpack.c.b16 %v1831, %v1831
        %v1840 = vpack.c.b16 %v1832, %v1832
        %v1841 = vpack.c.b16 %v1833, %v1833
        %v1842 = vunpack.c.l.b16 %v1834
        %v1843 = vunpack.c.l.b16 %v1835
        %v1844 = vunpack.c.l.b16 %v1836
        %v1845 = vunpack.c.l.b16 %v1837
        %v1846 = vunpack.c.l.b16 %v1838
        %v1847 = vunpack.c.l.b16 %v1839
        %v1848 = vunpack.c.l.b16 %v1840
        %v1849 = vunpack.c.l.b16 %v1841
        %v1850 = vrot.slane %v1843, 7
        %vm1851 = vcmask 1041409
        %v1852 = vsel %vm1851, %v1850, %v1842
        %v1853 = vrot.slane %v1844, 6
        %vm1854 = vcmask 1042434
        %v1855 = vsel %vm1854, %v1853, %v1852
        %v1856 = vrot.slane %v1845, 5
        %vm1857 = vcmask 1043459
        %v1858 = vsel %vm1857, %v1856, %v1855
        %v1859 = vrot.slane %v1846, 4
        %vm1860 = vcmask 1044484
        %v1861 = vsel %vm1860, %v1859, %v1858
        %v1862 = vrot.slane %v1847, 3
        %vm1863 = vcmask 1045509
        %v1864 = vsel %vm1863, %v1862, %v1861
        %v1865 = vrot.slane %v1848, 2
        %vm1866 = vcmask 1046534
        %v1867 = vsel %vm1866, %v1865, %v1864
        %v1868 = vrot.slane %v1849, 1
        %vm1869 = vcmask 1047559
        %v1870 = vsel %vm1869, %v1868, %v1867
        %v1871 = vpack.c.b16 %v1870, %v1870
        %1872 = vrot.lane.b32.xlu0 %v823, 64
        %v1873 = vpop.permute.xlu0 %1872
        %v1875 = vsel %vm826, %v1871, 0
        %v1878 = vsel %vm1033, %v1873, 0
        %1880 = vmatpush.bf16.msra.mxu0 0
        %1881 = vmatpush.bf16.msra.mxu0 0
        %1882 = vmatpush.bf16.msra.mxu0 0
        %1883 = vmatpush.bf16.msra.mxu0 0
        %1884 = vmatpush.bf16.msra.mxu0 0
        %1885 = vmatpush.bf16.msra.mxu0 0
        %1886 = vmatpush.bf16.msra.mxu0 0
        %1887 = vmatpush.bf16.msra.mxu0 %v1878
        %1888 = vmatmul.bf16.gmra.mxu0 %v1875
        %v1889 = vpop.f32.mrf.mxu0
        %v1890 = vadd.f32 0.0, %v1889
        %v1891 = vpop.f32.mrf.mxu0
        %1892 = vdwg.mxu0
        %v1893 = vrot.slane %v1842, 1
        %v1894 = vsel %vm1851, %v1843, %v1893
        %v1895 = vrot.slane %v1844, 7
        %v1896 = vsel %vm1854, %v1895, %v1894
        %v1897 = vrot.slane %v1845, 6
        %v1898 = vsel %vm1857, %v1897, %v1896
        %v1899 = vrot.slane %v1846, 5
        %v1900 = vsel %vm1860, %v1899, %v1898
        %v1901 = vrot.slane %v1847, 4
        %v1902 = vsel %vm1863, %v1901, %v1900
        %v1903 = vrot.slane %v1848, 3
        %v1904 = vsel %vm1866, %v1903, %v1902
        %v1905 = vrot.slane %v1849, 2
        %v1906 = vsel %vm1869, %v1905, %v1904
        %v1907 = vpack.c.b16 %v1906, %v1906
        %1908 = vrot.lane.b32.xlu0 %v823, 56
        %v1909 = vpop.permute.xlu0 %1908
        %v1911 = vsel %vm826, %v1907, 0
        %v1914 = vsel %vm1033, %v1909, 0
        %1916 = vmatpush.bf16.msra.mxu0 0
        %1917 = vmatpush.bf16.msra.mxu0 0
        %1918 = vmatpush.bf16.msra.mxu0 0
        %1919 = vmatpush.bf16.msra.mxu0 0
        %1920 = vmatpush.bf16.msra.mxu0 0
        %1921 = vmatpush.bf16.msra.mxu0 0
        %1922 = vmatpush.bf16.msra.mxu0 0
        %1923 = vmatpush.bf16.msra.mxu0 %v1914
        %1924 = vmatmul.bf16.gmra.mxu0 %v1911
        %v1925 = vpop.f32.mrf.mxu0
        %v1926 = vadd.f32 0.0, %v1925
        %v1927 = vpop.f32.mrf.mxu0
        %1928 = vdwg.mxu0
        %v1929 = vrot.slane %v1842, 2
        %v1930 = vrot.slane %v1843, 1
        %v1931 = vsel %vm1851, %v1930, %v1929
        %v1932 = vsel %vm1854, %v1844, %v1931
        %v1933 = vrot.slane %v1845, 7
        %v1934 = vsel %vm1857, %v1933, %v1932
        %v1935 = vrot.slane %v1846, 6
        %v1936 = vsel %vm1860, %v1935, %v1934
        %v1937 = vrot.slane %v1847, 5
        %v1938 = vsel %vm1863, %v1937, %v1936
        %v1939 = vrot.slane %v1848, 4
        %v1940 = vsel %vm1866, %v1939, %v1938
        %v1941 = vrot.slane %v1849, 3
        %v1942 = vsel %vm1869, %v1941, %v1940
        %v1943 = vpack.c.b16 %v1942, %v1942
        %1944 = vrot.lane.b32.xlu0 %v823, 48
        %v1945 = vpop.permute.xlu0 %1944
        %v1947 = vsel %vm826, %v1943, 0
        %v1950 = vsel %vm1033, %v1945, 0
        %1952 = vmatpush.bf16.msra.mxu0 0
        %1953 = vmatpush.bf16.msra.mxu0 0
        %1954 = vmatpush.bf16.msra.mxu0 0
        %1955 = vmatpush.bf16.msra.mxu0 0
        %1956 = vmatpush.bf16.msra.mxu0 0
        %1957 = vmatpush.bf16.msra.mxu0 0
        %1958 = vmatpush.bf16.msra.mxu0 0
        %1959 = vmatpush.bf16.msra.mxu0 %v1950
        %1960 = vmatmul.bf16.gmra.mxu0 %v1947
        %v1961 = vpop.f32.mrf.mxu0
        %v1962 = vadd.f32 0.0, %v1961
        %v1963 = vpop.f32.mrf.mxu0
        %1964 = vdwg.mxu0
        %v1965 = vrot.slane %v1842, 3
        %v1966 = vrot.slane %v1843, 2
        %v1967 = vsel %vm1851, %v1966, %v1965
        %v1968 = vrot.slane %v1844, 1
        %v1969 = vsel %vm1854, %v1968, %v1967
        %v1970 = vsel %vm1857, %v1845, %v1969
        %v1971 = vrot.slane %v1846, 7
        %v1972 = vsel %vm1860, %v1971, %v1970
        %v1973 = vrot.slane %v1847, 6
        %v1974 = vsel %vm1863, %v1973, %v1972
        %v1975 = vrot.slane %v1848, 5
        %v1976 = vsel %vm1866, %v1975, %v1974
        %v1977 = vrot.slane %v1849, 4
        %v1978 = vsel %vm1869, %v1977, %v1976
        %v1979 = vpack.c.b16 %v1978, %v1978
        %1980 = vrot.lane.b32.xlu0 %v823, 40
        %v1981 = vpop.permute.xlu0 %1980
        %v1983 = vsel %vm826, %v1979, 0
        %v1986 = vsel %vm1033, %v1981, 0
        %1988 = vmatpush.bf16.msra.mxu0 0
        %1989 = vmatpush.bf16.msra.mxu0 0
        %1990 = vmatpush.bf16.msra.mxu0 0
        %1991 = vmatpush.bf16.msra.mxu0 0
        %1992 = vmatpush.bf16.msra.mxu0 0
        %1993 = vmatpush.bf16.msra.mxu0 0
        %1994 = vmatpush.bf16.msra.mxu0 0
        %1995 = vmatpush.bf16.msra.mxu0 %v1986
        %1996 = vmatmul.bf16.gmra.mxu0 %v1983
        %v1997 = vpop.f32.mrf.mxu0
        %v1998 = vadd.f32 0.0, %v1997
        %v1999 = vpop.f32.mrf.mxu0
        %2000 = vdwg.mxu0
        %2002 = vrot.lane.b32.xlu0 %v1926, 8
        %v2003 = vpop.permute.xlu0 %2002
        %2006 = vrot.lane.b32.xlu0 %v1962, 16
        %v2007 = vpop.permute.xlu0 %2006
        %2010 = vrot.lane.b32.xlu0 %v1998, 24
        %v2011 = vpop.permute.xlu0 %2010
        %v2013 = vsel %vm826, %v1890, %v2003
        %vm2014 = vcmask 130048
        %v2015 = vsel %vm2014, %v2013, %v2007
        %vm2016 = vcmask 195584
        %v2017 = vsel %vm2016, %v2015, %v2011
        %v2019 = vsel %vm826, %v1810, 0
        %v2021 = vsel %vm826, %v784, 0
        %2023 = vmatpush.bf16.xpose.msra.mxu0 0
        %2024 = vmatpush.bf16.xpose.msra.mxu0 0
        %2025 = vmatpush.bf16.xpose.msra.mxu0 0
        %2026 = vmatpush.bf16.xpose.msra.mxu0 0
        %2027 = vmatpush.bf16.xpose.msra.mxu0 0
        %2028 = vmatpush.bf16.xpose.msra.mxu0 0
        %2029 = vmatpush.bf16.xpose.msra.mxu0 0
        %2030 = vmatpush.bf16.xpose.msra.mxu0 %v2021
        %2031 = vmatmul.bf16.gmra.mxu0 %v2019
        %v2032 = vpop.f32.mrf.mxu0
        %v2033 = vadd.f32 0.0, %v2032
        %v2034 = vpop.f32.mrf.mxu0
        %2035 = vdwg.mxu0
        %v2037 = vsel %vm826, %v1811, 0
        %v2039 = vsel %vm826, %v785, 0
        %2041 = vmatpush.bf16.xpose.msra.mxu0 0
        %2042 = vmatpush.bf16.xpose.msra.mxu0 0
        %2043 = vmatpush.bf16.xpose.msra.mxu0 0
        %2044 = vmatpush.bf16.xpose.msra.mxu0 0
        %2045 = vmatpush.bf16.xpose.msra.mxu0 0
        %2046 = vmatpush.bf16.xpose.msra.mxu0 0
        %2047 = vmatpush.bf16.xpose.msra.mxu0 0
        %2048 = vmatpush.bf16.xpose.msra.mxu0 %v2039
        %2049 = vmatmul.bf16.gmra.mxu0 %v2037
        %v2050 = vpop.f32.mrf.mxu0
        %v2051 = vadd.f32 0.0, %v2050
        %v2052 = vpop.f32.mrf.mxu0
        %2053 = vdwg.mxu0
        %v2055 = vsel %vm826, %v1812, 0
        %v2057 = vsel %vm826, %v786, 0
        %2059 = vmatpush.bf16.xpose.msra.mxu0 0
        %2060 = vmatpush.bf16.xpose.msra.mxu0 0
        %2061 = vmatpush.bf16.xpose.msra.mxu0 0
        %2062 = vmatpush.bf16.xpose.msra.mxu0 0
        %2063 = vmatpush.bf16.xpose.msra.mxu0 0
        %2064 = vmatpush.bf16.xpose.msra.mxu0 0
        %2065 = vmatpush.bf16.xpose.msra.mxu0 0
        %2066 = vmatpush.bf16.xpose.msra.mxu0 %v2057
        %2067 = vmatmul.bf16.gmra.mxu0 %v2055
        %v2068 = vpop.f32.mrf.mxu0
        %v2069 = vadd.f32 0.0, %v2068
        %v2070 = vpop.f32.mrf.mxu0
        %2071 = vdwg.mxu0
        %v2073 = vsel %vm826, %v1813, 0
        %v2075 = vsel %vm826, %v787, 0
        %2077 = vmatpush.bf16.xpose.msra.mxu0 0
        %2078 = vmatpush.bf16.xpose.msra.mxu0 0
        %2079 = vmatpush.bf16.xpose.msra.mxu0 0
        %2080 = vmatpush.bf16.xpose.msra.mxu0 0
        %2081 = vmatpush.bf16.xpose.msra.mxu0 0
        %2082 = vmatpush.bf16.xpose.msra.mxu0 0
        %2083 = vmatpush.bf16.xpose.msra.mxu0 0
        %2084 = vmatpush.bf16.xpose.msra.mxu0 %v2075
        %2085 = vmatmul.bf16.gmra.mxu0 %v2073
        %v2086 = vpop.f32.mrf.mxu0
        %v2087 = vadd.f32 0.0, %v2086
        %v2088 = vpop.f32.mrf.mxu0
        %2089 = vdwg.mxu0
        %v2091 = vsel %vm826, %v1814, 0
        %v2093 = vsel %vm826, %v788, 0
        %2095 = vmatpush.bf16.xpose.msra.mxu0 0
        %2096 = vmatpush.bf16.xpose.msra.mxu0 0
        %2097 = vmatpush.bf16.xpose.msra.mxu0 0
        %2098 = vmatpush.bf16.xpose.msra.mxu0 0
        %2099 = vmatpush.bf16.xpose.msra.mxu0 0
        %2100 = vmatpush.bf16.xpose.msra.mxu0 0
        %2101 = vmatpush.bf16.xpose.msra.mxu0 0
        %2102 = vmatpush.bf16.xpose.msra.mxu0 %v2093
        %2103 = vmatmul.bf16.gmra.mxu0 %v2091
        %v2104 = vpop.f32.mrf.mxu0
        %v2105 = vadd.f32 0.0, %v2104
        %v2106 = vpop.f32.mrf.mxu0
        %2107 = vdwg.mxu0
        %v2109 = vsel %vm826, %v1815, 0
        %v2111 = vsel %vm826, %v789, 0
        %2113 = vmatpush.bf16.xpose.msra.mxu0 0
        %2114 = vmatpush.bf16.xpose.msra.mxu0 0
        %2115 = vmatpush.bf16.xpose.msra.mxu0 0
        %2116 = vmatpush.bf16.xpose.msra.mxu0 0
        %2117 = vmatpush.bf16.xpose.msra.mxu0 0
        %2118 = vmatpush.bf16.xpose.msra.mxu0 0
        %2119 = vmatpush.bf16.xpose.msra.mxu0 0
        %2120 = vmatpush.bf16.xpose.msra.mxu0 %v2111
        %2121 = vmatmul.bf16.gmra.mxu0 %v2109
        %v2122 = vpop.f32.mrf.mxu0
        %v2123 = vadd.f32 0.0, %v2122
        %v2124 = vpop.f32.mrf.mxu0
        %2125 = vdwg.mxu0
        %v2127 = vsel %vm826, %v1816, 0
        %v2129 = vsel %vm826, %v790, 0
        %2131 = vmatpush.bf16.xpose.msra.mxu0 0
        %2132 = vmatpush.bf16.xpose.msra.mxu0 0
        %2133 = vmatpush.bf16.xpose.msra.mxu0 0
        %2134 = vmatpush.bf16.xpose.msra.mxu0 0
        %2135 = vmatpush.bf16.xpose.msra.mxu0 0
        %2136 = vmatpush.bf16.xpose.msra.mxu0 0
        %2137 = vmatpush.bf16.xpose.msra.mxu0 0
        %2138 = vmatpush.bf16.xpose.msra.mxu0 %v2129
        %2139 = vmatmul.bf16.gmra.mxu0 %v2127
        %v2140 = vpop.f32.mrf.mxu0
        %v2141 = vadd.f32 0.0, %v2140
        %v2142 = vpop.f32.mrf.mxu0
        %2143 = vdwg.mxu0
        %v2145 = vsel %vm826, %v1817, 0
        %v2147 = vsel %vm826, %v791, 0
        %2149 = vmatpush.bf16.xpose.msra.mxu0 0
        %2150 = vmatpush.bf16.xpose.msra.mxu0 0
        %2151 = vmatpush.bf16.xpose.msra.mxu0 0
        %2152 = vmatpush.bf16.xpose.msra.mxu0 0
        %2153 = vmatpush.bf16.xpose.msra.mxu0 0
        %2154 = vmatpush.bf16.xpose.msra.mxu0 0
        %2155 = vmatpush.bf16.xpose.msra.mxu0 0
        %2156 = vmatpush.bf16.xpose.msra.mxu0 %v2147
        %2157 = vmatmul.bf16.gmra.mxu0 %v2145
        %v2158 = vpop.f32.mrf.mxu0
        %v2159 = vadd.f32 0.0, %v2158
        %v2160 = vpop.f32.mrf.mxu0
        %2161 = vdwg.mxu0
        %v2170 = vrot.slane %v2051, 7
        %v2171 = vsel %vm1851, %v2170, %v2033
        %v2172 = vrot.slane %v2069, 6
        %v2173 = vsel %vm1854, %v2172, %v2171
        %v2174 = vrot.slane %v2087, 5
        %v2175 = vsel %vm1857, %v2174, %v2173
        %v2176 = vrot.slane %v2105, 4
        %v2177 = vsel %vm1860, %v2176, %v2175
        %v2178 = vrot.slane %v2123, 3
        %v2179 = vsel %vm1863, %v2178, %v2177
        %v2180 = vrot.slane %v2141, 2
        %v2181 = vsel %vm1866, %v2180, %v2179
        %v2182 = vrot.slane %v2159, 1
        %v2183 = vsel %vm1869, %v2182, %v2181
        %v2185 = vrot.slane %v2033, 1
        %v2186 = vsel %vm1851, %v2051, %v2185
        %v2187 = vrot.slane %v2069, 7
        %v2188 = vsel %vm1854, %v2187, %v2186
        %v2189 = vrot.slane %v2087, 6
        %v2190 = vsel %vm1857, %v2189, %v2188
        %v2191 = vrot.slane %v2105, 5
        %v2192 = vsel %vm1860, %v2191, %v2190
        %v2193 = vrot.slane %v2123, 4
        %v2194 = vsel %vm1863, %v2193, %v2192
        %v2195 = vrot.slane %v2141, 3
        %v2196 = vsel %vm1866, %v2195, %v2194
        %v2197 = vrot.slane %v2159, 2
        %v2198 = vsel %vm1869, %v2197, %v2196
        %2199 = vrot.lane.b32.xlu0 %v2198, 8
        %v2200 = vpop.permute.xlu0 %2199
        %v2202 = vrot.slane %v2033, 2
        %v2203 = vrot.slane %v2051, 1
        %v2204 = vsel %vm1851, %v2203, %v2202
        %v2205 = vsel %vm1854, %v2069, %v2204
        %v2206 = vrot.slane %v2087, 7
        %v2207 = vsel %vm1857, %v2206, %v2205
        %v2208 = vrot.slane %v2105, 6
        %v2209 = vsel %vm1860, %v2208, %v2207
        %v2210 = vrot.slane %v2123, 5
        %v2211 = vsel %vm1863, %v2210, %v2209
        %v2212 = vrot.slane %v2141, 4
        %v2213 = vsel %vm1866, %v2212, %v2211
        %v2214 = vrot.slane %v2159, 3
        %v2215 = vsel %vm1869, %v2214, %v2213
        %2216 = vrot.lane.b32.xlu0 %v2215, 16
        %v2217 = vpop.permute.xlu0 %2216
        %v2219 = vrot.slane %v2033, 3
        %v2220 = vrot.slane %v2051, 2
        %v2221 = vsel %vm1851, %v2220, %v2219
        %v2222 = vrot.slane %v2069, 1
        %v2223 = vsel %vm1854, %v2222, %v2221
        %v2224 = vsel %vm1857, %v2087, %v2223
        %v2225 = vrot.slane %v2105, 7
        %v2226 = vsel %vm1860, %v2225, %v2224
        %v2227 = vrot.slane %v2123, 6
        %v2228 = vsel %vm1863, %v2227, %v2226
        %v2229 = vrot.slane %v2141, 5
        %v2230 = vsel %vm1866, %v2229, %v2228
        %v2231 = vrot.slane %v2159, 4
        %v2232 = vsel %vm1869, %v2231, %v2230
        %2233 = vrot.lane.b32.xlu0 %v2232, 24
        %v2234 = vpop.permute.xlu0 %2233
        %v2236 = vsel %vm826, %v2183, %v2200
        %v2237 = vsel %vm2014, %v2236, %v2217
        %v2238 = vsel %vm2016, %v2237, %v2234
        %2240 = vrot.lane.b32.xlu0 %v2017, 32
        %v2241 = vpop.permute.xlu0 %2240
        %v2243 = vsel %vm796, %v2238, %v2241
        %v2244 = vld [vmem:[%s10] sm:$0x1]
        %v2245 = vld [vmem:[%s11] sm:$0x1]
        %vm2246 = vcmask 523264
        %v2247 = vsel %vm2246, %v2243, 0.0
        %2248 = vadd.xlane.f32.xlu0 %v2247
        %v2249 = vpop.xlane.xlu0 %2248
        %v2250 = vmul.f32 %v2249, %v1219
        %v2251 = vsub.f32 %v2243, %v2250
        %v2252 = vmul.f32 %v2251, %v2251
        %v2253 = vsel %vm2246, %v2252, 0.0
        %2254 = vadd.xlane.f32.xlu0 %v2253
        %v2255 = vpop.xlane.xlu0 %2254
        %v2256 = vmul.f32 %v2255, %v1219
        %v2257 = vadd.f32 %v2256, 1e-05
        %v2258 = vrsqrt.pop %v2257
        %v2259 = vmul.f32 %v2258, %v2257
        %v2260 = vmul.f32 %v2259, %v2258
        %v2261 = vmul.f32 0.5, %v2260
        %v2262 = vsub.f32 1.5, %v2261
        %v2263 = vmul.f32 %v2258, %v2262
        %vm2264 = vweird.f32 %v2257
        %vm2265 = vweird.f32 %v2258
        %vm2266 = vmor %vm2264, %vm2265
        %v2267 = vsel %vm2266, %v2258, %v2263
        %v2268 = vmul.f32 %v2251, %v2267
        %v2270 = vperm.slane %v2244, 0
        %v2272 = vmul.f32 %v2268, %v2270
        %v2274 = vperm.slane %v2245, 0
        %v2276 = vadd.f32 %v2272, %v2274
        %v2277 = vld [vmem:[%s12] sm:$0xff]
        %v2278 = vld [vmem:[%s12 + $0x8] sm:$0xff]
        %v2279 = vld [vmem:[%s12 + $0x10] sm:$0xff]
        %v2280 = vld [vmem:[%s12 + $0x18] sm:$0xff]
        %v2281 = vld [vmem:[%s12 + $0x20] sm:$0xff]
        %v2282 = vld [vmem:[%s12 + $0x28] sm:$0xff]
        %v2283 = vld [vmem:[%s12 + $0x30] sm:$0xff]
        %v2284 = vld [vmem:[%s12 + $0x38] sm:$0xff]
        %v2285 = vld [vmem:[%s13] sm:$0x1]
        %v2287 = vperm.slane %v2285, 0
        %v2290 = vsel %vm2246, %v2276, 0
        %2292 = vmatpush.msra.mxu0 0.0
        %2293 = vmatpush.msra.mxu0 0.0
        %2294 = vmatpush.msra.mxu0 0.0
        %2295 = vmatpush.msra.mxu0 0.0
        %2296 = vmatpush.msra.mxu0 0.0
        %2297 = vmatpush.msra.mxu0 0.0
        %2298 = vmatpush.msra.mxu0 0.0
        %2299 = vmatpush.msra.mxu0 0.0
        %2300 = vmatpush.msra.mxu0 %v2284
        %2301 = vmatpush.msra.mxu0 %v2283
        %2302 = vmatpush.msra.mxu0 %v2282
        %2303 = vmatpush.msra.mxu0 %v2281
        %2304 = vmatpush.msra.mxu0 %v2280
        %2305 = vmatpush.msra.mxu0 %v2279
        %2306 = vmatpush.msra.mxu0 %v2278
        %2307 = vmatpush.msra.mxu0 %v2277
        %2308 = vmatmul.f32.gmra.mxu0 %v2290
        %v2309 = vpop.f32.mrf.mxu0
        %v2310 = vadd.f32 %v2287, %v2309
        %2311 = vdwg.mxu0
        %v2312 = vld [vmem:[%s14] sm:$0x1]
        %v2313 = vld [vmem:[%s15] sm:$0x1]
        %v2314 = vsel %vm2246, %v2310, 0.0
        %2315 = vadd.xlane.f32.xlu0 %v2314
        %v2316 = vpop.xlane.xlu0 %2315
        %v2317 = vmul.f32 %v2316, %v1219
        %v2318 = vsub.f32 %v2310, %v2317
        %v2319 = vmul.f32 %v2318, %v2318
        %v2320 = vsel %vm2246, %v2319, 0.0
        %2321 = vadd.xlane.f32.xlu0 %v2320
        %v2322 = vpop.xlane.xlu0 %2321
        %v2323 = vmul.f32 %v2322, %v1219
        %v2324 = vadd.f32 %v2323, 1e-05
        %v2325 = vrsqrt.pop %v2324
        %v2326 = vmul.f32 %v2325, %v2324
        %v2327 = vmul.f32 %v2326, %v2325
        %v2328 = vmul.f32 0.5, %v2327
        %v2329 = vsub.f32 1.5, %v2328
        %v2330 = vmul.f32 %v2325, %v2329
        %vm2331 = vweird.f32 %v2324
        %vm2332 = vweird.f32 %v2325
        %vm2333 = vmor %vm2331, %vm2332
        %v2334 = vsel %vm2333, %v2325, %v2330
        %v2335 = vmul.f32 %v2318, %v2334
        %v2337 = vperm.slane %v2312, 0
        %v2339 = vmul.f32 %v2335, %v2337
        %v2341 = vperm.slane %v2313, 0
        %v2343 = vadd.f32 %v2339, %v2341
        %vm2344 = vcmp.ge.f32.partialorder %v2343, 0.0
        %v2345 = vmul.f32 %v2343, 0.01
        %v2346 = vsel %vm2344, %v2343, %v2345
        %v2347 = vld [vmem:[%s16] sm:$0xff]
        %v2348 = vld [vmem:[%s16 + $0x8] sm:$0xff]
        %v2349 = vld [vmem:[%s16 + $0x10] sm:$0xff]
        %v2350 = vld [vmem:[%s16 + $0x18] sm:$0xff]
        %v2351 = vld [vmem:[%s16 + $0x20] sm:$0xff]
        %v2352 = vld [vmem:[%s16 + $0x28] sm:$0xff]
        %v2353 = vld [vmem:[%s16 + $0x30] sm:$0xff]
        %v2354 = vld [vmem:[%s16 + $0x38] sm:$0xff]
        %v2355 = vld [vmem:[#allocation7] sm:$0x1]
        %v2357 = vperm.slane %v2355, 0
        %v2360 = vsel %vm2246, %v2346, 0
        %2362 = vmatpush.msra.mxu0 0.0
        %2363 = vmatpush.msra.mxu0 0.0
        %2364 = vmatpush.msra.mxu0 0.0
        %2365 = vmatpush.msra.mxu0 0.0
        %2366 = vmatpush.msra.mxu0 0.0
        %2367 = vmatpush.msra.mxu0 0.0
        %2368 = vmatpush.msra.mxu0 0.0
        %2369 = vmatpush.msra.mxu0 0.0
        %2370 = vmatpush.msra.mxu0 %v2354
        %2371 = vmatpush.msra.mxu0 %v2353
        %2372 = vmatpush.msra.mxu0 %v2352
        %2373 = vmatpush.msra.mxu0 %v2351
        %2374 = vmatpush.msra.mxu0 %v2350
        %2375 = vmatpush.msra.mxu0 %v2349
        %2376 = vmatpush.msra.mxu0 %v2348
        %2377 = vmatpush.msra.mxu0 %v2347
        %2378 = vmatmul.f32.gmra.mxu0 %v2360
        %v2379 = vpop.f32.mrf.mxu0
        %v2380 = vadd.f32 %v2357, %v2379
        %2381 = vdwg.mxu0
        %v2382 = vadd.f32 %v773, %v2380
        %v2383 = vld [vmem:[%s18] sm:$0x1]
        %v2384 = vld [vmem:[%s19] sm:$0x1]
        %v2385 = vsel %vm796, %v2382, 0.0
        %2386 = vadd.xlane.f32.xlu0 %v2385
        %v2387 = vpop.xlane.xlu0 %2386
        %v2388 = vrcp.pop 32.0
        %v2389 = vmul.f32 32.0, %v2388
        %v2390 = vsub.f32 1.0, %v2389
        %v2391 = vmul.f32 %v2388, %v2390
        %v2392 = vadd.f32 %v2388, %v2391
        %vm2393 = vweird.f32 %v2388
        %v2394 = vsel %vm2393, %v2388, %v2392
        %v2395 = vmul.f32 %v2387, %v2394
        %v2396 = vsub.f32 %v2382, %v2395
        %v2397 = vmul.f32 %v2396, %v2396
        %v2398 = vsel %vm796, %v2397, 0.0
        %2399 = vadd.xlane.f32.xlu0 %v2398
        %v2400 = vpop.xlane.xlu0 %2399
        %v2401 = vmul.f32 %v2400, %v2394
        %v2402 = vadd.f32 %v2401, 1e-05
        %v2403 = vrsqrt.pop %v2402
        %v2404 = vmul.f32 %v2403, %v2402
        %v2405 = vmul.f32 %v2404, %v2403
        %v2406 = vmul.f32 0.5, %v2405
        %v2407 = vsub.f32 1.5, %v2406
        %v2408 = vmul.f32 %v2403, %v2407
        %vm2409 = vweird.f32 %v2402
        %vm2410 = vweird.f32 %v2403
        %vm2411 = vmor %vm2409, %vm2410
        %v2412 = vsel %vm2411, %v2403, %v2408
        %v2413 = vmul.f32 %v2396, %v2412
        %v2415 = vperm.slane %v2383, 0
        %v2417 = vmul.f32 %v2413, %v2415
        %v2419 = vperm.slane %v2384, 0
        %v2421 = vadd.f32 %v2417, %v2419
        %2422 = vst.msk [vmem:[%s757] sm:$0xff] %vm796, %v2421
        %v2423 = vld [vmem:[%s8] sm:$0xf]
        %v2424 = vld [vmem:[%s9] sm:$0xff]
        %v2425 = vsel %vm826, %v774, 0.0
        %v2426 = vsel %vm826, %v775, 0.0
        %v2427 = vadd.f32 %v2425, %v2426
        %v2428 = vsel %vm826, %v776, 0.0
        %v2429 = vadd.f32 %v2427, %v2428
        %v2430 = vsel %vm826, %v777, 0.0
        %v2431 = vadd.f32 %v2429, %v2430
        %v2432 = vsel %vm826, %v778, 0.0
        %v2433 = vadd.f32 %v2431, %v2432
        %v2434 = vsel %vm826, %v779, 0.0
        %v2435 = vadd.f32 %v2433, %v2434
        %v2436 = vsel %vm826, %v780, 0.0
        %v2437 = vadd.f32 %v2435, %v2436
        %v2438 = vsel %vm826, %v781, 0.0
        %v2439 = vadd.f32 %v2437, %v2438
        %2440 = vadd.xlane.f32.xlu0 %v2439
        %v2441 = vpop.xlane.xlu0 %2440
        %v2442 = vsel %vm1673, %v1802, 0.0
        %v2443 = vsel %vm1673, %v1803, 0.0
        %v2444 = vadd.f32 %v2442, %v2443
        %v2445 = vsel %vm1673, %v1804, 0.0
        %v2446 = vadd.f32 %v2444, %v2445
        %v2447 = vsel %vm1673, %v1805, 0.0
        %v2448 = vadd.f32 %v2446, %v2447
        %v2449 = vsel %vm1673, %v1806, 0.0
        %v2450 = vadd.f32 %v2448, %v2449
        %v2451 = vsel %vm1673, %v1807, 0.0
        %v2452 = vadd.f32 %v2450, %v2451
        %v2453 = vsel %vm1673, %v1808, 0.0
        %v2454 = vadd.f32 %v2452, %v2453
        %v2455 = vsel %vm1673, %v1809, 0.0
        %v2456 = vadd.f32 %v2454, %v2455
        %2457 = vadd.xlane.f32.xlu0 %v2456
        %v2458 = vpop.xlane.xlu0 %2457
        %v2459 = vmul.f32 %v2441, %v1219
        %v2460 = vmul.f32 %v2458, %v1219
        %v2461 = vsub.f32 %v774, %v2459
        %v2462 = vsub.f32 %v1802, %v2460
        %v2463 = vsub.f32 %v775, %v2459
        %v2464 = vsub.f32 %v1803, %v2460
        %v2465 = vsub.f32 %v776, %v2459
        %v2466 = vsub.f32 %v1804, %v2460
        %v2467 = vsub.f32 %v777, %v2459
        %v2468 = vsub.f32 %v1805, %v2460
        %v2469 = vsub.f32 %v778, %v2459
        %v2470 = vsub.f32 %v1806, %v2460
        %v2471 = vsub.f32 %v779, %v2459
        %v2472 = vsub.f32 %v1807, %v2460
        %v2473 = vsub.f32 %v780, %v2459
        %v2474 = vsub.f32 %v1808, %v2460
        %v2475 = vsub.f32 %v781, %v2459
        %v2476 = vsub.f32 %v1809, %v2460
        %v2477 = vmul.f32 %v2461, %v2461
        %v2478 = vmul.f32 %v2462, %v2462
        %v2479 = vmul.f32 %v2463, %v2463
        %v2480 = vmul.f32 %v2464, %v2464
        %v2481 = vmul.f32 %v2465, %v2465
        %v2482 = vmul.f32 %v2466, %v2466
        %v2483 = vmul.f32 %v2467, %v2467
        %v2484 = vmul.f32 %v2468, %v2468
        %v2485 = vmul.f32 %v2469, %v2469
        %v2486 = vmul.f32 %v2470, %v2470
        %v2487 = vmul.f32 %v2471, %v2471
        %v2488 = vmul.f32 %v2472, %v2472
        %v2489 = vmul.f32 %v2473, %v2473
        %v2490 = vmul.f32 %v2474, %v2474
        %v2491 = vmul.f32 %v2475, %v2475
        %v2492 = vmul.f32 %v2476, %v2476
        %v2493 = vsel %vm826, %v2477, 0.0
        %v2494 = vsel %vm826, %v2479, 0.0
        %v2495 = vadd.f32 %v2493, %v2494
        %v2496 = vsel %vm826, %v2481, 0.0
        %v2497 = vadd.f32 %v2495, %v2496
        %v2498 = vsel %vm826, %v2483, 0.0
        %v2499 = vadd.f32 %v2497, %v2498
        %v2500 = vsel %vm826, %v2485, 0.0
        %v2501 = vadd.f32 %v2499, %v2500
        %v2502 = vsel %vm826, %v2487, 0.0
        %v2503 = vadd.f32 %v2501, %v2502
        %v2504 = vsel %vm826, %v2489, 0.0
        %v2505 = vadd.f32 %v2503, %v2504
        %v2506 = vsel %vm826, %v2491, 0.0
        %v2507 = vadd.f32 %v2505, %v2506
        %2508 = vadd.xlane.f32.xlu0 %v2507
        %v2509 = vpop.xlane.xlu0 %2508
        %v2510 = vsel %vm1673, %v2478, 0.0
        %v2511 = vsel %vm1673, %v2480, 0.0
        %v2512 = vadd.f32 %v2510, %v2511
        %v2513 = vsel %vm1673, %v2482, 0.0
        %v2514 = vadd.f32 %v2512, %v2513
        %v2515 = vsel %vm1673, %v2484, 0.0
        %v2516 = vadd.f32 %v2514, %v2515
        %v2517 = vsel %vm1673, %v2486, 0.0
        %v2518 = vadd.f32 %v2516, %v2517
        %v2519 = vsel %vm1673, %v2488, 0.0
        %v2520 = vadd.f32 %v2518, %v2519
        %v2521 = vsel %vm1673, %v2490, 0.0
        %v2522 = vadd.f32 %v2520, %v2521
        %v2523 = vsel %vm1673, %v2492, 0.0
        %v2524 = vadd.f32 %v2522, %v2523
        %2525 = vadd.xlane.f32.xlu0 %v2524
        %v2526 = vpop.xlane.xlu0 %2525
        %v2527 = vmul.f32 %v2509, %v1219
        %v2528 = vmul.f32 %v2526, %v1219
        %v2529 = vadd.f32 %v2527, 1e-05
        %v2530 = vadd.f32 %v2528, 1e-05
        %v2531 = vrsqrt.pop %v2529
        %v2532 = vmul.f32 %v2531, %v2529
        %v2533 = vmul.f32 %v2532, %v2531
        %v2534 = vmul.f32 0.5, %v2533
        %v2535 = vsub.f32 1.5, %v2534
        %v2536 = vmul.f32 %v2531, %v2535
        %vm2537 = vweird.f32 %v2529
        %vm2538 = vweird.f32 %v2531
        %vm2539 = vmor %vm2537, %vm2538
        %v2540 = vsel %vm2539, %v2531, %v2536
        %v2541 = vrsqrt.pop %v2530
        %v2542 = vmul.f32 %v2541, %v2530
        %v2543 = vmul.f32 %v2542, %v2541
        %v2544 = vmul.f32 0.5, %v2543
        %v2545 = vsub.f32 1.5, %v2544
        %v2546 = vmul.f32 %v2541, %v2545
        %vm2547 = vweird.f32 %v2530
        %vm2548 = vweird.f32 %v2541
        %vm2549 = vmor %vm2547, %vm2548
        %v2550 = vsel %vm2549, %v2541, %v2546
        %v2551 = vmul.f32 %v2461, %v2540
        %v2552 = vmul.f32 %v2462, %v2550
        %v2553 = vmul.f32 %v2463, %v2540
        %v2554 = vmul.f32 %v2464, %v2550
        %v2555 = vmul.f32 %v2465, %v2540
        %v2556 = vmul.f32 %v2466, %v2550
        %v2557 = vmul.f32 %v2467, %v2540
        %v2558 = vmul.f32 %v2468, %v2550
        %v2559 = vmul.f32 %v2469, %v2540
        %v2560 = vmul.f32 %v2470, %v2550
        %v2561 = vmul.f32 %v2471, %v2540
        %v2562 = vmul.f32 %v2472, %v2550
        %v2563 = vmul.f32 %v2473, %v2540
        %v2564 = vmul.f32 %v2474, %v2550
        %v2565 = vmul.f32 %v2475, %v2540
        %v2566 = vmul.f32 %v2476, %v2550
        %v2567 = vpack.c.bf16 %v2551, %v2551
        %v2568 = vpack.c.bf16 %v2552, %v2552
        %v2569 = vpack.c.bf16 %v2553, %v2553
        %v2570 = vpack.c.bf16 %v2554, %v2554
        %v2571 = vpack.c.bf16 %v2555, %v2555
        %v2572 = vpack.c.bf16 %v2556, %v2556
        %v2573 = vpack.c.bf16 %v2557, %v2557
        %v2574 = vpack.c.bf16 %v2558, %v2558
        %v2575 = vpack.c.bf16 %v2559, %v2559
        %v2576 = vpack.c.bf16 %v2560, %v2560
        %v2577 = vpack.c.bf16 %v2561, %v2561
        %v2578 = vpack.c.bf16 %v2562, %v2562
        %v2579 = vpack.c.bf16 %v2563, %v2563
        %v2580 = vpack.c.bf16 %v2564, %v2564
        %v2581 = vpack.c.bf16 %v2565, %v2565
        %v2582 = vpack.c.bf16 %v2566, %v2566
        %v2599 = vunpack.c.l.b16 %v2567
        %v2600 = vunpack.c.l.b16 %v2568
        %v2601 = vunpack.c.l.b16 %v2569
        %v2602 = vunpack.c.l.b16 %v2570
        %v2603 = vunpack.c.l.b16 %v2571
        %v2604 = vunpack.c.l.b16 %v2572
        %v2605 = vunpack.c.l.b16 %v2573
        %v2606 = vunpack.c.l.b16 %v2574
        %v2607 = vunpack.c.l.b16 %v2575
        %v2608 = vunpack.c.l.b16 %v2576
        %v2609 = vunpack.c.l.b16 %v2577
        %v2610 = vunpack.c.l.b16 %v2578
        %v2611 = vunpack.c.l.b16 %v2579
        %v2612 = vunpack.c.l.b16 %v2580
        %v2613 = vunpack.c.l.b16 %v2581
        %v2614 = vunpack.c.l.b16 %v2582
        %v2615 = vpack.c.b16 %v2600, %v2599
        %v2616 = vpack.c.b16 %v2602, %v2601
        %v2617 = vpack.c.b16 %v2604, %v2603
        %v2618 = vpack.c.b16 %v2606, %v2605
        %v2619 = vpack.c.b16 %v2608, %v2607
        %v2620 = vpack.c.b16 %v2610, %v2609
        %v2621 = vpack.c.b16 %v2612, %v2611
        %v2622 = vpack.c.b16 %v2614, %v2613
        %2623 = vrot.lane.b32.xlu0 %v2615, 1
        %v2624 = vpop.permute.xlu0 %2623
        %2625 = vrot.lane.b32.xlu0 %v2616, 1
        %v2626 = vpop.permute.xlu0 %2625
        %2627 = vrot.lane.b32.xlu0 %v2617, 1
        %v2628 = vpop.permute.xlu0 %2627
        %2629 = vrot.lane.b32.xlu0 %v2618, 1
        %v2630 = vpop.permute.xlu0 %2629
        %2631 = vrot.lane.b32.xlu0 %v2619, 1
        %v2632 = vpop.permute.xlu0 %2631
        %2633 = vrot.lane.b32.xlu0 %v2620, 1
        %v2634 = vpop.permute.xlu0 %2633
        %2635 = vrot.lane.b32.xlu0 %v2621, 1
        %v2636 = vpop.permute.xlu0 %2635
        %2637 = vrot.lane.b32.xlu0 %v2622, 1
        %v2638 = vpop.permute.xlu0 %2637
        %v2640 = vsel %vm1322, 0, %v2624
        %v2642 = vsel %vm1322, 0, %v2626
        %v2644 = vsel %vm1322, 0, %v2628
        %v2646 = vsel %vm1322, 0, %v2630
        %v2648 = vsel %vm1322, 0, %v2632
        %v2650 = vsel %vm1322, 0, %v2634
        %v2652 = vsel %vm1322, 0, %v2636
        %v2654 = vsel %vm1322, 0, %v2638
        %2655 = vrot.lane.b32.xlu0 %v2615, 127
        %v2656 = vpop.permute.xlu0 %2655
        %2657 = vrot.lane.b32.xlu0 %v2616, 127
        %v2658 = vpop.permute.xlu0 %2657
        %2659 = vrot.lane.b32.xlu0 %v2617, 127
        %v2660 = vpop.permute.xlu0 %2659
        %2661 = vrot.lane.b32.xlu0 %v2618, 127
        %v2662 = vpop.permute.xlu0 %2661
        %2663 = vrot.lane.b32.xlu0 %v2619, 127
        %v2664 = vpop.permute.xlu0 %2663
        %2665 = vrot.lane.b32.xlu0 %v2620, 127
        %v2666 = vpop.permute.xlu0 %2665
        %2667 = vrot.lane.b32.xlu0 %v2621, 127
        %v2668 = vpop.permute.xlu0 %2667
        %2669 = vrot.lane.b32.xlu0 %v2622, 127
        %v2670 = vpop.permute.xlu0 %2669
        %v2672 = vsel %vm1356, %v2656, 0
        %v2674 = vsel %vm1356, %v2658, 0
        %v2676 = vsel %vm1356, %v2660, 0
        %v2678 = vsel %vm1356, %v2662, 0
        %v2680 = vsel %vm1356, %v2664, 0
        %v2682 = vsel %vm1356, %v2666, 0
        %v2684 = vsel %vm1356, %v2668, 0
        %v2686 = vsel %vm1356, %v2670, 0
        %v2687 = vrot.slane %v2615, 2
        %v2688 = vrot.slane %v2616, 2
        %v2689 = vrot.slane %v2617, 2
        %v2690 = vrot.slane %v2618, 2
        %v2691 = vrot.slane %v2619, 2
        %v2692 = vrot.slane %v2620, 2
        %v2693 = vrot.slane %v2621, 2
        %v2694 = vrot.slane %v2622, 2
        %v2703 = vrot.slane %v2672, 4
        %v2704 = vrot.slane %v2674, 4
        %v2705 = vrot.slane %v2676, 4
        %v2706 = vrot.slane %v2678, 4
        %v2707 = vrot.slane %v2680, 4
        %v2708 = vrot.slane %v2682, 4
        %v2709 = vrot.slane %v2684, 4
        %v2710 = vrot.slane %v2686, 4
        %vm2711 = vcmask 1045504
        %v2713 = vsel %vm2711, %v2640, %v2687
        %v2716 = vsel %vm2711, %v2642, %v2688
        %v2719 = vsel %vm2711, %v2644, %v2689
        %v2722 = vsel %vm2711, %v2646, %v2690
        %v2725 = vsel %vm2711, %v2648, %v2691
        %v2728 = vsel %vm2711, %v2650, %v2692
        %v2731 = vsel %vm2711, %v2652, %v2693
        %v2734 = vsel %vm2711, %v2654, %v2694
        %v2736 = vsel %vm1033, %v2687, %v2703
        %v2739 = vsel %vm1033, %v2688, %v2704
        %v2742 = vsel %vm1033, %v2689, %v2705
        %v2745 = vsel %vm1033, %v2690, %v2706
        %v2748 = vsel %vm1033, %v2691, %v2707
        %v2751 = vsel %vm1033, %v2692, %v2708
        %v2754 = vsel %vm1033, %v2693, %v2709
        %v2757 = vsel %vm1033, %v2694, %v2710
        %vm2774 = vcmask 1041408
        %v2775 = vrot.slane %v2713, 6
        %v2776 = vrot.slane %v2736, 6
        %v2777 = vsel %vm2774, %v2775, %v2776
        %v2778 = vrot.slane %v2703, 6
        %v2779 = vsel %vm2774, %v2776, %v2778
        %v2780 = vrot.slane %v2716, 6
        %v2781 = vrot.slane %v2739, 6
        %v2782 = vsel %vm2774, %v2780, %v2781
        %v2783 = vrot.slane %v2704, 6
        %v2784 = vsel %vm2774, %v2781, %v2783
        %v2785 = vrot.slane %v2719, 6
        %v2786 = vrot.slane %v2742, 6
        %v2787 = vsel %vm2774, %v2785, %v2786
        %v2788 = vrot.slane %v2705, 6
        %v2789 = vsel %vm2774, %v2786, %v2788
        %v2790 = vrot.slane %v2722, 6
        %v2791 = vrot.slane %v2745, 6
        %v2792 = vsel %vm2774, %v2790, %v2791
        %v2793 = vrot.slane %v2706, 6
        %v2794 = vsel %vm2774, %v2791, %v2793
        %v2795 = vrot.slane %v2725, 6
        %v2796 = vrot.slane %v2748, 6
        %v2797 = vsel %vm2774, %v2795, %v2796
        %v2798 = vrot.slane %v2707, 6
        %v2799 = vsel %vm2774, %v2796, %v2798
        %v2800 = vrot.slane %v2728, 6
        %v2801 = vrot.slane %v2751, 6
        %v2802 = vsel %vm2774, %v2800, %v2801
        %v2803 = vrot.slane %v2708, 6
        %v2804 = vsel %vm2774, %v2801, %v2803
        %v2805 = vrot.slane %v2731, 6
        %v2806 = vrot.slane %v2754, 6
        %v2807 = vsel %vm2774, %v2805, %v2806
        %v2808 = vrot.slane %v2709, 6
        %v2809 = vsel %vm2774, %v2806, %v2808
        %v2810 = vrot.slane %v2734, 6
        %v2811 = vrot.slane %v2757, 6
        %v2812 = vsel %vm2774, %v2810, %v2811
        %v2813 = vrot.slane %v2710, 6
        %v2814 = vsel %vm2774, %v2811, %v2813
        %v2824 = vrot.slane %v2716, 4
        %v2825 = vrot.slane %v2739, 4
        %v2826 = vsel %vm1413, %v2824, %v2825
        %v2827 = vrot.slane %v2704, 4
        %v2828 = vsel %vm1413, %v2825, %v2827
        %v2829 = vrot.slane %v2719, 4
        %v2830 = vrot.slane %v2742, 4
        %v2831 = vsel %vm1413, %v2829, %v2830
        %v2832 = vrot.slane %v2705, 4
        %v2833 = vsel %vm1413, %v2830, %v2832
        %v2834 = vrot.slane %v2722, 4
        %v2835 = vrot.slane %v2745, 4
        %v2836 = vsel %vm1413, %v2834, %v2835
        %v2837 = vrot.slane %v2706, 4
        %v2838 = vsel %vm1413, %v2835, %v2837
        %v2839 = vrot.slane %v2725, 4
        %v2840 = vrot.slane %v2748, 4
        %v2841 = vsel %vm1413, %v2839, %v2840
        %v2842 = vrot.slane %v2707, 4
        %v2843 = vsel %vm1413, %v2840, %v2842
        %v2844 = vrot.slane %v2728, 4
        %v2845 = vrot.slane %v2751, 4
        %v2846 = vsel %vm1413, %v2844, %v2845
        %v2847 = vrot.slane %v2708, 4
        %v2848 = vsel %vm1413, %v2845, %v2847
        %v2849 = vrot.slane %v2731, 4
        %v2850 = vrot.slane %v2754, 4
        %v2851 = vsel %vm1413, %v2849, %v2850
        %v2852 = vrot.slane %v2709, 4
        %v2853 = vsel %vm1413, %v2850, %v2852
        %v2854 = vrot.slane %v2734, 4
        %v2855 = vrot.slane %v2757, 4
        %v2856 = vsel %vm1413, %v2854, %v2855
        %v2857 = vrot.slane %v2710, 4
        %v2858 = vsel %vm1413, %v2855, %v2857
        %v2859 = vrot.slane 0, 4
        %v2860 = vsel %vm1413, %v2859, %v2859
        %v2870 = vsel %vm1011, 0, %v2775
        %v2873 = vsel %vm1011, %v2703, %v2780
        %v2876 = vsel %vm1011, %v2704, %v2785
        %v2879 = vsel %vm1011, %v2705, %v2790
        %v2882 = vsel %vm1011, %v2706, %v2795
        %v2885 = vsel %vm1011, %v2707, %v2800
        %v2888 = vsel %vm1011, %v2708, %v2805
        %v2891 = vsel %vm1011, %v2709, %v2810
        %v2895 = vsel %vm1033, %v2779, %v2824
        %v2899 = vsel %vm1033, %v2784, %v2829
        %v2903 = vsel %vm1033, %v2789, %v2834
        %v2907 = vsel %vm1033, %v2794, %v2839
        %v2911 = vsel %vm1033, %v2799, %v2844
        %v2915 = vsel %vm1033, %v2804, %v2849
        %v2919 = vsel %vm1033, %v2809, %v2854
        %v2923 = vsel %vm1033, %v2814, %v2859
        %2926 = vset.pattern.permute.xlu0 0
        %2927 = vperm.xlu0 %2926, %v2424
        %v2928 = vpop.permute.xlu0 %2927
        %vm2930 = vcmask 883712
        %v2932 = vsel %vm2930, %v2423, 0
        %v2935 = vsel %vm2711, %v2828, 0
        %2937 = vmatpush.bf16.msra.mxu0 0
        %2938 = vmatpush.bf16.msra.mxu0 %v2935
        %2939 = vmatpush.bf16.msra.mxu0 %v2826
        %2940 = vmatpush.bf16.msra.mxu0 %v2895
        %2941 = vmatpush.bf16.msra.mxu0 %v2777
        %2942 = vmatpush.bf16.msra.mxu0 %v2870
        %2943 = vmatpush.bf16.msra.mxu0 0
        %2944 = vmatpush.bf16.msra.mxu0 0
        %2945 = vmatmul.bf16.gmra.mxu0 %v2932
        %v2946 = vpop.f32.mrf.mxu0
        %v2947 = vadd.f32 %v2928, %v2946
        %v2948 = vpop.f32.mrf.mxu0
        %2949 = vdwg.mxu0
        %v2951 = vsel %vm2711, %v2833, 0
        %2953 = vmatpush.bf16.msra.mxu0 0
        %2954 = vmatpush.bf16.msra.mxu0 %v2951
        %2955 = vmatpush.bf16.msra.mxu0 %v2831
        %2956 = vmatpush.bf16.msra.mxu0 %v2899
        %2957 = vmatpush.bf16.msra.mxu0 %v2782
        %2958 = vmatpush.bf16.msra.mxu0 %v2873
        %2959 = vmatpush.bf16.msra.mxu0 %v2736
        %2960 = vmatpush.bf16.msra.mxu0 %v2713
        %2961 = vmatmul.bf16.gmra.mxu0 %v2932
        %v2962 = vpop.f32.mrf.mxu0
        %v2963 = vadd.f32 %v2928, %v2962
        %v2964 = vpop.f32.mrf.mxu0
        %2965 = vdwg.mxu0
        %v2967 = vsel %vm2711, %v2838, 0
        %2969 = vmatpush.bf16.msra.mxu0 0
        %2970 = vmatpush.bf16.msra.mxu0 %v2967
        %2971 = vmatpush.bf16.msra.mxu0 %v2836
        %2972 = vmatpush.bf16.msra.mxu0 %v2903
        %2973 = vmatpush.bf16.msra.mxu0 %v2787
        %2974 = vmatpush.bf16.msra.mxu0 %v2876
        %2975 = vmatpush.bf16.msra.mxu0 %v2739
        %2976 = vmatpush.bf16.msra.mxu0 %v2716
        %2977 = vmatmul.bf16.gmra.mxu0 %v2932
        %v2978 = vpop.f32.mrf.mxu0
        %v2979 = vadd.f32 %v2928, %v2978
        %v2980 = vpop.f32.mrf.mxu0
        %2981 = vdwg.mxu0
        %v2983 = vsel %vm2711, %v2843, 0
        %2985 = vmatpush.bf16.msra.mxu0 0
        %2986 = vmatpush.bf16.msra.mxu0 %v2983
        %2987 = vmatpush.bf16.msra.mxu0 %v2841
        %2988 = vmatpush.bf16.msra.mxu0 %v2907
        %2989 = vmatpush.bf16.msra.mxu0 %v2792
        %2990 = vmatpush.bf16.msra.mxu0 %v2879
        %2991 = vmatpush.bf16.msra.mxu0 %v2742
        %2992 = vmatpush.bf16.msra.mxu0 %v2719
        %2993 = vmatmul.bf16.gmra.mxu0 %v2932
        %v2994 = vpop.f32.mrf.mxu0
        %v2995 = vadd.f32 %v2928, %v2994
        %v2996 = vpop.f32.mrf.mxu0
        %2997 = vdwg.mxu0
        %v2999 = vsel %vm2711, %v2848, 0
        %3001 = vmatpush.bf16.msra.mxu0 0
        %3002 = vmatpush.bf16.msra.mxu0 %v2999
        %3003 = vmatpush.bf16.msra.mxu0 %v2846
        %3004 = vmatpush.bf16.msra.mxu0 %v2911
        %3005 = vmatpush.bf16.msra.mxu0 %v2797
        %3006 = vmatpush.bf16.msra.mxu0 %v2882
        %3007 = vmatpush.bf16.msra.mxu0 %v2745
        %3008 = vmatpush.bf16.msra.mxu0 %v2722
        %3009 = vmatmul.bf16.gmra.mxu0 %v2932
        %v3010 = vpop.f32.mrf.mxu0
        %v3011 = vadd.f32 %v2928, %v3010
        %v3012 = vpop.f32.mrf.mxu0
        %3013 = vdwg.mxu0
        %v3015 = vsel %vm2711, %v2853, 0
        %3017 = vmatpush.bf16.msra.mxu0 0
        %3018 = vmatpush.bf16.msra.mxu0 %v3015
        %3019 = vmatpush.bf16.msra.mxu0 %v2851
        %3020 = vmatpush.bf16.msra.mxu0 %v2915
        %3021 = vmatpush.bf16.msra.mxu0 %v2802
        %3022 = vmatpush.bf16.msra.mxu0 %v2885
        %3023 = vmatpush.bf16.msra.mxu0 %v2748
        %3024 = vmatpush.bf16.msra.mxu0 %v2725
        %3025 = vmatmul.bf16.gmra.mxu0 %v2932
        %v3026 = vpop.f32.mrf.mxu0
        %v3027 = vadd.f32 %v2928, %v3026
        %v3028 = vpop.f32.mrf.mxu0
        %3029 = vdwg.mxu0
        %v3031 = vsel %vm2711, %v2858, 0
        %3033 = vmatpush.bf16.msra.mxu0 0
        %3034 = vmatpush.bf16.msra.mxu0 %v3031
        %3035 = vmatpush.bf16.msra.mxu0 %v2856
        %3036 = vmatpush.bf16.msra.mxu0 %v2919
        %3037 = vmatpush.bf16.msra.mxu0 %v2807
        %3038 = vmatpush.bf16.msra.mxu0 %v2888
        %3039 = vmatpush.bf16.msra.mxu0 %v2751
        %3040 = vmatpush.bf16.msra.mxu0 %v2728
        %3041 = vmatmul.bf16.gmra.mxu0 %v2932
        %v3042 = vpop.f32.mrf.mxu0
        %v3043 = vadd.f32 %v2928, %v3042
        %v3044 = vpop.f32.mrf.mxu0
        %3045 = vdwg.mxu0
        %v3047 = vsel %vm2711, %v2860, 0
        %3049 = vmatpush.bf16.msra.mxu0 0
        %3050 = vmatpush.bf16.msra.mxu0 %v3047
        %3051 = vmatpush.bf16.msra.mxu0 %v2860
        %3052 = vmatpush.bf16.msra.mxu0 %v2923
        %3053 = vmatpush.bf16.msra.mxu0 %v2812
        %3054 = vmatpush.bf16.msra.mxu0 %v2891
        %3055 = vmatpush.bf16.msra.mxu0 %v2754
        %3056 = vmatpush.bf16.msra.mxu0 %v2731
        %3057 = vmatmul.bf16.gmra.mxu0 %v2932
        %v3058 = vpop.f32.mrf.mxu0
        %v3059 = vadd.f32 %v2928, %v3058
        %v3060 = vpop.f32.mrf.mxu0
        %3061 = vdwg.mxu0
        %vm3062 = vcmp.ge.f32.partialorder %v2947, 0.0
        %vm3063 = vcmp.ge.f32.partialorder %v2963, 0.0
        %vm3064 = vcmp.ge.f32.partialorder %v2979, 0.0
        %vm3065 = vcmp.ge.f32.partialorder %v2995, 0.0
        %vm3066 = vcmp.ge.f32.partialorder %v3011, 0.0
        %vm3067 = vcmp.ge.f32.partialorder %v3027, 0.0
        %vm3068 = vcmp.ge.f32.partialorder %v3043, 0.0
        %vm3069 = vcmp.ge.f32.partialorder %v3059, 0.0
        %v3070 = vmul.f32 %v2947, 0.01
        %v3071 = vmul.f32 %v2963, 0.01
        %v3072 = vmul.f32 %v2979, 0.01
        %v3073 = vmul.f32 %v2995, 0.01
        %v3074 = vmul.f32 %v3011, 0.01
        %v3075 = vmul.f32 %v3027, 0.01
        %v3076 = vmul.f32 %v3043, 0.01
        %v3077 = vmul.f32 %v3059, 0.01
        %v3078 = vsel %vm3062, %v2947, %v3070
        %v3079 = vsel %vm3063, %v2963, %v3071
        %v3080 = vsel %vm3064, %v2979, %v3072
        %v3081 = vsel %vm3065, %v2995, %v3073
        %v3082 = vsel %vm3066, %v3011, %v3074
        %v3083 = vsel %vm3067, %v3027, %v3075
        %v3084 = vsel %vm3068, %v3043, %v3076
        %v3085 = vsel %vm3069, %v3059, %v3077
        %3086 = vst.msk [vmem:[%s764] sm:$0xff] %vm826, %v3078
        %3087 = vst.msk [vmem:[%s764 + $0x8] sm:$0xff] %vm826, %v3079
        %3088 = vst.msk [vmem:[%s764 + $0x10] sm:$0xff] %vm826, %v3080
        %3089 = vst.msk [vmem:[%s764 + $0x18] sm:$0xff] %vm826, %v3081
        %3090 = vst.msk [vmem:[%s764 + $0x20] sm:$0xff] %vm826, %v3082
        %3091 = vst.msk [vmem:[%s764 + $0x28] sm:$0xff] %vm826, %v3083
        %3092 = vst.msk [vmem:[%s764 + $0x30] sm:$0xff] %vm826, %v3084
        %3093 = vst.msk [vmem:[%s764 + $0x38] sm:$0xff] %vm826, %v3085
        %s3094 = sand.u32 %s493, 1
        %s3095 = scalar_lea.sflag [#allocation4], %s3094
        %s3096 = sand.u32 %s493, 1
        %s3097 = smul.addr %s3096, 8
        %s3098 = scalar_lea.vmem [#allocation8], %s3097
        %s3099 = sand.u32 %s519, 1
        %s3100 = scalar_lea.sflag [#allocation10], %s3099
        %s3101 = sand.u32 %s519, 1
        %s3102 = smul.addr %s3101, 64
        %s3103 = scalar_lea.vmem [#allocation9], %s3102
        // Predicated region
        $region113: #{tpu_custom_call.1} parent=99 // pred_check
          %p3104 = pneg %p503
        $region114: #{tpu_custom_call.1} parent=99 // pred_check_branch
          %3106 = sbr.rel (%p3104) target = $region116
        $region115: #{tpu_custom_call.1} parent=99 // pred_region
          %3108 = vsyncadd %s3095, 0
          %s3109 = smul.addr %s45, 8
          %s3110 = scalar_lea.hbm %s20, %s3109
          %s3112 = sshll.u32 %s3098, 4
          %s3113 = int_to_ptr.vmem [resolvable:$true] %s3112
          %s3114 = sshll.u32 %s3110, 4
          %s3115 = int_to_ptr.hbm [resolvable:$true] %s3114
          %3117 = dma.vmem_to_hbm [thread:$0]  %s3113, 128, %s3115, %s3095
        $region116: #{tpu_custom_call.1} parent=99 // pred_fallthru
          _
        // Predicated region
        $region117: #{tpu_custom_call.1} parent=99 // pred_check
          %p3118 = pneg %p529
        $region118: #{tpu_custom_call.1} parent=99 // pred_check_branch
          %3120 = sbr.rel (%p3118) target = $region120
        $region119: #{tpu_custom_call.1} parent=99 // pred_region
          %3122 = vsyncadd %s3100, 0
          %s3123 = smul.addr %s45, 8
          %s3124 = smul.addr %s3123, 8
          %s3125 = scalar_lea.hbm %s21, %s3124
          %s3126 = sshll.u32 %s3103, 4
          %s3127 = int_to_ptr.vmem [resolvable:$true] %s3126
          %s3128 = sshll.u32 %s3125, 4
          %s3129 = int_to_ptr.hbm [resolvable:$true] %s3128
          %3134 = dma.vmem_to_hbm [thread:$0]  %s3127, 1024, %s3129, %s3100, 128, 128, 8
        $region120: #{tpu_custom_call.1} parent=99 // pred_fallthru
          _
      $region100: #{tpu_custom_call.1} parent=5 // pred_fallthru
        _
      %p3135 = scmp.le.s32.totalorder 2, %s40
      // Predicated region
      $region121: #{tpu_custom_call.1} parent=5 // pred_check
        %p3136 = pneg %p3135
      $region122: #{tpu_custom_call.1} parent=5 // pred_check_branch
        %3138 = sbr.rel (%p3136) target = $region124
      $region123: #{tpu_custom_call.1} parent=5 // pred_region
        %s3139 = ssub.s32 %s40, 2
        // Predicated region
        $region125: #{tpu_custom_call.1} parent=123 // pred_check
          %p3140 = pneg %p509
        $region126: #{tpu_custom_call.1} parent=123 // pred_check_branch
          %3142 = sbr.rel (%p3140) target = $region128
        $region127: #{tpu_custom_call.1} parent=123 // pred_region
          %s3143 = sand.u32 %s494, 1
          %s3144 = scalar_lea.sflag [#allocation4], %s3143
          %s3145 = sand.u32 %s494, 1
          %s3146 = smul.addr %s3145, 8
          %s3147 = scalar_lea.vmem [#allocation8], %s3146
          %3149 = dma.done %s3144, 128
        $region128: #{tpu_custom_call.1} parent=123 // pred_fallthru
          _
        // Predicated region
        $region129: #{tpu_custom_call.1} parent=123 // pred_check
          %p3150 = pneg %p535
        $region130: #{tpu_custom_call.1} parent=123 // pred_check_branch
          %3152 = sbr.rel (%p3150) target = $region132
        $region131: #{tpu_custom_call.1} parent=123 // pred_region
          %s3153 = sand.u32 %s520, 1
          %s3154 = scalar_lea.sflag [#allocation10], %s3153
          %s3155 = sand.u32 %s520, 1
          %s3156 = smul.addr %s3155, 64
          %s3157 = scalar_lea.vmem [#allocation9], %s3156
          %3159 = dma.done %s3154, 1024
        $region132: #{tpu_custom_call.1} parent=123 // pred_fallthru
          _
      $region124: #{tpu_custom_call.1} parent=5 // pred_fallthru
        _
    $region6: #{tpu_custom_call.1} parent=1 // loop_footer
      %s44 = sadd.s32 1, %s40
    $region7: #{tpu_custom_call.1} parent=1 // loop_footer_branch
      %39 = sbr.rel target = $region3
    $region8: #{tpu_custom_call.1} parent=1 // loop_exit
      _
    %3160 = vsyncpa [#allocation3], 1
    %s3161 = scalar_lea.sflag [#allocation3], 1
    %3162 = vsyncpa %s3161, 1
    %3163 = vsyncpa [#allocation6], 1
    %s3164 = scalar_lea.sflag [#allocation6], 1
    %3165 = vsyncpa %s3164, 1
    %3166 = vsyncpa [#allocation4], 1
    %s3167 = scalar_lea.sflag [#allocation4], 1
    %3168 = vsyncpa %s3167, 1
    %3169 = vsyncpa [#allocation10], 1
    %s3170 = scalar_lea.sflag [#allocation10], 1
    %3171 = vsyncpa %s3170, 1

</llo_original>
